<compile_context>
chip_gen: v7x
topology: tpu7x:2x2x1
jax: 0.10.0
libtpu: 0.0.40
codegen_flags: <defaults>
</compile_context>

<pallas_src>
import jax
import jax.numpy as jnp
from jax.experimental import pallas as pl
from jax.experimental.pallas import tpu as pltpu

EPS = 1e-5    # PyTorch LayerNorm default
LANE = 128    # vreg lane width


def _layernorm(y, gamma, beta):
    # One-pass LN: mean and mean-of-squares computed together.
    mu = jnp.mean(y, axis=-1, keepdims=True)
    ms = jnp.mean(y * y, axis=-1, keepdims=True)
    var = ms - mu * mu
    return (y - mu) * jax.lax.rsqrt(var + EPS) * gamma + beta


# ----------------------------------------------------------------------------
# Fused forward kernel (batch-tiled grid; weights VMEM-resident across steps)
# ----------------------------------------------------------------------------
def _fused_forward_kernel(
    src_ref,
    enc_w1_ref, enc_w2_ref, enc_vec1_ref, enc_vec2_ref,      # encoder
    attn_w_ref, ffn_w1_ref, ffn_w2_ref, layer_vec_ref, ffn_b1_ref,  # layers
    dec_w1_ref, dec_w2_ref, dec_vec_ref, dec_b2_ref,          # decoder
    out_ref,
):
    def affine(x, w, b):
        # bf16 operands on the MXU, f32 accumulation, f32 bias add.
        return jnp.dot(x.astype(jnp.bfloat16), w,
                       preferred_element_type=jnp.float32) + b

    x = src_ref[...]

    # --- encoder: (Linear -> LayerNorm -> ReLU) x 2, dropout == identity ---
    ev1 = enc_vec1_ref[...]                      # rows: [bias, gamma, beta]
    x = jnp.maximum(
        _layernorm(affine(x, enc_w1_ref[...], ev1[0:1]), ev1[1:2], ev1[2:3]), 0.0)
    ev2 = enc_vec2_ref[...]
    x = jnp.maximum(
        _layernorm(affine(x, enc_w2_ref[...], ev2[0:1]), ev2[1:2], ev2[2:3]), 0.0)

    # --- transformer encoder layers (seq_len == 1, post-norm) ---
    # softmax over a single key == 1  =>  attention == out_proj(v_proj(x)),
    # pre-folded into (attn_w, attn_b) at init time.
    nlayers = attn_w_ref.shape[0]
    for l in range(nlayers):                     # static unroll (nlayers small)
        lv = layer_vec_ref[l]                    # (6, ninp): [attn_b, g1, b1, ffn_b2, g2, b2]
        attn = affine(x, attn_w_ref[l], lv[0:1])
        h = _layernorm(x + attn, lv[1:2], lv[2:3])
        ff = jnp.maximum(affine(h, ffn_w1_ref[l], ffn_b1_ref[l]), 0.0)
        ff = affine(ff, ffn_w2_ref[l], lv[3:4])
        x = _layernorm(h + ff, lv[4:5], lv[5:6])

    # --- decoder: Linear -> LayerNorm -> ReLU -> Linear(padded classes) ---
    dv = dec_vec_ref[...]
    x = jnp.maximum(
        _layernorm(affine(x, dec_w1_ref[...], dv[0:1]), dv[1:2], dv[2:3]), 0.0)
    out_ref[...] = affine(x, dec_w2_ref[...], dec_b2_ref[...])


def _const_index_map(ndim):
    return lambda i: (0,) * ndim


def forward(params, src, *, nclasses):
    kp = params["kernel"]
    B, nfeat = src.shape
    npad_cls = kp["dec_w2"].shape[1]

    # Batch tiling: TB rows per grid step, batch padded up to a multiple of TB.
    TB = min(256, pl.cdiv(B, 8) * 8)
    Bp = pl.cdiv(B, TB) * TB
    if Bp != B:
        src = jnp.pad(src, ((0, Bp - B), (0, 0)))
    grid = (Bp // TB,)

    weights = (
        kp["enc_w1"], kp["enc_w2"], kp["enc_vec1"], kp["enc_vec2"],
        kp["attn_w"], kp["ffn_w1"], kp["ffn_w2"], kp["layer_vec"], kp["ffn_b1"],
        kp["dec_w1"], kp["dec_w2"], kp["dec_vec"], kp["dec_b2"],
    )
    in_specs = [pl.BlockSpec((TB, nfeat), lambda i: (i, 0))] + [
        pl.BlockSpec(w.shape, _const_index_map(w.ndim)) for w in weights
    ]
    out_spec = pl.BlockSpec((TB, npad_cls), lambda i: (i, 0))

    out_padded = pl.pallas_call(
        _fused_forward_kernel,
        out_shape=jax.ShapeDtypeStruct((Bp, npad_cls), jnp.float32),
        grid=grid,
        in_specs=in_specs,
        out_specs=out_spec,
        compiler_params=pltpu.CompilerParams(
            dimension_semantics=("parallel",)),     # shards batch tiles on v7x
    )(src, *weights)
    return out_padded[:B, :nclasses]   # drop batch pad + zero-padded class lanes


# ----------------------------------------------------------------------------
# Parameter construction (PyTorch-shaped then transposed to (in, out))
# ----------------------------------------------------------------------------
def _lin_params(key, fan_in, fan_out):
    kw, kb = jax.random.split(key)
    bound = 1.0 / (fan_in ** 0.5)
    w = jax.random.uniform(kw, (fan_out, fan_in), jnp.float32, -bound, bound)
    b = jax.random.uniform(kb, (fan_out,), jnp.float32, -bound, bound)
    return w.T, b.reshape(1, -1)          # (in, out), (1, out)


def init_params(key, nfeatures, ninp, nhead, nhid, nlayers, nclasses):
    del nhead  # attention over one token is head-count independent
    f32, bf16 = jnp.float32, jnp.bfloat16
    keys = iter(jax.random.split(key, 4 + 4 * nlayers))
    ones = lambda n: jnp.ones((1, n), f32)
    zeros = lambda n: jnp.zeros((1, n), f32)

    ref = {}
    kern = {}

    # --- encoder ---
    enc_w1, enc_b1 = _lin_params(next(keys), nfeatures, 2 * ninp)
    enc_g1, enc_be1 = ones(2 * ninp), zeros(2 * ninp)
    enc_w2, enc_b2 = _lin_params(next(keys), 2 * ninp, ninp)
    enc_g2, enc_be2 = ones(ninp), zeros(ninp)
    ref.update(enc_w1=enc_w1, enc_b1=enc_b1, enc_g1=enc_g1, enc_be1=enc_be1,
               enc_w2=enc_w2, enc_b2=enc_b2, enc_g2=enc_g2, enc_be2=enc_be2)
    kern["enc_w1"] = enc_w1.astype(bf16)
    kern["enc_w2"] = enc_w2.astype(bf16)
    kern["enc_vec1"] = jnp.concatenate([enc_b1, enc_g1, enc_be1], axis=0)   # (3, 2*ninp)
    kern["enc_vec2"] = jnp.concatenate([enc_b2, enc_g2, enc_be2], axis=0)   # (3, ninp)

    # --- transformer layers (keep unfolded f32 copies for the reference) ---
    layers_ref = []
    attn_w, ffn_w1, ffn_w2, layer_vec, ffn_b1s = [], [], [], [], []
    for _ in range(nlayers):
        in_proj_w, in_proj_b = _lin_params(next(keys), ninp, 3 * ninp)  # (ninp, 3*ninp)
        wv = in_proj_w[:, 2 * ninp:]      # V slice, (ninp, ninp)
        bv = in_proj_b[:, 2 * ninp:]      # (1, ninp)
        wo, bo = _lin_params(next(keys), ninp, ninp)
        w1, b1 = _lin_params(next(keys), ninp, nhid)
        w2, b2 = _lin_params(next(keys), nhid, ninp)
        g1, be1 = ones(ninp), zeros(ninp)
        g2, be2 = ones(ninp), zeros(ninp)
        layers_ref.append(dict(wv=wv, bv=bv, wo=wo, bo=bo,
                               w1=w1, b1=b1, w2=w2, b2=b2,
                               g1=g1, be1=be1, g2=g2, be2=be2))
        # fold the two affine maps: (x@wv+bv)@wo+bo == x@(wv@wo) + (bv@wo+bo)
        attn_w.append(wv @ wo)
        layer_vec.append(jnp.concatenate([bv @ wo + bo, g1, be1, b2, g2, be2], axis=0))
        ffn_w1.append(w1)
        ffn_w2.append(w2)
        ffn_b1s.append(b1)

    ref["layers"] = layers_ref
    kern["attn_w"] = jnp.stack(attn_w).astype(bf16)       # (L, ninp, ninp)
    kern["ffn_w1"] = jnp.stack(ffn_w1).astype(bf16)       # (L, ninp, nhid)
    kern["ffn_w2"] = jnp.stack(ffn_w2).astype(bf16)       # (L, nhid, ninp)
    kern["layer_vec"] = jnp.stack(layer_vec)              # (L, 6, ninp) f32
    kern["ffn_b1"] = jnp.stack(ffn_b1s)                   # (L, 1, nhid) f32

    # --- decoder; classifier zero-padded to LANE columns for lane-dense stores ---
    dec_w1, dec_b1 = _lin_params(next(keys), ninp, nhid)
    dec_g1, dec_be1 = ones(nhid), zeros(nhid)
    dec_w2, dec_b2 = _lin_params(next(keys), nhid, nclasses)
    ref.update(dec_w1=dec_w1, dec_b1=dec_b1, dec_g1=dec_g1, dec_be1=dec_be1,
               dec_w2=dec_w2, dec_b2=dec_b2)
    npad = pl.cdiv(nclasses, LANE) * LANE
    kern["dec_w1"] = dec_w1.astype(bf16)
    kern["dec_w2"] = jnp.pad(dec_w2, ((0, 0), (0, npad - nclasses))).astype(bf16)
    kern["dec_vec"] = jnp.concatenate([dec_b1, dec_g1, dec_be1], axis=0)    # (3, nhid)
    kern["dec_b2"] = jnp.pad(dec_b2, ((0, 0), (0, npad - nclasses)))        # (1, npad) f32

    return {"kernel": kern, "ref": ref, "nclasses": nclasses}


# ----------------------------------------------------------------------------
# Pure-JAX reference (original, unfolded f32 module semantics)
# ----------------------------------------------------------------------------
def forward_ref(params, src):
    r = params["ref"]

    def ln(y, g, b):
        mu = jnp.mean(y, -1, keepdims=True)
        var = jnp.mean((y - mu) ** 2, -1, keepdims=True)
        return (y - mu) * jax.lax.rsqrt(var + EPS) * g + b

    x = jnp.maximum(ln(src @ r["enc_w1"] + r["enc_b1"], r["enc_g1"], r["enc_be1"]), 0.0)
    x = jnp.maximum(ln(x @ r["enc_w2"] + r["enc_b2"], r["enc_g2"], r["enc_be2"]), 0.0)
    for l in r["layers"]:
        v = x @ l["wv"] + l["bv"]
        attn = v @ l["wo"] + l["bo"]
        h = ln(x + attn, l["g1"], l["be1"])
        ff = jnp.maximum(h @ l["w1"] + l["b1"], 0.0) @ l["w2"] + l["b2"]
        x = ln(h + ff, l["g2"], l["be2"])
    x = jnp.maximum(ln(x @ r["dec_w1"] + r["dec_b1"], r["dec_g1"], r["dec_be1"]), 0.0)
    out = x @ r["dec_w2"] + r["dec_b2"]
    return out[:, :params["nclasses"]]


if __name__ == "__main__":
    # Small, TPU-layout-friendly shapes consistent with the module:
    # batch multiple of 8 (sublanes), feature dims multiples of 128 (lanes).
    B, NFEATURES, NINP, NHEAD, NHID, NLAYERS, NCLASSES = 16, 256, 128, 4, 256, 3, 2

    key = jax.random.PRNGKey(0)
    kparam, kdata = jax.random.split(key)
    params = init_params(kparam, NFEATURES, NINP, NHEAD, NHID, NLAYERS, NCLASSES)
    src = jax.random.normal(kdata, (B, NFEATURES), jnp.float32)

    out = jax.block_until_ready(forward(params, src, nclasses=NCLASSES))
    ref = forward_ref(params, src)

    assert out.shape == (B, NCLASSES)
    # bf16 MXU operands vs f32 reference -> slightly looser tolerance gate.
    assert jnp.allclose(out, ref, rtol=5e-2, atol=5e-2), (out, ref)

    print("KERNEL_OK")
</pallas_src>

<mosaic_0001>
module attributes {stable_mosaic.version = 11 : i64} {
  func.func @_fused_forward_kernel(%arg0: i32, %arg1: memref<16x256xf32, #tpu.memory_space<vmem>>, %arg2: memref<256x256xbf16, #tpu.memory_space<vmem>>, %arg3: memref<256x128xbf16, #tpu.memory_space<vmem>>, %arg4: memref<3x256xf32, #tpu.memory_space<vmem>>, %arg5: memref<3x128xf32, #tpu.memory_space<vmem>>, %arg6: memref<3x128x128xbf16, #tpu.memory_space<vmem>>, %arg7: memref<3x128x256xbf16, #tpu.memory_space<vmem>>, %arg8: memref<3x256x128xbf16, #tpu.memory_space<vmem>>, %arg9: memref<3x6x128xf32, #tpu.memory_space<vmem>>, %arg10: memref<3x1x256xf32, #tpu.memory_space<vmem>>, %arg11: memref<128x256xbf16, #tpu.memory_space<vmem>>, %arg12: memref<256x128xbf16, #tpu.memory_space<vmem>>, %arg13: memref<3x256xf32, #tpu.memory_space<vmem>>, %arg14: memref<1x128xf32, #tpu.memory_space<vmem>>, %arg15: memref<16x128xf32, #tpu.memory_space<vmem>>) attributes {dimension_semantics = [#tpu.dimension_semantics<parallel>], iteration_bounds = array<i64: 1>, scalar_prefetch = 0 : i64, scratch_operands = 0 : i64, tpu.core_type = #tpu.core_type<tc>, window_params = [{transform_indices = @transform_0, window_bounds = array<i64: 16, 256>}, {pipeline_mode = #tpu.pipeline_mode<synchronous>, transform_indices = @transform_1, window_bounds = array<i64: 256, 256>}, {pipeline_mode = #tpu.pipeline_mode<synchronous>, transform_indices = @transform_2, window_bounds = array<i64: 256, 128>}, {pipeline_mode = #tpu.pipeline_mode<synchronous>, transform_indices = @transform_3, window_bounds = array<i64: 3, 256>}, {pipeline_mode = #tpu.pipeline_mode<synchronous>, transform_indices = @transform_4, window_bounds = array<i64: 3, 128>}, {pipeline_mode = #tpu.pipeline_mode<synchronous>, transform_indices = @transform_5, window_bounds = array<i64: 3, 128, 128>}, {pipeline_mode = #tpu.pipeline_mode<synchronous>, transform_indices = @transform_6, window_bounds = array<i64: 3, 128, 256>}, {pipeline_mode = #tpu.pipeline_mode<synchronous>, transform_indices = @transform_7, window_bounds = array<i64: 3, 256, 128>}, {pipeline_mode = #tpu.pipeline_mode<synchronous>, transform_indices = @transform_8, window_bounds = array<i64: 3, 6, 128>}, {pipeline_mode = #tpu.pipeline_mode<synchronous>, transform_indices = @transform_9, window_bounds = array<i64: 3, 1, 256>}, {pipeline_mode = #tpu.pipeline_mode<synchronous>, transform_indices = @transform_10, window_bounds = array<i64: 128, 256>}, {pipeline_mode = #tpu.pipeline_mode<synchronous>, transform_indices = @transform_11, window_bounds = array<i64: 256, 128>}, {pipeline_mode = #tpu.pipeline_mode<synchronous>, transform_indices = @transform_12, window_bounds = array<i64: 3, 256>}, {pipeline_mode = #tpu.pipeline_mode<synchronous>, transform_indices = @transform_13, window_bounds = array<i64: 1, 128>}, {transform_indices = @transform_14, window_bounds = array<i64: 16, 128>}]} {
    %c0 = arith.constant 0 : index
    %c0_0 = arith.constant 0 : index
    %0 = vector.load %arg1[%c0, %c0_0] : memref<16x256xf32, #tpu.memory_space<vmem>>, vector<16x256xf32>
    %c0_1 = arith.constant 0 : index
    %c0_2 = arith.constant 0 : index
    %1 = vector.load %arg4[%c0_1, %c0_2] : memref<3x256xf32, #tpu.memory_space<vmem>>, vector<3x256xf32>
    %c0_3 = arith.constant 0 : index
    %c0_4 = arith.constant 0 : index
    %2 = vector.load %arg2[%c0_3, %c0_4] : memref<256x256xbf16, #tpu.memory_space<vmem>>, vector<256x256xbf16>
    %3 = vector.extract_strided_slice %1 {offsets = [0, 0], sizes = [1, 256], strides = [1, 1]} : vector<3x256xf32> to vector<1x256xf32>
    %4 = arith.truncf %0 : vector<16x256xf32> to vector<16x256xbf16>
    %cst = arith.constant dense<0.000000e+00> : vector<16x256xf32>
    %5 = tpu.matmul %4, %2, %cst {dimension_numbers = #tpu.dot_dimension_numbers<[1], [0], [0], [1], [0, 0, 1, 1], [], []>} : vector<16x256xbf16>, vector<256x256xbf16>, vector<16x256xf32> -> vector<16x256xf32>
    %6 = vector.broadcast %3 : vector<1x256xf32> to vector<16x256xf32>
    %7 = arith.addf %5, %6 : vector<16x256xf32>
    %8 = vector.extract_strided_slice %1 {offsets = [1, 0], sizes = [1, 256], strides = [1, 1]} : vector<3x256xf32> to vector<1x256xf32>
    %9 = vector.extract_strided_slice %1 {offsets = [2, 0], sizes = [1, 256], strides = [1, 1]} : vector<3x256xf32> to vector<1x256xf32>
    %cst_5 = arith.constant dense<0.000000e+00> : vector<16xf32>
    %10 = vector.multi_reduction <add>, %7, %cst_5 [1] : vector<16x256xf32> to vector<16xf32>
    %11 = vector.shape_cast %10 : vector<16xf32> to vector<16x1xf32>
    %cst_6 = arith.constant 2.560000e+02 : f32
    %12 = vector.broadcast %cst_6 : f32 to vector<16x1xf32>
    %13 = arith.divf %11, %12 : vector<16x1xf32>
    %14 = arith.mulf %7, %7 : vector<16x256xf32>
    %cst_7 = arith.constant dense<0.000000e+00> : vector<16xf32>
    %15 = vector.multi_reduction <add>, %14, %cst_7 [1] : vector<16x256xf32> to vector<16xf32>
    %16 = vector.shape_cast %15 : vector<16xf32> to vector<16x1xf32>
    %cst_8 = arith.constant 2.560000e+02 : f32
    %17 = vector.broadcast %cst_8 : f32 to vector<16x1xf32>
    %18 = arith.divf %16, %17 : vector<16x1xf32>
    %19 = arith.mulf %13, %13 : vector<16x1xf32>
    %20 = arith.subf %18, %19 : vector<16x1xf32>
    %21 = vector.broadcast %13 : vector<16x1xf32> to vector<16x256xf32>
    %22 = arith.subf %7, %21 : vector<16x256xf32>
    %cst_9 = arith.constant 9.99999974E-6 : f32
    %23 = vector.broadcast %cst_9 : f32 to vector<16x1xf32>
    %24 = arith.addf %20, %23 : vector<16x1xf32>
    %25 = math.rsqrt %24 : vector<16x1xf32>
    %26 = vector.broadcast %25 : vector<16x1xf32> to vector<16x256xf32>
    %27 = arith.mulf %22, %26 : vector<16x256xf32>
    %28 = vector.broadcast %8 : vector<1x256xf32> to vector<16x256xf32>
    %29 = arith.mulf %27, %28 : vector<16x256xf32>
    %30 = vector.broadcast %9 : vector<1x256xf32> to vector<16x256xf32>
    %31 = arith.addf %29, %30 : vector<16x256xf32>
    %cst_10 = arith.constant 0.000000e+00 : f32
    %32 = vector.broadcast %cst_10 : f32 to vector<16x256xf32>
    %33 = arith.maximumf %31, %32 : vector<16x256xf32>
    %c0_11 = arith.constant 0 : index
    %c0_12 = arith.constant 0 : index
    %34 = vector.load %arg5[%c0_11, %c0_12] : memref<3x128xf32, #tpu.memory_space<vmem>>, vector<3x128xf32>
    %c0_13 = arith.constant 0 : index
    %c0_14 = arith.constant 0 : index
    %35 = vector.load %arg3[%c0_13, %c0_14] : memref<256x128xbf16, #tpu.memory_space<vmem>>, vector<256x128xbf16>
    %36 = vector.extract_strided_slice %34 {offsets = [0, 0], sizes = [1, 128], strides = [1, 1]} : vector<3x128xf32> to vector<1x128xf32>
    %37 = arith.truncf %33 : vector<16x256xf32> to vector<16x256xbf16>
    %cst_15 = arith.constant dense<0.000000e+00> : vector<16x128xf32>
    %38 = tpu.matmul %37, %35, %cst_15 {dimension_numbers = #tpu.dot_dimension_numbers<[1], [0], [0], [1], [0, 0, 1, 1], [], []>} : vector<16x256xbf16>, vector<256x128xbf16>, vector<16x128xf32> -> vector<16x128xf32>
    %39 = vector.broadcast %36 : vector<1x128xf32> to vector<16x128xf32>
    %40 = arith.addf %38, %39 : vector<16x128xf32>
    %41 = vector.extract_strided_slice %34 {offsets = [1, 0], sizes = [1, 128], strides = [1, 1]} : vector<3x128xf32> to vector<1x128xf32>
    %42 = vector.extract_strided_slice %34 {offsets = [2, 0], sizes = [1, 128], strides = [1, 1]} : vector<3x128xf32> to vector<1x128xf32>
    %cst_16 = arith.constant dense<0.000000e+00> : vector<16xf32>
    %43 = vector.multi_reduction <add>, %40, %cst_16 [1] : vector<16x128xf32> to vector<16xf32>
    %44 = vector.shape_cast %43 : vector<16xf32> to vector<16x1xf32>
    %cst_17 = arith.constant 1.280000e+02 : f32
    %45 = vector.broadcast %cst_17 : f32 to vector<16x1xf32>
    %46 = arith.divf %44, %45 : vector<16x1xf32>
    %47 = arith.mulf %40, %40 : vector<16x128xf32>
    %cst_18 = arith.constant dense<0.000000e+00> : vector<16xf32>
    %48 = vector.multi_reduction <add>, %47, %cst_18 [1] : vector<16x128xf32> to vector<16xf32>
    %49 = vector.shape_cast %48 : vector<16xf32> to vector<16x1xf32>
    %cst_19 = arith.constant 1.280000e+02 : f32
    %50 = vector.broadcast %cst_19 : f32 to vector<16x1xf32>
    %51 = arith.divf %49, %50 : vector<16x1xf32>
    %52 = arith.mulf %46, %46 : vector<16x1xf32>
    %53 = arith.subf %51, %52 : vector<16x1xf32>
    %54 = vector.broadcast %46 : vector<16x1xf32> to vector<16x128xf32>
    %55 = arith.subf %40, %54 : vector<16x128xf32>
    %cst_20 = arith.constant 9.99999974E-6 : f32
    %56 = vector.broadcast %cst_20 : f32 to vector<16x1xf32>
    %57 = arith.addf %53, %56 : vector<16x1xf32>
    %58 = math.rsqrt %57 : vector<16x1xf32>
    %59 = vector.broadcast %58 : vector<16x1xf32> to vector<16x128xf32>
    %60 = arith.mulf %55, %59 : vector<16x128xf32>
    %61 = vector.broadcast %41 : vector<1x128xf32> to vector<16x128xf32>
    %62 = arith.mulf %60, %61 : vector<16x128xf32>
    %63 = vector.broadcast %42 : vector<1x128xf32> to vector<16x128xf32>
    %64 = arith.addf %62, %63 : vector<16x128xf32>
    %cst_21 = arith.constant 0.000000e+00 : f32
    %65 = vector.broadcast %cst_21 : f32 to vector<16x128xf32>
    %66 = arith.maximumf %64, %65 : vector<16x128xf32>
    %c0_22 = arith.constant 0 : index
    %c0_23 = arith.constant 0 : index
    %c0_24 = arith.constant 0 : index
    %67 = vector.load %arg9[%c0_22, %c0_23, %c0_24] : memref<3x6x128xf32, #tpu.memory_space<vmem>>, vector<1x6x128xf32>
    %68 = vector.shape_cast %67 : vector<1x6x128xf32> to vector<6x128xf32>
    %c0_25 = arith.constant 0 : index
    %c0_26 = arith.constant 0 : index
    %c0_27 = arith.constant 0 : index
    %69 = vector.load %arg6[%c0_25, %c0_26, %c0_27] : memref<3x128x128xbf16, #tpu.memory_space<vmem>>, vector<1x128x128xbf16>
    %70 = vector.shape_cast %69 : vector<1x128x128xbf16> to vector<128x128xbf16>
    %71 = vector.extract_strided_slice %68 {offsets = [0, 0], sizes = [1, 128], strides = [1, 1]} : vector<6x128xf32> to vector<1x128xf32>
    %72 = arith.truncf %66 : vector<16x128xf32> to vector<16x128xbf16>
    %cst_28 = arith.constant dense<0.000000e+00> : vector<16x128xf32>
    %73 = tpu.matmul %72, %70, %cst_28 {dimension_numbers = #tpu.dot_dimension_numbers<[1], [0], [0], [1], [0, 0, 1, 1], [], []>} : vector<16x128xbf16>, vector<128x128xbf16>, vector<16x128xf32> -> vector<16x128xf32>
    %74 = vector.broadcast %71 : vector<1x128xf32> to vector<16x128xf32>
    %75 = arith.addf %73, %74 : vector<16x128xf32>
    %76 = arith.addf %66, %75 : vector<16x128xf32>
    %77 = vector.extract_strided_slice %68 {offsets = [1, 0], sizes = [1, 128], strides = [1, 1]} : vector<6x128xf32> to vector<1x128xf32>
    %78 = vector.extract_strided_slice %68 {offsets = [2, 0], sizes = [1, 128], strides = [1, 1]} : vector<6x128xf32> to vector<1x128xf32>
    %cst_29 = arith.constant dense<0.000000e+00> : vector<16xf32>
    %79 = vector.multi_reduction <add>, %76, %cst_29 [1] : vector<16x128xf32> to vector<16xf32>
    %80 = vector.shape_cast %79 : vector<16xf32> to vector<16x1xf32>
    %cst_30 = arith.constant 1.280000e+02 : f32
    %81 = vector.broadcast %cst_30 : f32 to vector<16x1xf32>
    %82 = arith.divf %80, %81 : vector<16x1xf32>
    %83 = arith.mulf %76, %76 : vector<16x128xf32>
    %cst_31 = arith.constant dense<0.000000e+00> : vector<16xf32>
    %84 = vector.multi_reduction <add>, %83, %cst_31 [1] : vector<16x128xf32> to vector<16xf32>
    %85 = vector.shape_cast %84 : vector<16xf32> to vector<16x1xf32>
    %cst_32 = arith.constant 1.280000e+02 : f32
    %86 = vector.broadcast %cst_32 : f32 to vector<16x1xf32>
    %87 = arith.divf %85, %86 : vector<16x1xf32>
    %88 = arith.mulf %82, %82 : vector<16x1xf32>
    %89 = arith.subf %87, %88 : vector<16x1xf32>
    %90 = vector.broadcast %82 : vector<16x1xf32> to vector<16x128xf32>
    %91 = arith.subf %76, %90 : vector<16x128xf32>
    %cst_33 = arith.constant 9.99999974E-6 : f32
    %92 = vector.broadcast %cst_33 : f32 to vector<16x1xf32>
    %93 = arith.addf %89, %92 : vector<16x1xf32>
    %94 = math.rsqrt %93 : vector<16x1xf32>
    %95 = vector.broadcast %94 : vector<16x1xf32> to vector<16x128xf32>
    %96 = arith.mulf %91, %95 : vector<16x128xf32>
    %97 = vector.broadcast %77 : vector<1x128xf32> to vector<16x128xf32>
    %98 = arith.mulf %96, %97 : vector<16x128xf32>
    %99 = vector.broadcast %78 : vector<1x128xf32> to vector<16x128xf32>
    %100 = arith.addf %98, %99 : vector<16x128xf32>
    %c0_34 = arith.constant 0 : index
    %c0_35 = arith.constant 0 : index
    %c0_36 = arith.constant 0 : index
    %101 = vector.load %arg7[%c0_34, %c0_35, %c0_36] : memref<3x128x256xbf16, #tpu.memory_space<vmem>>, vector<1x128x256xbf16>
    %102 = vector.shape_cast %101 : vector<1x128x256xbf16> to vector<128x256xbf16>
    %c0_37 = arith.constant 0 : index
    %c0_38 = arith.constant 0 : index
    %c0_39 = arith.constant 0 : index
    %103 = vector.load %arg10[%c0_37, %c0_38, %c0_39] : memref<3x1x256xf32, #tpu.memory_space<vmem>>, vector<1x1x256xf32>
    %104 = vector.shape_cast %103 : vector<1x1x256xf32> to vector<1x256xf32>
    %105 = arith.truncf %100 : vector<16x128xf32> to vector<16x128xbf16>
    %cst_40 = arith.constant dense<0.000000e+00> : vector<16x256xf32>
    %106 = tpu.matmul %105, %102, %cst_40 {dimension_numbers = #tpu.dot_dimension_numbers<[1], [0], [0], [1], [0, 0, 1, 1], [], []>} : vector<16x128xbf16>, vector<128x256xbf16>, vector<16x256xf32> -> vector<16x256xf32>
    %107 = vector.broadcast %104 : vector<1x256xf32> to vector<16x256xf32>
    %108 = arith.addf %106, %107 : vector<16x256xf32>
    %cst_41 = arith.constant 0.000000e+00 : f32
    %109 = vector.broadcast %cst_41 : f32 to vector<16x256xf32>
    %110 = arith.maximumf %108, %109 : vector<16x256xf32>
    %c0_42 = arith.constant 0 : index
    %c0_43 = arith.constant 0 : index
    %c0_44 = arith.constant 0 : index
    %111 = vector.load %arg8[%c0_42, %c0_43, %c0_44] : memref<3x256x128xbf16, #tpu.memory_space<vmem>>, vector<1x256x128xbf16>
    %112 = vector.shape_cast %111 : vector<1x256x128xbf16> to vector<256x128xbf16>
    %113 = vector.extract_strided_slice %68 {offsets = [3, 0], sizes = [1, 128], strides = [1, 1]} : vector<6x128xf32> to vector<1x128xf32>
    %114 = arith.truncf %110 : vector<16x256xf32> to vector<16x256xbf16>
    %cst_45 = arith.constant dense<0.000000e+00> : vector<16x128xf32>
    %115 = tpu.matmul %114, %112, %cst_45 {dimension_numbers = #tpu.dot_dimension_numbers<[1], [0], [0], [1], [0, 0, 1, 1], [], []>} : vector<16x256xbf16>, vector<256x128xbf16>, vector<16x128xf32> -> vector<16x128xf32>
    %116 = vector.broadcast %113 : vector<1x128xf32> to vector<16x128xf32>
    %117 = arith.addf %115, %116 : vector<16x128xf32>
    %118 = arith.addf %100, %117 : vector<16x128xf32>
    %119 = vector.extract_strided_slice %68 {offsets = [4, 0], sizes = [1, 128], strides = [1, 1]} : vector<6x128xf32> to vector<1x128xf32>
    %120 = vector.extract_strided_slice %68 {offsets = [5, 0], sizes = [1, 128], strides = [1, 1]} : vector<6x128xf32> to vector<1x128xf32>
    %cst_46 = arith.constant dense<0.000000e+00> : vector<16xf32>
    %121 = vector.multi_reduction <add>, %118, %cst_46 [1] : vector<16x128xf32> to vector<16xf32>
    %122 = vector.shape_cast %121 : vector<16xf32> to vector<16x1xf32>
    %cst_47 = arith.constant 1.280000e+02 : f32
    %123 = vector.broadcast %cst_47 : f32 to vector<16x1xf32>
    %124 = arith.divf %122, %123 : vector<16x1xf32>
    %125 = arith.mulf %118, %118 : vector<16x128xf32>
    %cst_48 = arith.constant dense<0.000000e+00> : vector<16xf32>
    %126 = vector.multi_reduction <add>, %125, %cst_48 [1] : vector<16x128xf32> to vector<16xf32>
    %127 = vector.shape_cast %126 : vector<16xf32> to vector<16x1xf32>
    %cst_49 = arith.constant 1.280000e+02 : f32
    %128 = vector.broadcast %cst_49 : f32 to vector<16x1xf32>
    %129 = arith.divf %127, %128 : vector<16x1xf32>
    %130 = arith.mulf %124, %124 : vector<16x1xf32>
    %131 = arith.subf %129, %130 : vector<16x1xf32>
    %132 = vector.broadcast %124 : vector<16x1xf32> to vector<16x128xf32>
    %133 = arith.subf %118, %132 : vector<16x128xf32>
    %cst_50 = arith.constant 9.99999974E-6 : f32
    %134 = vector.broadcast %cst_50 : f32 to vector<16x1xf32>
    %135 = arith.addf %131, %134 : vector<16x1xf32>
    %136 = math.rsqrt %135 : vector<16x1xf32>
    %137 = vector.broadcast %136 : vector<16x1xf32> to vector<16x128xf32>
    %138 = arith.mulf %133, %137 : vector<16x128xf32>
    %139 = vector.broadcast %119 : vector<1x128xf32> to vector<16x128xf32>
    %140 = arith.mulf %138, %139 : vector<16x128xf32>
    %141 = vector.broadcast %120 : vector<1x128xf32> to vector<16x128xf32>
    %142 = arith.addf %140, %141 : vector<16x128xf32>
    %c1 = arith.constant 1 : index
    %c0_51 = arith.constant 0 : index
    %c0_52 = arith.constant 0 : index
    %143 = vector.load %arg9[%c1, %c0_51, %c0_52] : memref<3x6x128xf32, #tpu.memory_space<vmem>>, vector<1x6x128xf32>
    %144 = vector.shape_cast %143 : vector<1x6x128xf32> to vector<6x128xf32>
    %c1_53 = arith.constant 1 : index
    %c0_54 = arith.constant 0 : index
    %c0_55 = arith.constant 0 : index
    %145 = vector.load %arg6[%c1_53, %c0_54, %c0_55] : memref<3x128x128xbf16, #tpu.memory_space<vmem>>, vector<1x128x128xbf16>
    %146 = vector.shape_cast %145 : vector<1x128x128xbf16> to vector<128x128xbf16>
    %147 = vector.extract_strided_slice %144 {offsets = [0, 0], sizes = [1, 128], strides = [1, 1]} : vector<6x128xf32> to vector<1x128xf32>
    %148 = arith.truncf %142 : vector<16x128xf32> to vector<16x128xbf16>
    %cst_56 = arith.constant dense<0.000000e+00> : vector<16x128xf32>
    %149 = tpu.matmul %148, %146, %cst_56 {dimension_numbers = #tpu.dot_dimension_numbers<[1], [0], [0], [1], [0, 0, 1, 1], [], []>} : vector<16x128xbf16>, vector<128x128xbf16>, vector<16x128xf32> -> vector<16x128xf32>
    %150 = vector.broadcast %147 : vector<1x128xf32> to vector<16x128xf32>
    %151 = arith.addf %149, %150 : vector<16x128xf32>
    %152 = arith.addf %142, %151 : vector<16x128xf32>
    %153 = vector.extract_strided_slice %144 {offsets = [1, 0], sizes = [1, 128], strides = [1, 1]} : vector<6x128xf32> to vector<1x128xf32>
    %154 = vector.extract_strided_slice %144 {offsets = [2, 0], sizes = [1, 128], strides = [1, 1]} : vector<6x128xf32> to vector<1x128xf32>
    %cst_57 = arith.constant dense<0.000000e+00> : vector<16xf32>
    %155 = vector.multi_reduction <add>, %152, %cst_57 [1] : vector<16x128xf32> to vector<16xf32>
    %156 = vector.shape_cast %155 : vector<16xf32> to vector<16x1xf32>
    %cst_58 = arith.constant 1.280000e+02 : f32
    %157 = vector.broadcast %cst_58 : f32 to vector<16x1xf32>
    %158 = arith.divf %156, %157 : vector<16x1xf32>
    %159 = arith.mulf %152, %152 : vector<16x128xf32>
    %cst_59 = arith.constant dense<0.000000e+00> : vector<16xf32>
    %160 = vector.multi_reduction <add>, %159, %cst_59 [1] : vector<16x128xf32> to vector<16xf32>
    %161 = vector.shape_cast %160 : vector<16xf32> to vector<16x1xf32>
    %cst_60 = arith.constant 1.280000e+02 : f32
    %162 = vector.broadcast %cst_60 : f32 to vector<16x1xf32>
    %163 = arith.divf %161, %162 : vector<16x1xf32>
    %164 = arith.mulf %158, %158 : vector<16x1xf32>
    %165 = arith.subf %163, %164 : vector<16x1xf32>
    %166 = vector.broadcast %158 : vector<16x1xf32> to vector<16x128xf32>
    %167 = arith.subf %152, %166 : vector<16x128xf32>
    %cst_61 = arith.constant 9.99999974E-6 : f32
    %168 = vector.broadcast %cst_61 : f32 to vector<16x1xf32>
    %169 = arith.addf %165, %168 : vector<16x1xf32>
    %170 = math.rsqrt %169 : vector<16x1xf32>
    %171 = vector.broadcast %170 : vector<16x1xf32> to vector<16x128xf32>
    %172 = arith.mulf %167, %171 : vector<16x128xf32>
    %173 = vector.broadcast %153 : vector<1x128xf32> to vector<16x128xf32>
    %174 = arith.mulf %172, %173 : vector<16x128xf32>
    %175 = vector.broadcast %154 : vector<1x128xf32> to vector<16x128xf32>
    %176 = arith.addf %174, %175 : vector<16x128xf32>
    %c1_62 = arith.constant 1 : index
    %c0_63 = arith.constant 0 : index
    %c0_64 = arith.constant 0 : index
    %177 = vector.load %arg7[%c1_62, %c0_63, %c0_64] : memref<3x128x256xbf16, #tpu.memory_space<vmem>>, vector<1x128x256xbf16>
    %178 = vector.shape_cast %177 : vector<1x128x256xbf16> to vector<128x256xbf16>
    %c1_65 = arith.constant 1 : index
    %c0_66 = arith.constant 0 : index
    %c0_67 = arith.constant 0 : index
    %179 = vector.load %arg10[%c1_65, %c0_66, %c0_67] : memref<3x1x256xf32, #tpu.memory_space<vmem>>, vector<1x1x256xf32>
    %180 = vector.shape_cast %179 : vector<1x1x256xf32> to vector<1x256xf32>
    %181 = arith.truncf %176 : vector<16x128xf32> to vector<16x128xbf16>
    %cst_68 = arith.constant dense<0.000000e+00> : vector<16x256xf32>
    %182 = tpu.matmul %181, %178, %cst_68 {dimension_numbers = #tpu.dot_dimension_numbers<[1], [0], [0], [1], [0, 0, 1, 1], [], []>} : vector<16x128xbf16>, vector<128x256xbf16>, vector<16x256xf32> -> vector<16x256xf32>
    %183 = vector.broadcast %180 : vector<1x256xf32> to vector<16x256xf32>
    %184 = arith.addf %182, %183 : vector<16x256xf32>
    %cst_69 = arith.constant 0.000000e+00 : f32
    %185 = vector.broadcast %cst_69 : f32 to vector<16x256xf32>
    %186 = arith.maximumf %184, %185 : vector<16x256xf32>
    %c1_70 = arith.constant 1 : index
    %c0_71 = arith.constant 0 : index
    %c0_72 = arith.constant 0 : index
    %187 = vector.load %arg8[%c1_70, %c0_71, %c0_72] : memref<3x256x128xbf16, #tpu.memory_space<vmem>>, vector<1x256x128xbf16>
    %188 = vector.shape_cast %187 : vector<1x256x128xbf16> to vector<256x128xbf16>
    %189 = vector.extract_strided_slice %144 {offsets = [3, 0], sizes = [1, 128], strides = [1, 1]} : vector<6x128xf32> to vector<1x128xf32>
    %190 = arith.truncf %186 : vector<16x256xf32> to vector<16x256xbf16>
    %cst_73 = arith.constant dense<0.000000e+00> : vector<16x128xf32>
    %191 = tpu.matmul %190, %188, %cst_73 {dimension_numbers = #tpu.dot_dimension_numbers<[1], [0], [0], [1], [0, 0, 1, 1], [], []>} : vector<16x256xbf16>, vector<256x128xbf16>, vector<16x128xf32> -> vector<16x128xf32>
    %192 = vector.broadcast %189 : vector<1x128xf32> to vector<16x128xf32>
    %193 = arith.addf %191, %192 : vector<16x128xf32>
    %194 = arith.addf %176, %193 : vector<16x128xf32>
    %195 = vector.extract_strided_slice %144 {offsets = [4, 0], sizes = [1, 128], strides = [1, 1]} : vector<6x128xf32> to vector<1x128xf32>
    %196 = vector.extract_strided_slice %144 {offsets = [5, 0], sizes = [1, 128], strides = [1, 1]} : vector<6x128xf32> to vector<1x128xf32>
    %cst_74 = arith.constant dense<0.000000e+00> : vector<16xf32>
    %197 = vector.multi_reduction <add>, %194, %cst_74 [1] : vector<16x128xf32> to vector<16xf32>
    %198 = vector.shape_cast %197 : vector<16xf32> to vector<16x1xf32>
    %cst_75 = arith.constant 1.280000e+02 : f32
    %199 = vector.broadcast %cst_75 : f32 to vector<16x1xf32>
    %200 = arith.divf %198, %199 : vector<16x1xf32>
    %201 = arith.mulf %194, %194 : vector<16x128xf32>
    %cst_76 = arith.constant dense<0.000000e+00> : vector<16xf32>
    %202 = vector.multi_reduction <add>, %201, %cst_76 [1] : vector<16x128xf32> to vector<16xf32>
    %203 = vector.shape_cast %202 : vector<16xf32> to vector<16x1xf32>
    %cst_77 = arith.constant 1.280000e+02 : f32
    %204 = vector.broadcast %cst_77 : f32 to vector<16x1xf32>
    %205 = arith.divf %203, %204 : vector<16x1xf32>
    %206 = arith.mulf %200, %200 : vector<16x1xf32>
    %207 = arith.subf %205, %206 : vector<16x1xf32>
    %208 = vector.broadcast %200 : vector<16x1xf32> to vector<16x128xf32>
    %209 = arith.subf %194, %208 : vector<16x128xf32>
    %cst_78 = arith.constant 9.99999974E-6 : f32
    %210 = vector.broadcast %cst_78 : f32 to vector<16x1xf32>
    %211 = arith.addf %207, %210 : vector<16x1xf32>
    %212 = math.rsqrt %211 : vector<16x1xf32>
    %213 = vector.broadcast %212 : vector<16x1xf32> to vector<16x128xf32>
    %214 = arith.mulf %209, %213 : vector<16x128xf32>
    %215 = vector.broadcast %195 : vector<1x128xf32> to vector<16x128xf32>
    %216 = arith.mulf %214, %215 : vector<16x128xf32>
    %217 = vector.broadcast %196 : vector<1x128xf32> to vector<16x128xf32>
    %218 = arith.addf %216, %217 : vector<16x128xf32>
    %c2 = arith.constant 2 : index
    %c0_79 = arith.constant 0 : index
    %c0_80 = arith.constant 0 : index
    %219 = vector.load %arg9[%c2, %c0_79, %c0_80] : memref<3x6x128xf32, #tpu.memory_space<vmem>>, vector<1x6x128xf32>
    %220 = vector.shape_cast %219 : vector<1x6x128xf32> to vector<6x128xf32>
    %c2_81 = arith.constant 2 : index
    %c0_82 = arith.constant 0 : index
    %c0_83 = arith.constant 0 : index
    %221 = vector.load %arg6[%c2_81, %c0_82, %c0_83] : memref<3x128x128xbf16, #tpu.memory_space<vmem>>, vector<1x128x128xbf16>
    %222 = vector.shape_cast %221 : vector<1x128x128xbf16> to vector<128x128xbf16>
    %223 = vector.extract_strided_slice %220 {offsets = [0, 0], sizes = [1, 128], strides = [1, 1]} : vector<6x128xf32> to vector<1x128xf32>
    %224 = arith.truncf %218 : vector<16x128xf32> to vector<16x128xbf16>
    %cst_84 = arith.constant dense<0.000000e+00> : vector<16x128xf32>
    %225 = tpu.matmul %224, %222, %cst_84 {dimension_numbers = #tpu.dot_dimension_numbers<[1], [0], [0], [1], [0, 0, 1, 1], [], []>} : vector<16x128xbf16>, vector<128x128xbf16>, vector<16x128xf32> -> vector<16x128xf32>
    %226 = vector.broadcast %223 : vector<1x128xf32> to vector<16x128xf32>
    %227 = arith.addf %225, %226 : vector<16x128xf32>
    %228 = arith.addf %218, %227 : vector<16x128xf32>
    %229 = vector.extract_strided_slice %220 {offsets = [1, 0], sizes = [1, 128], strides = [1, 1]} : vector<6x128xf32> to vector<1x128xf32>
    %230 = vector.extract_strided_slice %220 {offsets = [2, 0], sizes = [1, 128], strides = [1, 1]} : vector<6x128xf32> to vector<1x128xf32>
    %cst_85 = arith.constant dense<0.000000e+00> : vector<16xf32>
    %231 = vector.multi_reduction <add>, %228, %cst_85 [1] : vector<16x128xf32> to vector<16xf32>
    %232 = vector.shape_cast %231 : vector<16xf32> to vector<16x1xf32>
    %cst_86 = arith.constant 1.280000e+02 : f32
    %233 = vector.broadcast %cst_86 : f32 to vector<16x1xf32>
    %234 = arith.divf %232, %233 : vector<16x1xf32>
    %235 = arith.mulf %228, %228 : vector<16x128xf32>
    %cst_87 = arith.constant dense<0.000000e+00> : vector<16xf32>
    %236 = vector.multi_reduction <add>, %235, %cst_87 [1] : vector<16x128xf32> to vector<16xf32>
    %237 = vector.shape_cast %236 : vector<16xf32> to vector<16x1xf32>
    %cst_88 = arith.constant 1.280000e+02 : f32
    %238 = vector.broadcast %cst_88 : f32 to vector<16x1xf32>
    %239 = arith.divf %237, %238 : vector<16x1xf32>
    %240 = arith.mulf %234, %234 : vector<16x1xf32>
    %241 = arith.subf %239, %240 : vector<16x1xf32>
    %242 = vector.broadcast %234 : vector<16x1xf32> to vector<16x128xf32>
    %243 = arith.subf %228, %242 : vector<16x128xf32>
    %cst_89 = arith.constant 9.99999974E-6 : f32
    %244 = vector.broadcast %cst_89 : f32 to vector<16x1xf32>
    %245 = arith.addf %241, %244 : vector<16x1xf32>
    %246 = math.rsqrt %245 : vector<16x1xf32>
    %247 = vector.broadcast %246 : vector<16x1xf32> to vector<16x128xf32>
    %248 = arith.mulf %243, %247 : vector<16x128xf32>
    %249 = vector.broadcast %229 : vector<1x128xf32> to vector<16x128xf32>
    %250 = arith.mulf %248, %249 : vector<16x128xf32>
    %251 = vector.broadcast %230 : vector<1x128xf32> to vector<16x128xf32>
    %252 = arith.addf %250, %251 : vector<16x128xf32>
    %c2_90 = arith.constant 2 : index
    %c0_91 = arith.constant 0 : index
    %c0_92 = arith.constant 0 : index
    %253 = vector.load %arg7[%c2_90, %c0_91, %c0_92] : memref<3x128x256xbf16, #tpu.memory_space<vmem>>, vector<1x128x256xbf16>
    %254 = vector.shape_cast %253 : vector<1x128x256xbf16> to vector<128x256xbf16>
    %c2_93 = arith.constant 2 : index
    %c0_94 = arith.constant 0 : index
    %c0_95 = arith.constant 0 : index
    %255 = vector.load %arg10[%c2_93, %c0_94, %c0_95] : memref<3x1x256xf32, #tpu.memory_space<vmem>>, vector<1x1x256xf32>
    %256 = vector.shape_cast %255 : vector<1x1x256xf32> to vector<1x256xf32>
    %257 = arith.truncf %252 : vector<16x128xf32> to vector<16x128xbf16>
    %cst_96 = arith.constant dense<0.000000e+00> : vector<16x256xf32>
    %258 = tpu.matmul %257, %254, %cst_96 {dimension_numbers = #tpu.dot_dimension_numbers<[1], [0], [0], [1], [0, 0, 1, 1], [], []>} : vector<16x128xbf16>, vector<128x256xbf16>, vector<16x256xf32> -> vector<16x256xf32>
    %259 = vector.broadcast %256 : vector<1x256xf32> to vector<16x256xf32>
    %260 = arith.addf %258, %259 : vector<16x256xf32>
    %cst_97 = arith.constant 0.000000e+00 : f32
    %261 = vector.broadcast %cst_97 : f32 to vector<16x256xf32>
    %262 = arith.maximumf %260, %261 : vector<16x256xf32>
    %c2_98 = arith.constant 2 : index
    %c0_99 = arith.constant 0 : index
    %c0_100 = arith.constant 0 : index
    %263 = vector.load %arg8[%c2_98, %c0_99, %c0_100] : memref<3x256x128xbf16, #tpu.memory_space<vmem>>, vector<1x256x128xbf16>
    %264 = vector.shape_cast %263 : vector<1x256x128xbf16> to vector<256x128xbf16>
    %265 = vector.extract_strided_slice %220 {offsets = [3, 0], sizes = [1, 128], strides = [1, 1]} : vector<6x128xf32> to vector<1x128xf32>
    %266 = arith.truncf %262 : vector<16x256xf32> to vector<16x256xbf16>
    %cst_101 = arith.constant dense<0.000000e+00> : vector<16x128xf32>
    %267 = tpu.matmul %266, %264, %cst_101 {dimension_numbers = #tpu.dot_dimension_numbers<[1], [0], [0], [1], [0, 0, 1, 1], [], []>} : vector<16x256xbf16>, vector<256x128xbf16>, vector<16x128xf32> -> vector<16x128xf32>
    %268 = vector.broadcast %265 : vector<1x128xf32> to vector<16x128xf32>
    %269 = arith.addf %267, %268 : vector<16x128xf32>
    %270 = arith.addf %252, %269 : vector<16x128xf32>
    %271 = vector.extract_strided_slice %220 {offsets = [4, 0], sizes = [1, 128], strides = [1, 1]} : vector<6x128xf32> to vector<1x128xf32>
    %272 = vector.extract_strided_slice %220 {offsets = [5, 0], sizes = [1, 128], strides = [1, 1]} : vector<6x128xf32> to vector<1x128xf32>
    %cst_102 = arith.constant dense<0.000000e+00> : vector<16xf32>
    %273 = vector.multi_reduction <add>, %270, %cst_102 [1] : vector<16x128xf32> to vector<16xf32>
    %274 = vector.shape_cast %273 : vector<16xf32> to vector<16x1xf32>
    %cst_103 = arith.constant 1.280000e+02 : f32
    %275 = vector.broadcast %cst_103 : f32 to vector<16x1xf32>
    %276 = arith.divf %274, %275 : vector<16x1xf32>
    %277 = arith.mulf %270, %270 : vector<16x128xf32>
    %cst_104 = arith.constant dense<0.000000e+00> : vector<16xf32>
    %278 = vector.multi_reduction <add>, %277, %cst_104 [1] : vector<16x128xf32> to vector<16xf32>
    %279 = vector.shape_cast %278 : vector<16xf32> to vector<16x1xf32>
    %cst_105 = arith.constant 1.280000e+02 : f32
    %280 = vector.broadcast %cst_105 : f32 to vector<16x1xf32>
    %281 = arith.divf %279, %280 : vector<16x1xf32>
    %282 = arith.mulf %276, %276 : vector<16x1xf32>
    %283 = arith.subf %281, %282 : vector<16x1xf32>
    %284 = vector.broadcast %276 : vector<16x1xf32> to vector<16x128xf32>
    %285 = arith.subf %270, %284 : vector<16x128xf32>
    %cst_106 = arith.constant 9.99999974E-6 : f32
    %286 = vector.broadcast %cst_106 : f32 to vector<16x1xf32>
    %287 = arith.addf %283, %286 : vector<16x1xf32>
    %288 = math.rsqrt %287 : vector<16x1xf32>
    %289 = vector.broadcast %288 : vector<16x1xf32> to vector<16x128xf32>
    %290 = arith.mulf %285, %289 : vector<16x128xf32>
    %291 = vector.broadcast %271 : vector<1x128xf32> to vector<16x128xf32>
    %292 = arith.mulf %290, %291 : vector<16x128xf32>
    %293 = vector.broadcast %272 : vector<1x128xf32> to vector<16x128xf32>
    %294 = arith.addf %292, %293 : vector<16x128xf32>
    %c0_107 = arith.constant 0 : index
    %c0_108 = arith.constant 0 : index
    %295 = vector.load %arg13[%c0_107, %c0_108] : memref<3x256xf32, #tpu.memory_space<vmem>>, vector<3x256xf32>
    %c0_109 = arith.constant 0 : index
    %c0_110 = arith.constant 0 : index
    %296 = vector.load %arg11[%c0_109, %c0_110] : memref<128x256xbf16, #tpu.memory_space<vmem>>, vector<128x256xbf16>
    %297 = vector.extract_strided_slice %295 {offsets = [0, 0], sizes = [1, 256], strides = [1, 1]} : vector<3x256xf32> to vector<1x256xf32>
    %298 = arith.truncf %294 : vector<16x128xf32> to vector<16x128xbf16>
    %cst_111 = arith.constant dense<0.000000e+00> : vector<16x256xf32>
    %299 = tpu.matmul %298, %296, %cst_111 {dimension_numbers = #tpu.dot_dimension_numbers<[1], [0], [0], [1], [0, 0, 1, 1], [], []>} : vector<16x128xbf16>, vector<128x256xbf16>, vector<16x256xf32> -> vector<16x256xf32>
    %300 = vector.broadcast %297 : vector<1x256xf32> to vector<16x256xf32>
    %301 = arith.addf %299, %300 : vector<16x256xf32>
    %302 = vector.extract_strided_slice %295 {offsets = [1, 0], sizes = [1, 256], strides = [1, 1]} : vector<3x256xf32> to vector<1x256xf32>
    %303 = vector.extract_strided_slice %295 {offsets = [2, 0], sizes = [1, 256], strides = [1, 1]} : vector<3x256xf32> to vector<1x256xf32>
    %cst_112 = arith.constant dense<0.000000e+00> : vector<16xf32>
    %304 = vector.multi_reduction <add>, %301, %cst_112 [1] : vector<16x256xf32> to vector<16xf32>
    %305 = vector.shape_cast %304 : vector<16xf32> to vector<16x1xf32>
    %cst_113 = arith.constant 2.560000e+02 : f32
    %306 = vector.broadcast %cst_113 : f32 to vector<16x1xf32>
    %307 = arith.divf %305, %306 : vector<16x1xf32>
    %308 = arith.mulf %301, %301 : vector<16x256xf32>
    %cst_114 = arith.constant dense<0.000000e+00> : vector<16xf32>
    %309 = vector.multi_reduction <add>, %308, %cst_114 [1] : vector<16x256xf32> to vector<16xf32>
    %310 = vector.shape_cast %309 : vector<16xf32> to vector<16x1xf32>
    %cst_115 = arith.constant 2.560000e+02 : f32
    %311 = vector.broadcast %cst_115 : f32 to vector<16x1xf32>
    %312 = arith.divf %310, %311 : vector<16x1xf32>
    %313 = arith.mulf %307, %307 : vector<16x1xf32>
    %314 = arith.subf %312, %313 : vector<16x1xf32>
    %315 = vector.broadcast %307 : vector<16x1xf32> to vector<16x256xf32>
    %316 = arith.subf %301, %315 : vector<16x256xf32>
    %cst_116 = arith.constant 9.99999974E-6 : f32
    %317 = vector.broadcast %cst_116 : f32 to vector<16x1xf32>
    %318 = arith.addf %314, %317 : vector<16x1xf32>
    %319 = math.rsqrt %318 : vector<16x1xf32>
    %320 = vector.broadcast %319 : vector<16x1xf32> to vector<16x256xf32>
    %321 = arith.mulf %316, %320 : vector<16x256xf32>
    %322 = vector.broadcast %302 : vector<1x256xf32> to vector<16x256xf32>
    %323 = arith.mulf %321, %322 : vector<16x256xf32>
    %324 = vector.broadcast %303 : vector<1x256xf32> to vector<16x256xf32>
    %325 = arith.addf %323, %324 : vector<16x256xf32>
    %cst_117 = arith.constant 0.000000e+00 : f32
    %326 = vector.broadcast %cst_117 : f32 to vector<16x256xf32>
    %327 = arith.maximumf %325, %326 : vector<16x256xf32>
    %c0_118 = arith.constant 0 : index
    %c0_119 = arith.constant 0 : index
    %328 = vector.load %arg12[%c0_118, %c0_119] : memref<256x128xbf16, #tpu.memory_space<vmem>>, vector<256x128xbf16>
    %c0_120 = arith.constant 0 : index
    %c0_121 = arith.constant 0 : index
    %329 = vector.load %arg14[%c0_120, %c0_121] : memref<1x128xf32, #tpu.memory_space<vmem>>, vector<1x128xf32>
    %330 = arith.truncf %327 : vector<16x256xf32> to vector<16x256xbf16>
    %cst_122 = arith.constant dense<0.000000e+00> : vector<16x128xf32>
    %331 = tpu.matmul %330, %328, %cst_122 {dimension_numbers = #tpu.dot_dimension_numbers<[1], [0], [0], [1], [0, 0, 1, 1], [], []>} : vector<16x256xbf16>, vector<256x128xbf16>, vector<16x128xf32> -> vector<16x128xf32>
    %332 = vector.broadcast %329 : vector<1x128xf32> to vector<16x128xf32>
    %333 = arith.addf %331, %332 : vector<16x128xf32>
    %c0_123 = arith.constant 0 : index
    %c0_124 = arith.constant 0 : index
    %334 = vector.load %arg15[%c0_123, %c0_124] : memref<16x128xf32, #tpu.memory_space<vmem>>, vector<16x128xf32>
    tpu.vector_store %arg15[%c0_123, %c0_124], %333 {strides = array<i32>} : memref<16x128xf32, #tpu.memory_space<vmem>>, vector<16x128xf32>,
    return
  }
  func.func @transform_0(%arg0: i32) -> (i32, i32) {
    %c0_i32 = arith.constant 0 : i32
    %c0_i32_0 = arith.constant 0 : i32
    return %arg0, %c0_i32 : i32, i32
  }
  func.func @transform_1(%arg0: i32) -> (i32, i32) {
    %c0_i32 = arith.constant 0 : i32
    %c0_i32_0 = arith.constant 0 : i32
    %c0_i32_1 = arith.constant 0 : i32
    return %c0_i32, %c0_i32_0 : i32, i32
  }
  func.func @transform_2(%arg0: i32) -> (i32, i32) {
    %c0_i32 = arith.constant 0 : i32
    %c0_i32_0 = arith.constant 0 : i32
    %c0_i32_1 = arith.constant 0 : i32
    return %c0_i32, %c0_i32_0 : i32, i32
  }
  func.func @transform_3(%arg0: i32) -> (i32, i32) {
    %c0_i32 = arith.constant 0 : i32
    %c0_i32_0 = arith.constant 0 : i32
    %c0_i32_1 = arith.constant 0 : i32
    return %c0_i32, %c0_i32_0 : i32, i32
  }
  func.func @transform_4(%arg0: i32) -> (i32, i32) {
    %c0_i32 = arith.constant 0 : i32
    %c0_i32_0 = arith.constant 0 : i32
    %c0_i32_1 = arith.constant 0 : i32
    return %c0_i32, %c0_i32_0 : i32, i32
  }
  func.func @transform_5(%arg0: i32) -> (i32, i32, i32) {
    %c0_i32 = arith.constant 0 : i32
    %c0_i32_0 = arith.constant 0 : i32
    %c0_i32_1 = arith.constant 0 : i32
    %c0_i32_2 = arith.constant 0 : i32
    return %c0_i32, %c0_i32_0, %c0_i32_1 : i32, i32, i32
  }
  func.func @transform_6(%arg0: i32) -> (i32, i32, i32) {
    %c0_i32 = arith.constant 0 : i32
    %c0_i32_0 = arith.constant 0 : i32
    %c0_i32_1 = arith.constant 0 : i32
    %c0_i32_2 = arith.constant 0 : i32
    return %c0_i32, %c0_i32_0, %c0_i32_1 : i32, i32, i32
  }
  func.func @transform_7(%arg0: i32) -> (i32, i32, i32) {
    %c0_i32 = arith.constant 0 : i32
    %c0_i32_0 = arith.constant 0 : i32
    %c0_i32_1 = arith.constant 0 : i32
    %c0_i32_2 = arith.constant 0 : i32
    return %c0_i32, %c0_i32_0, %c0_i32_1 : i32, i32, i32
  }
  func.func @transform_8(%arg0: i32) -> (i32, i32, i32) {
    %c0_i32 = arith.constant 0 : i32
    %c0_i32_0 = arith.constant 0 : i32
    %c0_i32_1 = arith.constant 0 : i32
    %c0_i32_2 = arith.constant 0 : i32
    return %c0_i32, %c0_i32_0, %c0_i32_1 : i32, i32, i32
  }
  func.func @transform_9(%arg0: i32) -> (i32, i32, i32) {
    %c0_i32 = arith.constant 0 : i32
    %c0_i32_0 = arith.constant 0 : i32
    %c0_i32_1 = arith.constant 0 : i32
    %c0_i32_2 = arith.constant 0 : i32
    return %c0_i32, %c0_i32_0, %c0_i32_1 : i32, i32, i32
  }
  func.func @transform_10(%arg0: i32) -> (i32, i32) {
    %c0_i32 = arith.constant 0 : i32
    %c0_i32_0 = arith.constant 0 : i32
    %c0_i32_1 = arith.constant 0 : i32
    return %c0_i32, %c0_i32_0 : i32, i32
  }
  func.func @transform_11(%arg0: i32) -> (i32, i32) {
    %c0_i32 = arith.constant 0 : i32
    %c0_i32_0 = arith.constant 0 : i32
    %c0_i32_1 = arith.constant 0 : i32
    return %c0_i32, %c0_i32_0 : i32, i32
  }
  func.func @transform_12(%arg0: i32) -> (i32, i32) {
    %c0_i32 = arith.constant 0 : i32
    %c0_i32_0 = arith.constant 0 : i32
    %c0_i32_1 = arith.constant 0 : i32
    return %c0_i32, %c0_i32_0 : i32, i32
  }
  func.func @transform_13(%arg0: i32) -> (i32, i32) {
    %c0_i32 = arith.constant 0 : i32
    %c0_i32_0 = arith.constant 0 : i32
    %c0_i32_1 = arith.constant 0 : i32
    return %c0_i32, %c0_i32_0 : i32, i32
  }
  func.func @transform_14(%arg0: i32) -> (i32, i32) {
    %c0_i32 = arith.constant 0 : i32
    %c0_i32_0 = arith.constant 0 : i32
    return %arg0, %c0_i32 : i32, i32
  }
}

</mosaic_0001>

<llo_original>
// kernel: tpu_custom_call.1
$region0: #{tpu_custom_call.1}
  #allocation0 [shape = 'u32[]', space=smem, size = 0x4, offset = 0x4, fixed_abs, tag = 'smem constant byte address 0x4 - core index']
  #allocation1 [shape = 'u32[144,128]{1,0:T(1,128)}', space=vmem, size = 0x12000, scoped, tag = 'internal scratch']
  %s0 = inlined_call_operand.hbm [shape: f32[16,256], index: 0, kind: input, shape index: {}]
  %s1 = inlined_call_operand.hbm [shape: bf16[256,256], index: 1, kind: input, shape index: {}]
  %s2 = inlined_call_operand.hbm [shape: bf16[256,128], index: 2, kind: input, shape index: {}]
  %s3 = inlined_call_operand.hbm [shape: f32[3,256], index: 3, kind: input, shape index: {}]
  %s4 = inlined_call_operand.hbm [shape: f32[3,128], index: 4, kind: input, shape index: {}]
  %s5 = inlined_call_operand.hbm [shape: bf16[3,128,128], index: 5, kind: input, shape index: {}]
  %s6 = inlined_call_operand.hbm [shape: bf16[3,128,256], index: 6, kind: input, shape index: {}]
  %s7 = inlined_call_operand.hbm [shape: bf16[3,256,128], index: 7, kind: input, shape index: {}]
  %s8 = inlined_call_operand.vmem [shape: f32[3,6,128], index: 8, kind: input, shape index: {}]
  %s9 = inlined_call_operand.hbm [shape: f32[3,1,256], index: 9, kind: input, shape index: {}]
  %s10 = inlined_call_operand.hbm [shape: bf16[128,256], index: 10, kind: input, shape index: {}]
  %s11 = inlined_call_operand.hbm [shape: bf16[256,128], index: 11, kind: input, shape index: {}]
  %s12 = inlined_call_operand.vmem [shape: f32[3,256], index: 12, kind: input, shape index: {}]
  %s13 = inlined_call_operand.vmem [shape: f32[1,128], index: 13, kind: input, shape index: {}]
  %s14 = inlined_call_operand.hbm [shape: f32[16,128], index: 14, kind: output, shape index: {}]
  %s15 = sld [smem:[#allocation0]]
  $region110: #{tpu_custom_call.1} parent=0
    _
  %s17 = ssub.s32 1, %s15
  %s18 = scalar_select 0, %s17, %s15
  $region1: #{tpu_custom_call.1} parent=0
    #allocation2 [shape = 'u8[16384]{0}', space=vmem, size = 0x4000, scoped, tag = 'input window, operand 0, single buffered']
    #allocation3 [shape = 's32[1]{0}', space=sflag, size = 0x4, scoped, tag = 'scoped memory for tpu_custom_call.1']
    #allocation4 [shape = 's32[1]{0}', space=sflag, size = 0x4, scoped, tag = 'scoped memory for tpu_custom_call.1']
    #allocation5 [shape = 'u8[131072]{0}', space=vmem, size = 0x20000, scoped, tag = 'input window, operand 1, single buffered']
    #allocation6 [shape = 's32[1]{0}', space=sflag, size = 0x4, scoped, tag = 'scoped memory for tpu_custom_call.1']
    #allocation7 [shape = 'u8[65536]{0}', space=vmem, size = 0x10000, scoped, tag = 'input window, operand 2, single buffered']
    #allocation8 [shape = 'u8[4096]{0}', space=vmem, size = 0x1000, scoped, tag = 'input window, operand 3, single buffered']
    #allocation9 [shape = 's32[1]{0}', space=sflag, size = 0x4, scoped, tag = 'scoped memory for tpu_custom_call.1']
    #allocation10 [shape = 'u8[2048]{0}', space=vmem, size = 0x800, scoped, tag = 'input window, operand 4, single buffered']
    #allocation11 [shape = 'u8[98304]{0}', space=vmem, size = 0x18000, scoped, tag = 'input window, operand 5, single buffered']
    #allocation12 [shape = 's32[1]{0}', space=sflag, size = 0x4, scoped, tag = 'scoped memory for tpu_custom_call.1']
    #allocation13 [shape = 'u8[196608]{0}', space=vmem, size = 0x30000, scoped, tag = 'input window, operand 6, single buffered']
    #allocation14 [shape = 'u8[196608]{0}', space=vmem, size = 0x30000, scoped, tag = 'input window, operand 7, single buffered']
    #allocation15 [shape = 's32[1]{0}', space=sflag, size = 0x4, scoped, tag = 'scoped memory for tpu_custom_call.1']
    #allocation16 [shape = 'u8[3072]{0}', space=vmem, size = 0xc00, scoped, tag = 'input window, operand 9, single buffered']
    #allocation17 [shape = 'u8[65536]{0}', space=vmem, size = 0x10000, scoped, tag = 'input window, operand 10, single buffered']
    #allocation18 [shape = 's32[1]{0}', space=sflag, size = 0x4, scoped, tag = 'scoped memory for tpu_custom_call.1']
    #allocation19 [shape = 'u8[65536]{0}', space=vmem, size = 0x10000, scoped, tag = 'input window, operand 11, single buffered']
    #allocation20 [shape = 'u8[8192]{0}', space=vmem, size = 0x2000, scoped, tag = 'output window, operand 0, single buffered']
    %19 = vsyncpa [#allocation3], 0
    %20 = vsyncpa [#allocation6], 0
    %21 = vsyncpa [#allocation9], 0
    %22 = vsyncpa [#allocation12], 0
    %23 = vsyncpa [#allocation15], 0
    %24 = vsyncpa [#allocation18], 0
    %25 = vsyncpa [#allocation4], 0
    // Predicated region
    $region2: #{tpu_custom_call.1} parent=1 // pred_check
      _
    $region3: #{tpu_custom_call.1} parent=1 // pred_check_branch
      %27 = sbr.rel (0) target = $region5
    $region4: #{tpu_custom_call.1} parent=1 // pred_region
      %s29 = ssub.s32 512, 512
      %30 = vsyncadd [#allocation3], %s29
      %s31 = sshll.u32 [#allocation2], 4
      %s32 = int_to_ptr.vmem [resolvable:$true] %s31
      %37 = dma.hbm_to_vmem [thread:$0]  %s0, 512, %s32, [#allocation3], 256, 256, 16
    $region5: #{tpu_custom_call.1} parent=1 // pred_fallthru
      _
    // Predicated region
    $region6: #{tpu_custom_call.1} parent=1 // pred_check
      _
    $region7: #{tpu_custom_call.1} parent=1 // pred_check_branch
      %39 = sbr.rel (0) target = $region9
    $region8: #{tpu_custom_call.1} parent=1 // pred_region
      %s41 = ssub.s32 4096, 4096
      %42 = vsyncadd [#allocation6], %s41
      %s43 = sshll.u32 [#allocation5], 4
      %s44 = int_to_ptr.vmem [resolvable:$true] %s43
      %49 = dma.hbm_to_vmem [thread:$0]  %s1, 4096, %s44, [#allocation6], 128, 128, 8
    $region9: #{tpu_custom_call.1} parent=1 // pred_fallthru
      _
    // Predicated region
    $region10: #{tpu_custom_call.1} parent=1 // pred_check
      _
    $region11: #{tpu_custom_call.1} parent=1 // pred_check_branch
      %51 = sbr.rel (0) target = $region13
    $region12: #{tpu_custom_call.1} parent=1 // pred_region
      %s53 = ssub.s32 2048, 2048
      %54 = vsyncadd [#allocation6], %s53
      %s55 = sshll.u32 [#allocation7], 4
      %s56 = int_to_ptr.vmem [resolvable:$true] %s55
      %61 = dma.hbm_to_vmem [thread:$0]  %s2, 2048, %s56, [#allocation6], 64, 64, 4
    $region13: #{tpu_custom_call.1} parent=1 // pred_fallthru
      _
    // Predicated region
    $region14: #{tpu_custom_call.1} parent=1 // pred_check
      _
    $region15: #{tpu_custom_call.1} parent=1 // pred_check_branch
      %63 = sbr.rel (0) target = $region17
    $region16: #{tpu_custom_call.1} parent=1 // pred_region
      %s65 = ssub.s32 128, 128
      %66 = vsyncadd [#allocation9], %s65
      %s68 = sshll.u32 [#allocation8], 4
      %s69 = int_to_ptr.vmem [resolvable:$true] %s68
      %71 = dma.hbm_to_vmem [thread:$0]  %s3, 128, %s69, [#allocation9]
    $region17: #{tpu_custom_call.1} parent=1 // pred_fallthru
      _
    // Predicated region
    $region18: #{tpu_custom_call.1} parent=1 // pred_check
      _
    $region19: #{tpu_custom_call.1} parent=1 // pred_check_branch
      %73 = sbr.rel (0) target = $region21
    $region20: #{tpu_custom_call.1} parent=1 // pred_region
      %s75 = ssub.s32 64, 64
      %76 = vsyncadd [#allocation9], %s75
      %s78 = sshll.u32 [#allocation10], 4
      %s79 = int_to_ptr.vmem [resolvable:$true] %s78
      %81 = dma.hbm_to_vmem [thread:$0]  %s4, 64, %s79, [#allocation9]
    $region21: #{tpu_custom_call.1} parent=1 // pred_fallthru
      _
    // Predicated region
    $region22: #{tpu_custom_call.1} parent=1 // pred_check
      _
    $region23: #{tpu_custom_call.1} parent=1 // pred_check_branch
      %83 = sbr.rel (0) target = $region25
    $region24: #{tpu_custom_call.1} parent=1 // pred_region
      %s85 = ssub.s32 3072, 3072
      %86 = vsyncadd [#allocation12], %s85
      %s87 = sshll.u32 [#allocation11], 4
      %s88 = int_to_ptr.vmem [resolvable:$true] %s87
      %93 = dma.hbm_to_vmem [thread:$0]  %s5, 3072, %s88, [#allocation12], 64, 64, 4
    $region25: #{tpu_custom_call.1} parent=1 // pred_fallthru
      _
    // Predicated region
    $region26: #{tpu_custom_call.1} parent=1 // pred_check
      _
    $region27: #{tpu_custom_call.1} parent=1 // pred_check_branch
      %95 = sbr.rel (0) target = $region29
    $region28: #{tpu_custom_call.1} parent=1 // pred_region
      %s97 = ssub.s32 6144, 6144
      %98 = vsyncadd [#allocation12], %s97
      %s99 = sshll.u32 [#allocation13], 4
      %s100 = int_to_ptr.vmem [resolvable:$true] %s99
      %105 = dma.hbm_to_vmem [thread:$0]  %s6, 6144, %s100, [#allocation12], 128, 128, 8
    $region29: #{tpu_custom_call.1} parent=1 // pred_fallthru
      _
    // Predicated region
    $region30: #{tpu_custom_call.1} parent=1 // pred_check
      _
    $region31: #{tpu_custom_call.1} parent=1 // pred_check_branch
      %107 = sbr.rel (0) target = $region33
    $region32: #{tpu_custom_call.1} parent=1 // pred_region
      %s109 = ssub.s32 6144, 6144
      %110 = vsyncadd [#allocation15], %s109
      %s111 = sshll.u32 [#allocation14], 4
      %s112 = int_to_ptr.vmem [resolvable:$true] %s111
      %117 = dma.hbm_to_vmem [thread:$0]  %s7, 6144, %s112, [#allocation15], 64, 64, 4
    $region33: #{tpu_custom_call.1} parent=1 // pred_fallthru
      _
    // Predicated region
    $region34: #{tpu_custom_call.1} parent=1 // pred_check
      _
    $region35: #{tpu_custom_call.1} parent=1 // pred_check_branch
      %119 = sbr.rel (0) target = $region37
    $region36: #{tpu_custom_call.1} parent=1 // pred_region
      _
    $region37: #{tpu_custom_call.1} parent=1 // pred_fallthru
      _
    // Predicated region
    $region38: #{tpu_custom_call.1} parent=1 // pred_check
      _
    $region39: #{tpu_custom_call.1} parent=1 // pred_check_branch
      %121 = sbr.rel (0) target = $region41
    $region40: #{tpu_custom_call.1} parent=1 // pred_region
      %s123 = ssub.s32 96, 96
      %124 = vsyncadd [#allocation15], %s123
      %s125 = sshll.u32 [#allocation16], 4
      %s126 = int_to_ptr.vmem [resolvable:$true] %s125
      %131 = dma.hbm_to_vmem [thread:$0]  %s9, 96, %s126, [#allocation15], 32, 32, 2
    $region41: #{tpu_custom_call.1} parent=1 // pred_fallthru
      _
    // Predicated region
    $region42: #{tpu_custom_call.1} parent=1 // pred_check
      _
    $region43: #{tpu_custom_call.1} parent=1 // pred_check_branch
      %133 = sbr.rel (0) target = $region45
    $region44: #{tpu_custom_call.1} parent=1 // pred_region
      %s135 = ssub.s32 2048, 2048
      %136 = vsyncadd [#allocation18], %s135
      %s137 = sshll.u32 [#allocation17], 4
      %s138 = int_to_ptr.vmem [resolvable:$true] %s137
      %143 = dma.hbm_to_vmem [thread:$0]  %s10, 2048, %s138, [#allocation18], 128, 128, 8
    $region45: #{tpu_custom_call.1} parent=1 // pred_fallthru
      _
    // Predicated region
    $region46: #{tpu_custom_call.1} parent=1 // pred_check
      _
    $region47: #{tpu_custom_call.1} parent=1 // pred_check_branch
      %145 = sbr.rel (0) target = $region49
    $region48: #{tpu_custom_call.1} parent=1 // pred_region
      %s147 = ssub.s32 2048, 2048
      %148 = vsyncadd [#allocation18], %s147
      %s149 = sshll.u32 [#allocation19], 4
      %s150 = int_to_ptr.vmem [resolvable:$true] %s149
      %155 = dma.hbm_to_vmem [thread:$0]  %s11, 2048, %s150, [#allocation18], 64, 64, 4
    $region49: #{tpu_custom_call.1} parent=1 // pred_fallthru
      _
    // Predicated region
    $region50: #{tpu_custom_call.1} parent=1 // pred_check
      _
    $region51: #{tpu_custom_call.1} parent=1 // pred_check_branch
      %157 = sbr.rel (0) target = $region53
    $region52: #{tpu_custom_call.1} parent=1 // pred_region
      _
    $region53: #{tpu_custom_call.1} parent=1 // pred_fallthru
      _
    // Predicated region
    $region54: #{tpu_custom_call.1} parent=1 // pred_check
      _
    $region55: #{tpu_custom_call.1} parent=1 // pred_check_branch
      %159 = sbr.rel (0) target = $region57
    $region56: #{tpu_custom_call.1} parent=1 // pred_region
      _
    $region57: #{tpu_custom_call.1} parent=1 // pred_fallthru
      _
    // Predicated region
    $region58: #{tpu_custom_call.1} parent=1 // pred_check
      _
    $region59: #{tpu_custom_call.1} parent=1 // pred_check_branch
      %161 = sbr.rel (0) target = $region61
    $region60: #{tpu_custom_call.1} parent=1 // pred_region
      %162 = dma.done [#allocation3], 512
    $region61: #{tpu_custom_call.1} parent=1 // pred_fallthru
      _
    // Predicated region
    $region62: #{tpu_custom_call.1} parent=1 // pred_check
      _
    $region63: #{tpu_custom_call.1} parent=1 // pred_check_branch
      %164 = sbr.rel (0) target = $region65
    $region64: #{tpu_custom_call.1} parent=1 // pred_region
      %165 = dma.done [#allocation6], 4096
    $region65: #{tpu_custom_call.1} parent=1 // pred_fallthru
      _
    // Predicated region
    $region66: #{tpu_custom_call.1} parent=1 // pred_check
      _
    $region67: #{tpu_custom_call.1} parent=1 // pred_check_branch
      %167 = sbr.rel (0) target = $region69
    $region68: #{tpu_custom_call.1} parent=1 // pred_region
      %168 = dma.done [#allocation6], 2048
    $region69: #{tpu_custom_call.1} parent=1 // pred_fallthru
      _
    // Predicated region
    $region70: #{tpu_custom_call.1} parent=1 // pred_check
      _
    $region71: #{tpu_custom_call.1} parent=1 // pred_check_branch
      %170 = sbr.rel (0) target = $region73
    $region72: #{tpu_custom_call.1} parent=1 // pred_region
      %171 = dma.done [#allocation9], 128
    $region73: #{tpu_custom_call.1} parent=1 // pred_fallthru
      _
    // Predicated region
    $region74: #{tpu_custom_call.1} parent=1 // pred_check
      _
    $region75: #{tpu_custom_call.1} parent=1 // pred_check_branch
      %173 = sbr.rel (0) target = $region77
    $region76: #{tpu_custom_call.1} parent=1 // pred_region
      %174 = dma.done [#allocation9], 64
    $region77: #{tpu_custom_call.1} parent=1 // pred_fallthru
      _
    // Predicated region
    $region78: #{tpu_custom_call.1} parent=1 // pred_check
      _
    $region79: #{tpu_custom_call.1} parent=1 // pred_check_branch
      %176 = sbr.rel (0) target = $region81
    $region80: #{tpu_custom_call.1} parent=1 // pred_region
      %177 = dma.done [#allocation12], 3072
    $region81: #{tpu_custom_call.1} parent=1 // pred_fallthru
      _
    // Predicated region
    $region82: #{tpu_custom_call.1} parent=1 // pred_check
      _
    $region83: #{tpu_custom_call.1} parent=1 // pred_check_branch
      %179 = sbr.rel (0) target = $region85
    $region84: #{tpu_custom_call.1} parent=1 // pred_region
      %180 = dma.done [#allocation12], 6144
    $region85: #{tpu_custom_call.1} parent=1 // pred_fallthru
      _
    // Predicated region
    $region86: #{tpu_custom_call.1} parent=1 // pred_check
      _
    $region87: #{tpu_custom_call.1} parent=1 // pred_check_branch
      %182 = sbr.rel (0) target = $region89
    $region88: #{tpu_custom_call.1} parent=1 // pred_region
      %183 = dma.done [#allocation15], 6144
    $region89: #{tpu_custom_call.1} parent=1 // pred_fallthru
      _
    // Predicated region
    $region90: #{tpu_custom_call.1} parent=1 // pred_check
      _
    $region91: #{tpu_custom_call.1} parent=1 // pred_check_branch
      %185 = sbr.rel (0) target = $region93
    $region92: #{tpu_custom_call.1} parent=1 // pred_region
      %186 = dma.done [#allocation15], 96
    $region93: #{tpu_custom_call.1} parent=1 // pred_fallthru
      _
    // Predicated region
    $region94: #{tpu_custom_call.1} parent=1 // pred_check
      _
    $region95: #{tpu_custom_call.1} parent=1 // pred_check_branch
      %188 = sbr.rel (0) target = $region97
    $region96: #{tpu_custom_call.1} parent=1 // pred_region
      %189 = dma.done [#allocation18], 2048
    $region97: #{tpu_custom_call.1} parent=1 // pred_fallthru
      _
    // Predicated region
    $region98: #{tpu_custom_call.1} parent=1 // pred_check
      _
    $region99: #{tpu_custom_call.1} parent=1 // pred_check_branch
      %191 = sbr.rel (0) target = $region101
    $region100: #{tpu_custom_call.1} parent=1 // pred_region
      %192 = dma.done [#allocation18], 2048
    $region101: #{tpu_custom_call.1} parent=1 // pred_fallthru
      _
    %v194 = vld [vmem:[#allocation2] sm:$0xff]
    %v195 = vld [vmem:[#allocation2 + $0x8] sm:$0xff]
    %v196 = vld [vmem:[#allocation2 + $0x10] sm:$0xff]
    %v197 = vld [vmem:[#allocation2 + $0x18] sm:$0xff]
    %v198 = vld [vmem:[#allocation8] sm:$0x77]
    %v199 = vld [vmem:[#allocation5] sm:$0xff]
    %v200 = vld [vmem:[#allocation5 + $0x8] sm:$0xff]
    %v201 = vld [vmem:[#allocation5 + $0x10] sm:$0xff]
    %v202 = vld [vmem:[#allocation5 + $0x18] sm:$0xff]
    %v203 = vld [vmem:[#allocation5 + $0x20] sm:$0xff]
    %v204 = vld [vmem:[#allocation5 + $0x28] sm:$0xff]
    %v205 = vld [vmem:[#allocation5 + $0x30] sm:$0xff]
    %v206 = vld [vmem:[#allocation5 + $0x38] sm:$0xff]
    %v207 = vld [vmem:[#allocation5 + $0x40] sm:$0xff]
    %v208 = vld [vmem:[#allocation5 + $0x48] sm:$0xff]
    %v209 = vld [vmem:[#allocation5 + $0x50] sm:$0xff]
    %v210 = vld [vmem:[#allocation5 + $0x58] sm:$0xff]
    %v211 = vld [vmem:[#allocation5 + $0x60] sm:$0xff]
    %v212 = vld [vmem:[#allocation5 + $0x68] sm:$0xff]
    %v213 = vld [vmem:[#allocation5 + $0x70] sm:$0xff]
    %v214 = vld [vmem:[#allocation5 + $0x78] sm:$0xff]
    %v215 = vld [vmem:[#allocation5 + $0x80] sm:$0xff]
    %v216 = vld [vmem:[#allocation5 + $0x88] sm:$0xff]
    %v217 = vld [vmem:[#allocation5 + $0x90] sm:$0xff]
    %v218 = vld [vmem:[#allocation5 + $0x98] sm:$0xff]
    %v219 = vld [vmem:[#allocation5 + $0xa0] sm:$0xff]
    %v220 = vld [vmem:[#allocation5 + $0xa8] sm:$0xff]
    %v221 = vld [vmem:[#allocation5 + $0xb0] sm:$0xff]
    %v222 = vld [vmem:[#allocation5 + $0xb8] sm:$0xff]
    %v223 = vld [vmem:[#allocation5 + $0xc0] sm:$0xff]
    %v224 = vld [vmem:[#allocation5 + $0xc8] sm:$0xff]
    %v225 = vld [vmem:[#allocation5 + $0xd0] sm:$0xff]
    %v226 = vld [vmem:[#allocation5 + $0xd8] sm:$0xff]
    %v227 = vld [vmem:[#allocation5 + $0xe0] sm:$0xff]
    %v228 = vld [vmem:[#allocation5 + $0xe8] sm:$0xff]
    %v229 = vld [vmem:[#allocation5 + $0xf0] sm:$0xff]
    %v230 = vld [vmem:[#allocation5 + $0xf8] sm:$0xff]
    %v231 = vpack.c.bf16 %v196, %v194
    %v232 = vpack.c.bf16 %v197, %v195
    %v234 = vlaneseq
    %v235 = vshrl.u32 %v234, 7
    %v236 = vsub.s32 0, %v235
    %v237 = vrot.slane %v198, %v236
    %v238 = vlaneseq
    %v239 = vshrl.u32 %v238, 7
    %v240 = vsub.s32 4, %v239
    %v241 = vrot.slane %v198, %v240
    %v244 = vlaneseq
    %v245 = vshrl.u32 %v244, 7
    %v246 = vsub.s32 0, %v245
    %v247 = vrot.slane %v237, %v246
    %v248 = vlaneseq
    %v249 = vshrl.u32 %v248, 7
    %v250 = vsub.s32 0, %v249
    %v251 = vrot.slane %v241, %v250
    %v284 = vunpack.c.l.b16 %v199
    %v285 = vunpack.c.h.b16 %v199
    %v286 = vunpack.c.l.b16 %v200
    %v287 = vunpack.c.h.b16 %v200
    %v288 = vunpack.c.l.b16 %v201
    %v289 = vunpack.c.h.b16 %v201
    %v290 = vunpack.c.l.b16 %v202
    %v291 = vunpack.c.h.b16 %v202
    %v292 = vunpack.c.l.b16 %v203
    %v293 = vunpack.c.h.b16 %v203
    %v294 = vunpack.c.l.b16 %v204
    %v295 = vunpack.c.h.b16 %v204
    %v296 = vunpack.c.l.b16 %v205
    %v297 = vunpack.c.h.b16 %v205
    %v298 = vunpack.c.l.b16 %v206
    %v299 = vunpack.c.h.b16 %v206
    %v300 = vunpack.c.l.b16 %v207
    %v301 = vunpack.c.h.b16 %v207
    %v302 = vunpack.c.l.b16 %v208
    %v303 = vunpack.c.h.b16 %v208
    %v304 = vunpack.c.l.b16 %v209
    %v305 = vunpack.c.h.b16 %v209
    %v306 = vunpack.c.l.b16 %v210
    %v307 = vunpack.c.h.b16 %v210
    %v308 = vunpack.c.l.b16 %v211
    %v309 = vunpack.c.h.b16 %v211
    %v310 = vunpack.c.l.b16 %v212
    %v311 = vunpack.c.h.b16 %v212
    %v312 = vunpack.c.l.b16 %v213
    %v313 = vunpack.c.h.b16 %v213
    %v314 = vunpack.c.l.b16 %v214
    %v315 = vunpack.c.h.b16 %v214
    %v316 = vunpack.c.l.b16 %v215
    %v317 = vunpack.c.h.b16 %v215
    %v318 = vunpack.c.l.b16 %v216
    %v319 = vunpack.c.h.b16 %v216
    %v320 = vunpack.c.l.b16 %v217
    %v321 = vunpack.c.h.b16 %v217
    %v322 = vunpack.c.l.b16 %v218
    %v323 = vunpack.c.h.b16 %v218
    %v324 = vunpack.c.l.b16 %v219
    %v325 = vunpack.c.h.b16 %v219
    %v326 = vunpack.c.l.b16 %v220
    %v327 = vunpack.c.h.b16 %v220
    %v328 = vunpack.c.l.b16 %v221
    %v329 = vunpack.c.h.b16 %v221
    %v330 = vunpack.c.l.b16 %v222
    %v331 = vunpack.c.h.b16 %v222
    %v332 = vunpack.c.l.b16 %v223
    %v333 = vunpack.c.h.b16 %v223
    %v334 = vunpack.c.l.b16 %v224
    %v335 = vunpack.c.h.b16 %v224
    %v336 = vunpack.c.l.b16 %v225
    %v337 = vunpack.c.h.b16 %v225
    %v338 = vunpack.c.l.b16 %v226
    %v339 = vunpack.c.h.b16 %v226
    %v340 = vunpack.c.l.b16 %v227
    %v341 = vunpack.c.h.b16 %v227
    %v342 = vunpack.c.l.b16 %v228
    %v343 = vunpack.c.h.b16 %v228
    %v344 = vunpack.c.l.b16 %v229
    %v345 = vunpack.c.h.b16 %v229
    %v346 = vunpack.c.l.b16 %v230
    %v347 = vunpack.c.h.b16 %v230
    %v348 = vpack.c.b16 %v286, %v284
    %v349 = vpack.c.b16 %v287, %v285
    %v350 = vpack.c.b16 %v290, %v288
    %v351 = vpack.c.b16 %v291, %v289
    %v352 = vpack.c.b16 %v294, %v292
    %v353 = vpack.c.b16 %v295, %v293
    %v354 = vpack.c.b16 %v298, %v296
    %v355 = vpack.c.b16 %v299, %v297
    %v356 = vpack.c.b16 %v302, %v300
    %v357 = vpack.c.b16 %v303, %v301
    %v358 = vpack.c.b16 %v306, %v304
    %v359 = vpack.c.b16 %v307, %v305
    %v360 = vpack.c.b16 %v310, %v308
    %v361 = vpack.c.b16 %v311, %v309
    %v362 = vpack.c.b16 %v314, %v312
    %v363 = vpack.c.b16 %v315, %v313
    %v364 = vpack.c.b16 %v318, %v316
    %v365 = vpack.c.b16 %v319, %v317
    %v366 = vpack.c.b16 %v322, %v320
    %v367 = vpack.c.b16 %v323, %v321
    %v368 = vpack.c.b16 %v326, %v324
    %v369 = vpack.c.b16 %v327, %v325
    %v370 = vpack.c.b16 %v330, %v328
    %v371 = vpack.c.b16 %v331, %v329
    %v372 = vpack.c.b16 %v334, %v332
    %v373 = vpack.c.b16 %v335, %v333
    %v374 = vpack.c.b16 %v338, %v336
    %v375 = vpack.c.b16 %v339, %v337
    %v376 = vpack.c.b16 %v342, %v340
    %v377 = vpack.c.b16 %v343, %v341
    %v378 = vpack.c.b16 %v346, %v344
    %v379 = vpack.c.b16 %v347, %v345
    %412 = vmatprep.subr.bf16.mxu0 %v349
    %413 = vmatpush1.bf16.msra.mxu0 %v348
    %414 = vmatprep.subr.bf16.mxu0 %v351
    %415 = vmatpush1.bf16.msra.mxu0 %v350
    %416 = vmatprep.subr.bf16.mxu0 %v353
    %417 = vmatpush1.bf16.msra.mxu0 %v352
    %418 = vmatprep.subr.bf16.mxu0 %v355
    %419 = vmatpush1.bf16.msra.mxu0 %v354
    %420 = vmatprep.subr.bf16.mxu0 %v357
    %421 = vmatpush1.bf16.msra.mxu0 %v356
    %422 = vmatprep.subr.bf16.mxu0 %v359
    %423 = vmatpush1.bf16.msra.mxu0 %v358
    %424 = vmatprep.subr.bf16.mxu0 %v361
    %425 = vmatpush1.bf16.msra.mxu0 %v360
    %426 = vmatprep.subr.bf16.mxu0 %v363
    %427 = vmatpush1.bf16.msra.mxu0 %v362
    %428 = vmatprep.subr.bf16.mxu0 %v365
    %429 = vmatpush1.bf16.msra.mxu0 %v364
    %430 = vmatprep.subr.bf16.mxu0 %v367
    %431 = vmatpush1.bf16.msra.mxu0 %v366
    %432 = vmatprep.subr.bf16.mxu0 %v369
    %433 = vmatpush1.bf16.msra.mxu0 %v368
    %434 = vmatprep.subr.bf16.mxu0 %v371
    %435 = vmatpush1.bf16.msra.mxu0 %v370
    %436 = vmatprep.subr.bf16.mxu0 %v373
    %437 = vmatpush1.bf16.msra.mxu0 %v372
    %438 = vmatprep.subr.bf16.mxu0 %v375
    %439 = vmatpush1.bf16.msra.mxu0 %v374
    %440 = vmatprep.subr.bf16.mxu0 %v377
    %441 = vmatpush1.bf16.msra.mxu0 %v376
    %442 = vmatprep.subr.bf16.mxu0 %v379
    %443 = vmatpush1.bf16.msra.mxu0 %v378
    %444 = vmatprep.mubr.bf16.mxu0 %v232
    %445 = vmatmul.mubr.bf16.gmra.mrb[0].mxu0 %v231
    %v446 = vpop.f32.mrb[0].mxu0
    %v447 = vadd.f32 %v247, %v446
    %v448 = vpop.f32.mrb[0].mxu0
    %v449 = vadd.f32 %v251, %v448
    %v450 = vpop.f32.mrb[0].mxu0
    %v451 = vadd.f32 %v247, %v450
    %v452 = vpop.f32.mrb[0].mxu0
    %v453 = vadd.f32 %v251, %v452
    %454 = vdwg.mxu0
    %v455 = vadd.f32 %v447, %v449
    %456 = vadd.xlane.f32.xlu0 %v455
    %v457 = vpop.xlane.xlu0 %456
    %v458 = vadd.f32 %v451, %v453
    %459 = vadd.xlane.f32.xlu0 %v458
    %v460 = vpop.xlane.xlu0 %459
    %v461 = vrcp.pop 256.0
    %v462 = vmul.f32 %v457, %v461
    %v463 = vmul.f32 %v460, %v461
    %v464 = vmul.f32 %v447, %v447
    %v465 = vmul.f32 %v449, %v449
    %v466 = vmul.f32 %v451, %v451
    %v467 = vmul.f32 %v453, %v453
    %v468 = vadd.f32 %v464, %v465
    %469 = vadd.xlane.f32.xlu0 %v468
    %v470 = vpop.xlane.xlu0 %469
    %v471 = vadd.f32 %v466, %v467
    %472 = vadd.xlane.f32.xlu0 %v471
    %v473 = vpop.xlane.xlu0 %472
    %v474 = vmul.f32 %v470, %v461
    %v475 = vmul.f32 %v473, %v461
    %v476 = vmul.f32 %v462, %v462
    %v477 = vmul.f32 %v463, %v463
    %v478 = vsub.f32 %v474, %v476
    %v479 = vsub.f32 %v475, %v477
    %v480 = vsub.f32 %v447, %v462
    %v481 = vsub.f32 %v449, %v462
    %v482 = vsub.f32 %v451, %v463
    %v483 = vsub.f32 %v453, %v463
    %v484 = vadd.f32 %v478, 1e-05
    %v485 = vadd.f32 %v479, 1e-05
    %v486 = vrsqrt.pop %v484
    %v487 = vrsqrt.pop %v485
    %v488 = vmul.f32 %v480, %v486
    %v489 = vmul.f32 %v481, %v486
    %v490 = vmul.f32 %v482, %v487
    %v491 = vmul.f32 %v483, %v487
    %v492 = vlaneseq
    %v493 = vshrl.u32 %v492, 7
    %v494 = vsub.s32 1, %v493
    %v495 = vrot.slane %v198, %v494
    %v496 = vlaneseq
    %v497 = vshrl.u32 %v496, 7
    %v498 = vsub.s32 5, %v497
    %v499 = vrot.slane %v198, %v498
    %v502 = vlaneseq
    %v503 = vshrl.u32 %v502, 7
    %v504 = vsub.s32 1, %v503
    %v505 = vrot.slane %v495, %v504
    %v506 = vlaneseq
    %v507 = vshrl.u32 %v506, 7
    %v508 = vsub.s32 1, %v507
    %v509 = vrot.slane %v499, %v508
    %v510 = vmul.f32 %v488, %v505
    %v511 = vmul.f32 %v489, %v509
    %v512 = vmul.f32 %v490, %v505
    %v513 = vmul.f32 %v491, %v509
    %v514 = vlaneseq
    %v515 = vshrl.u32 %v514, 7
    %v516 = vsub.s32 2, %v515
    %v517 = vrot.slane %v198, %v516
    %v518 = vlaneseq
    %v519 = vshrl.u32 %v518, 7
    %v520 = vsub.s32 6, %v519
    %v521 = vrot.slane %v198, %v520
    %v524 = vlaneseq
    %v525 = vshrl.u32 %v524, 7
    %v526 = vsub.s32 2, %v525
    %v527 = vrot.slane %v517, %v526
    %v528 = vlaneseq
    %v529 = vshrl.u32 %v528, 7
    %v530 = vsub.s32 2, %v529
    %v531 = vrot.slane %v521, %v530
    %v532 = vadd.f32 %v510, %v527
    %v533 = vadd.f32 %v511, %v531
    %v534 = vadd.f32 %v512, %v527
    %v535 = vadd.f32 %v513, %v531
    %v536 = vmax.f32 %v532, 0.0
    %v537 = vmax.f32 %v533, 0.0
    %v538 = vmax.f32 %v534, 0.0
    %v539 = vmax.f32 %v535, 0.0
    %v540 = vld [vmem:[#allocation10] sm:$0x7]
    %v541 = vld [vmem:[#allocation7] sm:$0xf]
    %v542 = vld [vmem:[#allocation7 + $0x4] sm:$0xf]
    %v543 = vld [vmem:[#allocation7 + $0x8] sm:$0xf]
    %v544 = vld [vmem:[#allocation7 + $0xc] sm:$0xf]
    %v545 = vld [vmem:[#allocation7 + $0x10] sm:$0xf]
    %v546 = vld [vmem:[#allocation7 + $0x14] sm:$0xf]
    %v547 = vld [vmem:[#allocation7 + $0x18] sm:$0xf]
    %v548 = vld [vmem:[#allocation7 + $0x1c] sm:$0xf]
    %v549 = vld [vmem:[#allocation7 + $0x20] sm:$0xf]
    %v550 = vld [vmem:[#allocation7 + $0x24] sm:$0xf]
    %v551 = vld [vmem:[#allocation7 + $0x28] sm:$0xf]
    %v552 = vld [vmem:[#allocation7 + $0x2c] sm:$0xf]
    %v553 = vld [vmem:[#allocation7 + $0x30] sm:$0xf]
    %v554 = vld [vmem:[#allocation7 + $0x34] sm:$0xf]
    %v555 = vld [vmem:[#allocation7 + $0x38] sm:$0xf]
    %v556 = vld [vmem:[#allocation7 + $0x3c] sm:$0xf]
    %v557 = vld [vmem:[#allocation7 + $0x40] sm:$0xf]
    %v558 = vld [vmem:[#allocation7 + $0x44] sm:$0xf]
    %v559 = vld [vmem:[#allocation7 + $0x48] sm:$0xf]
    %v560 = vld [vmem:[#allocation7 + $0x4c] sm:$0xf]
    %v561 = vld [vmem:[#allocation7 + $0x50] sm:$0xf]
    %v562 = vld [vmem:[#allocation7 + $0x54] sm:$0xf]
    %v563 = vld [vmem:[#allocation7 + $0x58] sm:$0xf]
    %v564 = vld [vmem:[#allocation7 + $0x5c] sm:$0xf]
    %v565 = vld [vmem:[#allocation7 + $0x60] sm:$0xf]
    %v566 = vld [vmem:[#allocation7 + $0x64] sm:$0xf]
    %v567 = vld [vmem:[#allocation7 + $0x68] sm:$0xf]
    %v568 = vld [vmem:[#allocation7 + $0x6c] sm:$0xf]
    %v569 = vld [vmem:[#allocation7 + $0x70] sm:$0xf]
    %v570 = vld [vmem:[#allocation7 + $0x74] sm:$0xf]
    %v571 = vld [vmem:[#allocation7 + $0x78] sm:$0xf]
    %v572 = vld [vmem:[#allocation7 + $0x7c] sm:$0xf]
    %v573 = vpack.c.bf16 %v538, %v536
    %v574 = vpack.c.bf16 %v539, %v537
    %v575 = vlaneseq
    %v576 = vshrl.u32 %v575, 7
    %v577 = vsub.s32 0, %v576
    %v578 = vrot.slane %v540, %v577
    %v611 = vunpack.c.l.b16 %v541
    %v612 = vunpack.c.l.b16 %v542
    %v613 = vunpack.c.l.b16 %v543
    %v614 = vunpack.c.l.b16 %v544
    %v615 = vunpack.c.l.b16 %v545
    %v616 = vunpack.c.l.b16 %v546
    %v617 = vunpack.c.l.b16 %v547
    %v618 = vunpack.c.l.b16 %v548
    %v619 = vunpack.c.l.b16 %v549
    %v620 = vunpack.c.l.b16 %v550
    %v621 = vunpack.c.l.b16 %v551
    %v622 = vunpack.c.l.b16 %v552
    %v623 = vunpack.c.l.b16 %v553
    %v624 = vunpack.c.l.b16 %v554
    %v625 = vunpack.c.l.b16 %v555
    %v626 = vunpack.c.l.b16 %v556
    %v627 = vunpack.c.l.b16 %v557
    %v628 = vunpack.c.l.b16 %v558
    %v629 = vunpack.c.l.b16 %v559
    %v630 = vunpack.c.l.b16 %v560
    %v631 = vunpack.c.l.b16 %v561
    %v632 = vunpack.c.l.b16 %v562
    %v633 = vunpack.c.l.b16 %v563
    %v634 = vunpack.c.l.b16 %v564
    %v635 = vunpack.c.l.b16 %v565
    %v636 = vunpack.c.l.b16 %v566
    %v637 = vunpack.c.l.b16 %v567
    %v638 = vunpack.c.l.b16 %v568
    %v639 = vunpack.c.l.b16 %v569
    %v640 = vunpack.c.l.b16 %v570
    %v641 = vunpack.c.l.b16 %v571
    %v642 = vunpack.c.l.b16 %v572
    %v643 = vpack.c.b16 %v612, %v611
    %v644 = vpack.c.b16 %v614, %v613
    %v645 = vpack.c.b16 %v616, %v615
    %v646 = vpack.c.b16 %v618, %v617
    %v647 = vpack.c.b16 %v620, %v619
    %v648 = vpack.c.b16 %v622, %v621
    %v649 = vpack.c.b16 %v624, %v623
    %v650 = vpack.c.b16 %v626, %v625
    %v651 = vpack.c.b16 %v628, %v627
    %v652 = vpack.c.b16 %v630, %v629
    %v653 = vpack.c.b16 %v632, %v631
    %v654 = vpack.c.b16 %v634, %v633
    %v655 = vpack.c.b16 %v636, %v635
    %v656 = vpack.c.b16 %v638, %v637
    %v657 = vpack.c.b16 %v640, %v639
    %v658 = vpack.c.b16 %v642, %v641
    %675 = vmatprep.subr.bf16.mxu0 0
    %676 = vmatpush1.bf16.msra.mxu0 %v643
    %677 = vmatprep.subr.bf16.mxu0 0
    %678 = vmatpush1.bf16.msra.mxu0 %v644
    %679 = vmatprep.subr.bf16.mxu0 0
    %680 = vmatpush1.bf16.msra.mxu0 %v645
    %681 = vmatprep.subr.bf16.mxu0 0
    %682 = vmatpush1.bf16.msra.mxu0 %v646
    %683 = vmatprep.subr.bf16.mxu0 0
    %684 = vmatpush1.bf16.msra.mxu0 %v647
    %685 = vmatprep.subr.bf16.mxu0 0
    %686 = vmatpush1.bf16.msra.mxu0 %v648
    %687 = vmatprep.subr.bf16.mxu0 0
    %688 = vmatpush1.bf16.msra.mxu0 %v649
    %689 = vmatprep.subr.bf16.mxu0 0
    %690 = vmatpush1.bf16.msra.mxu0 %v650
    %691 = vmatprep.subr.bf16.mxu0 0
    %692 = vmatpush1.bf16.msra.mxu0 %v651
    %693 = vmatprep.subr.bf16.mxu0 0
    %694 = vmatpush1.bf16.msra.mxu0 %v652
    %695 = vmatprep.subr.bf16.mxu0 0
    %696 = vmatpush1.bf16.msra.mxu0 %v653
    %697 = vmatprep.subr.bf16.mxu0 0
    %698 = vmatpush1.bf16.msra.mxu0 %v654
    %699 = vmatprep.subr.bf16.mxu0 0
    %700 = vmatpush1.bf16.msra.mxu0 %v655
    %701 = vmatprep.subr.bf16.mxu0 0
    %702 = vmatpush1.bf16.msra.mxu0 %v656
    %703 = vmatprep.subr.bf16.mxu0 0
    %704 = vmatpush1.bf16.msra.mxu0 %v657
    %705 = vmatprep.subr.bf16.mxu0 0
    %706 = vmatpush1.bf16.msra.mxu0 %v658
    %707 = vmatprep.mubr.bf16.mxu0 %v574
    %708 = vmatmul.mubr.bf16.gmra.mrb[0].mxu0 %v573
    %v709 = vpop.f32.mrb[0].mxu0
    %v710 = vadd.f32 %v578, %v709
    %v711 = vpop.f32.mrb[0].mxu0
    %v712 = vpop.f32.mrb[0].mxu0
    %v713 = vadd.f32 %v578, %v712
    %v714 = vpop.f32.mrb[0].mxu0
    %715 = vdwg.mxu0
    %716 = vadd.xlane.f32.xlu0 %v710
    %v717 = vpop.xlane.xlu0 %716
    %718 = vadd.xlane.f32.xlu0 %v713
    %v719 = vpop.xlane.xlu0 %718
    %v720 = vrcp.pop 128.0
    %v721 = vmul.f32 %v717, %v720
    %v722 = vmul.f32 %v719, %v720
    %v723 = vmul.f32 %v710, %v710
    %v724 = vmul.f32 %v713, %v713
    %725 = vadd.xlane.f32.xlu0 %v723
    %v726 = vpop.xlane.xlu0 %725
    %727 = vadd.xlane.f32.xlu0 %v724
    %v728 = vpop.xlane.xlu0 %727
    %v729 = vmul.f32 %v726, %v720
    %v730 = vmul.f32 %v728, %v720
    %v731 = vmul.f32 %v721, %v721
    %v732 = vmul.f32 %v722, %v722
    %v733 = vsub.f32 %v729, %v731
    %v734 = vsub.f32 %v730, %v732
    %v735 = vsub.f32 %v710, %v721
    %v736 = vsub.f32 %v713, %v722
    %v737 = vadd.f32 %v733, 1e-05
    %v738 = vadd.f32 %v734, 1e-05
    %v739 = vrsqrt.pop %v737
    %v740 = vrsqrt.pop %v738
    %v741 = vmul.f32 %v735, %v739
    %v742 = vmul.f32 %v736, %v740
    %v743 = vlaneseq
    %v744 = vshrl.u32 %v743, 7
    %v745 = vsub.s32 1, %v744
    %v746 = vrot.slane %v540, %v745
    %v747 = vmul.f32 %v741, %v746
    %v748 = vmul.f32 %v742, %v746
    %v749 = vlaneseq
    %v750 = vshrl.u32 %v749, 7
    %v751 = vsub.s32 2, %v750
    %v752 = vrot.slane %v540, %v751
    %v753 = vadd.f32 %v747, %v752
    %v754 = vadd.f32 %v748, %v752
    %v755 = vmax.f32 %v753, 0.0
    %v756 = vmax.f32 %v754, 0.0
    %v757 = vld [vmem:[%s8] sm:$0x3f]
    %v758 = vld [vmem:[#allocation11] sm:$0xf]
    %v759 = vld [vmem:[#allocation11 + $0x4] sm:$0xf]
    %v760 = vld [vmem:[#allocation11 + $0x8] sm:$0xf]
    %v761 = vld [vmem:[#allocation11 + $0xc] sm:$0xf]
    %v762 = vld [vmem:[#allocation11 + $0x10] sm:$0xf]
    %v763 = vld [vmem:[#allocation11 + $0x14] sm:$0xf]
    %v764 = vld [vmem:[#allocation11 + $0x18] sm:$0xf]
    %v765 = vld [vmem:[#allocation11 + $0x1c] sm:$0xf]
    %v766 = vld [vmem:[#allocation11 + $0x20] sm:$0xf]
    %v767 = vld [vmem:[#allocation11 + $0x24] sm:$0xf]
    %v768 = vld [vmem:[#allocation11 + $0x28] sm:$0xf]
    %v769 = vld [vmem:[#allocation11 + $0x2c] sm:$0xf]
    %v770 = vld [vmem:[#allocation11 + $0x30] sm:$0xf]
    %v771 = vld [vmem:[#allocation11 + $0x34] sm:$0xf]
    %v772 = vld [vmem:[#allocation11 + $0x38] sm:$0xf]
    %v773 = vld [vmem:[#allocation11 + $0x3c] sm:$0xf]
    %v774 = vpack.c.bf16 %v756, %v755
    %v775 = vlaneseq
    %v776 = vshrl.u32 %v775, 7
    %v777 = vsub.s32 0, %v776
    %v778 = vrot.slane %v757, %v777
    %v795 = vunpack.c.l.b16 %v758
    %v796 = vunpack.c.l.b16 %v759
    %v797 = vunpack.c.l.b16 %v760
    %v798 = vunpack.c.l.b16 %v761
    %v799 = vunpack.c.l.b16 %v762
    %v800 = vunpack.c.l.b16 %v763
    %v801 = vunpack.c.l.b16 %v764
    %v802 = vunpack.c.l.b16 %v765
    %v803 = vunpack.c.l.b16 %v766
    %v804 = vunpack.c.l.b16 %v767
    %v805 = vunpack.c.l.b16 %v768
    %v806 = vunpack.c.l.b16 %v769
    %v807 = vunpack.c.l.b16 %v770
    %v808 = vunpack.c.l.b16 %v771
    %v809 = vunpack.c.l.b16 %v772
    %v810 = vunpack.c.l.b16 %v773
    %v811 = vpack.c.b16 %v796, %v795
    %v812 = vpack.c.b16 %v798, %v797
    %v813 = vpack.c.b16 %v800, %v799
    %v814 = vpack.c.b16 %v802, %v801
    %v815 = vpack.c.b16 %v804, %v803
    %v816 = vpack.c.b16 %v806, %v805
    %v817 = vpack.c.b16 %v808, %v807
    %v818 = vpack.c.b16 %v810, %v809
    %827 = vmatprep.subr.bf16.mxu0 0
    %828 = vmatpush1.bf16.msra.mxu0 %v811
    %829 = vmatprep.subr.bf16.mxu0 0
    %830 = vmatpush1.bf16.msra.mxu0 %v812
    %831 = vmatprep.subr.bf16.mxu0 0
    %832 = vmatpush1.bf16.msra.mxu0 %v813
    %833 = vmatprep.subr.bf16.mxu0 0
    %834 = vmatpush1.bf16.msra.mxu0 %v814
    %835 = vmatprep.subr.bf16.mxu0 0
    %836 = vmatpush1.bf16.msra.mxu0 %v815
    %837 = vmatprep.subr.bf16.mxu0 0
    %838 = vmatpush1.bf16.msra.mxu0 %v816
    %839 = vmatprep.subr.bf16.mxu0 0
    %840 = vmatpush1.bf16.msra.mxu0 %v817
    %841 = vmatprep.subr.bf16.mxu0 0
    %842 = vmatpush1.bf16.msra.mxu0 %v818
    %843 = vmatprep.subr.bf16.mxu0 0
    %844 = vmatpush1.bf16.msra.mxu0 0
    %845 = vmatprep.subr.bf16.mxu0 0
    %846 = vmatpush1.bf16.msra.mxu0 0
    %847 = vmatprep.subr.bf16.mxu0 0
    %848 = vmatpush1.bf16.msra.mxu0 0
    %849 = vmatprep.subr.bf16.mxu0 0
    %850 = vmatpush1.bf16.msra.mxu0 0
    %851 = vmatprep.subr.bf16.mxu0 0
    %852 = vmatpush1.bf16.msra.mxu0 0
    %853 = vmatprep.subr.bf16.mxu0 0
    %854 = vmatpush1.bf16.msra.mxu0 0
    %855 = vmatprep.subr.bf16.mxu0 0
    %856 = vmatpush1.bf16.msra.mxu0 0
    %857 = vmatprep.subr.bf16.mxu0 0
    %858 = vmatpush1.bf16.msra.mxu0 0
    %859 = vmatprep.mubr.bf16.mxu0 0
    %860 = vmatmul.mubr.bf16.gmra.mrb[0].mxu0 %v774
    %v861 = vpop.f32.mrb[0].mxu0
    %v862 = vadd.f32 %v778, %v861
    %v863 = vpop.f32.mrb[0].mxu0
    %v864 = vpop.f32.mrb[0].mxu0
    %v865 = vadd.f32 %v778, %v864
    %v866 = vpop.f32.mrb[0].mxu0
    %867 = vdwg.mxu0
    %v868 = vadd.f32 %v755, %v862
    %v869 = vadd.f32 %v756, %v865
    %870 = vadd.xlane.f32.xlu0 %v868
    %v871 = vpop.xlane.xlu0 %870
    %872 = vadd.xlane.f32.xlu0 %v869
    %v873 = vpop.xlane.xlu0 %872
    %v874 = vmul.f32 %v871, %v720
    %v875 = vmul.f32 %v873, %v720
    %v876 = vmul.f32 %v868, %v868
    %v877 = vmul.f32 %v869, %v869
    %878 = vadd.xlane.f32.xlu0 %v876
    %v879 = vpop.xlane.xlu0 %878
    %880 = vadd.xlane.f32.xlu0 %v877
    %v881 = vpop.xlane.xlu0 %880
    %v882 = vmul.f32 %v879, %v720
    %v883 = vmul.f32 %v881, %v720
    %v884 = vmul.f32 %v874, %v874
    %v885 = vmul.f32 %v875, %v875
    %v886 = vsub.f32 %v882, %v884
    %v887 = vsub.f32 %v883, %v885
    %v888 = vsub.f32 %v868, %v874
    %v889 = vsub.f32 %v869, %v875
    %v890 = vadd.f32 %v886, 1e-05
    %v891 = vadd.f32 %v887, 1e-05
    %v892 = vrsqrt.pop %v890
    %v893 = vrsqrt.pop %v891
    %v894 = vmul.f32 %v888, %v892
    %v895 = vmul.f32 %v889, %v893
    %v896 = vlaneseq
    %v897 = vshrl.u32 %v896, 7
    %v898 = vsub.s32 1, %v897
    %v899 = vrot.slane %v757, %v898
    %v900 = vmul.f32 %v894, %v899
    %v901 = vmul.f32 %v895, %v899
    %v902 = vlaneseq
    %v903 = vshrl.u32 %v902, 7
    %v904 = vsub.s32 2, %v903
    %v905 = vrot.slane %v757, %v904
    %v906 = vadd.f32 %v900, %v905
    %v907 = vadd.f32 %v901, %v905
    %v908 = vld [vmem:[#allocation13] sm:$0xff]
    %v909 = vld [vmem:[#allocation13 + $0x8] sm:$0xff]
    %v910 = vld [vmem:[#allocation13 + $0x10] sm:$0xff]
    %v911 = vld [vmem:[#allocation13 + $0x18] sm:$0xff]
    %v912 = vld [vmem:[#allocation13 + $0x20] sm:$0xff]
    %v913 = vld [vmem:[#allocation13 + $0x28] sm:$0xff]
    %v914 = vld [vmem:[#allocation13 + $0x30] sm:$0xff]
    %v915 = vld [vmem:[#allocation13 + $0x38] sm:$0xff]
    %v916 = vld [vmem:[#allocation13 + $0x40] sm:$0xff]
    %v917 = vld [vmem:[#allocation13 + $0x48] sm:$0xff]
    %v918 = vld [vmem:[#allocation13 + $0x50] sm:$0xff]
    %v919 = vld [vmem:[#allocation13 + $0x58] sm:$0xff]
    %v920 = vld [vmem:[#allocation13 + $0x60] sm:$0xff]
    %v921 = vld [vmem:[#allocation13 + $0x68] sm:$0xff]
    %v922 = vld [vmem:[#allocation13 + $0x70] sm:$0xff]
    %v923 = vld [vmem:[#allocation13 + $0x78] sm:$0xff]
    %v924 = vld [vmem:[#allocation16] sm:$0x3]
    %v925 = vpack.c.bf16 %v907, %v906
    %v927 = vlaneseq
    %v928 = vshrl.u32 %v927, 7
    %v929 = vsub.s32 0, %v928
    %v930 = vrot.slane %v924, %v929
    %v931 = vlaneseq
    %v932 = vshrl.u32 %v931, 7
    %v933 = vsub.s32 1, %v932
    %v934 = vrot.slane %v924, %v933
    %v953 = vunpack.c.l.b16 %v908
    %v954 = vunpack.c.h.b16 %v908
    %v955 = vunpack.c.l.b16 %v909
    %v956 = vunpack.c.h.b16 %v909
    %v957 = vunpack.c.l.b16 %v910
    %v958 = vunpack.c.h.b16 %v910
    %v959 = vunpack.c.l.b16 %v911
    %v960 = vunpack.c.h.b16 %v911
    %v961 = vunpack.c.l.b16 %v912
    %v962 = vunpack.c.h.b16 %v912
    %v963 = vunpack.c.l.b16 %v913
    %v964 = vunpack.c.h.b16 %v913
    %v965 = vunpack.c.l.b16 %v914
    %v966 = vunpack.c.h.b16 %v914
    %v967 = vunpack.c.l.b16 %v915
    %v968 = vunpack.c.h.b16 %v915
    %v969 = vunpack.c.l.b16 %v916
    %v970 = vunpack.c.h.b16 %v916
    %v971 = vunpack.c.l.b16 %v917
    %v972 = vunpack.c.h.b16 %v917
    %v973 = vunpack.c.l.b16 %v918
    %v974 = vunpack.c.h.b16 %v918
    %v975 = vunpack.c.l.b16 %v919
    %v976 = vunpack.c.h.b16 %v919
    %v977 = vunpack.c.l.b16 %v920
    %v978 = vunpack.c.h.b16 %v920
    %v979 = vunpack.c.l.b16 %v921
    %v980 = vunpack.c.h.b16 %v921
    %v981 = vunpack.c.l.b16 %v922
    %v982 = vunpack.c.h.b16 %v922
    %v983 = vunpack.c.l.b16 %v923
    %v984 = vunpack.c.h.b16 %v923
    %v985 = vpack.c.b16 %v955, %v953
    %v986 = vpack.c.b16 %v956, %v954
    %v987 = vpack.c.b16 %v959, %v957
    %v988 = vpack.c.b16 %v960, %v958
    %v989 = vpack.c.b16 %v963, %v961
    %v990 = vpack.c.b16 %v964, %v962
    %v991 = vpack.c.b16 %v967, %v965
    %v992 = vpack.c.b16 %v968, %v966
    %v993 = vpack.c.b16 %v971, %v969
    %v994 = vpack.c.b16 %v972, %v970
    %v995 = vpack.c.b16 %v975, %v973
    %v996 = vpack.c.b16 %v976, %v974
    %v997 = vpack.c.b16 %v979, %v977
    %v998 = vpack.c.b16 %v980, %v978
    %v999 = vpack.c.b16 %v983, %v981
    %v1000 = vpack.c.b16 %v984, %v982
    %1017 = vmatprep.subr.bf16.mxu0 %v986
    %1018 = vmatpush1.bf16.msra.mxu0 %v985
    %1019 = vmatprep.subr.bf16.mxu0 %v988
    %1020 = vmatpush1.bf16.msra.mxu0 %v987
    %1021 = vmatprep.subr.bf16.mxu0 %v990
    %1022 = vmatpush1.bf16.msra.mxu0 %v989
    %1023 = vmatprep.subr.bf16.mxu0 %v992
    %1024 = vmatpush1.bf16.msra.mxu0 %v991
    %1025 = vmatprep.subr.bf16.mxu0 %v994
    %1026 = vmatpush1.bf16.msra.mxu0 %v993
    %1027 = vmatprep.subr.bf16.mxu0 %v996
    %1028 = vmatpush1.bf16.msra.mxu0 %v995
    %1029 = vmatprep.subr.bf16.mxu0 %v998
    %1030 = vmatpush1.bf16.msra.mxu0 %v997
    %1031 = vmatprep.subr.bf16.mxu0 %v1000
    %1032 = vmatpush1.bf16.msra.mxu0 %v999
    %1033 = vmatprep.subr.bf16.mxu0 0
    %1034 = vmatpush1.bf16.msra.mxu0 0
    %1035 = vmatprep.subr.bf16.mxu0 0
    %1036 = vmatpush1.bf16.msra.mxu0 0
    %1037 = vmatprep.subr.bf16.mxu0 0
    %1038 = vmatpush1.bf16.msra.mxu0 0
    %1039 = vmatprep.subr.bf16.mxu0 0
    %1040 = vmatpush1.bf16.msra.mxu0 0
    %1041 = vmatprep.subr.bf16.mxu0 0
    %1042 = vmatpush1.bf16.msra.mxu0 0
    %1043 = vmatprep.subr.bf16.mxu0 0
    %1044 = vmatpush1.bf16.msra.mxu0 0
    %1045 = vmatprep.subr.bf16.mxu0 0
    %1046 = vmatpush1.bf16.msra.mxu0 0
    %1047 = vmatprep.subr.bf16.mxu0 0
    %1048 = vmatpush1.bf16.msra.mxu0 0
    %1049 = vmatprep.mubr.bf16.mxu0 0
    %1050 = vmatmul.mubr.bf16.gmra.mrb[0].mxu0 %v925
    %v1051 = vpop.f32.mrb[0].mxu0
    %v1052 = vadd.f32 %v930, %v1051
    %v1053 = vpop.f32.mrb[0].mxu0
    %v1054 = vadd.f32 %v934, %v1053
    %v1055 = vpop.f32.mrb[0].mxu0
    %v1056 = vadd.f32 %v930, %v1055
    %v1057 = vpop.f32.mrb[0].mxu0
    %v1058 = vadd.f32 %v934, %v1057
    %1059 = vdwg.mxu0
    %v1060 = vmax.f32 %v1052, 0.0
    %v1061 = vmax.f32 %v1054, 0.0
    %v1062 = vmax.f32 %v1056, 0.0
    %v1063 = vmax.f32 %v1058, 0.0
    %v1064 = vld [vmem:[#allocation14] sm:$0xf]
    %v1065 = vld [vmem:[#allocation14 + $0x4] sm:$0xf]
    %v1066 = vld [vmem:[#allocation14 + $0x8] sm:$0xf]
    %v1067 = vld [vmem:[#allocation14 + $0xc] sm:$0xf]
    %v1068 = vld [vmem:[#allocation14 + $0x10] sm:$0xf]
    %v1069 = vld [vmem:[#allocation14 + $0x14] sm:$0xf]
    %v1070 = vld [vmem:[#allocation14 + $0x18] sm:$0xf]
    %v1071 = vld [vmem:[#allocation14 + $0x1c] sm:$0xf]
    %v1072 = vld [vmem:[#allocation14 + $0x20] sm:$0xf]
    %v1073 = vld [vmem:[#allocation14 + $0x24] sm:$0xf]
    %v1074 = vld [vmem:[#allocation14 + $0x28] sm:$0xf]
    %v1075 = vld [vmem:[#allocation14 + $0x2c] sm:$0xf]
    %v1076 = vld [vmem:[#allocation14 + $0x30] sm:$0xf]
    %v1077 = vld [vmem:[#allocation14 + $0x34] sm:$0xf]
    %v1078 = vld [vmem:[#allocation14 + $0x38] sm:$0xf]
    %v1079 = vld [vmem:[#allocation14 + $0x3c] sm:$0xf]
    %v1080 = vld [vmem:[#allocation14 + $0x40] sm:$0xf]
    %v1081 = vld [vmem:[#allocation14 + $0x44] sm:$0xf]
    %v1082 = vld [vmem:[#allocation14 + $0x48] sm:$0xf]
    %v1083 = vld [vmem:[#allocation14 + $0x4c] sm:$0xf]
    %v1084 = vld [vmem:[#allocation14 + $0x50] sm:$0xf]
    %v1085 = vld [vmem:[#allocation14 + $0x54] sm:$0xf]
    %v1086 = vld [vmem:[#allocation14 + $0x58] sm:$0xf]
    %v1087 = vld [vmem:[#allocation14 + $0x5c] sm:$0xf]
    %v1088 = vld [vmem:[#allocation14 + $0x60] sm:$0xf]
    %v1089 = vld [vmem:[#allocation14 + $0x64] sm:$0xf]
    %v1090 = vld [vmem:[#allocation14 + $0x68] sm:$0xf]
    %v1091 = vld [vmem:[#allocation14 + $0x6c] sm:$0xf]
    %v1092 = vld [vmem:[#allocation14 + $0x70] sm:$0xf]
    %v1093 = vld [vmem:[#allocation14 + $0x74] sm:$0xf]
    %v1094 = vld [vmem:[#allocation14 + $0x78] sm:$0xf]
    %v1095 = vld [vmem:[#allocation14 + $0x7c] sm:$0xf]
    %v1096 = vpack.c.bf16 %v1062, %v1060
    %v1097 = vpack.c.bf16 %v1063, %v1061
    %v1098 = vlaneseq
    %v1099 = vshrl.u32 %v1098, 7
    %v1100 = vsub.s32 3, %v1099
    %v1101 = vrot.slane %v757, %v1100
    %v1134 = vunpack.c.l.b16 %v1064
    %v1135 = vunpack.c.l.b16 %v1065
    %v1136 = vunpack.c.l.b16 %v1066
    %v1137 = vunpack.c.l.b16 %v1067
    %v1138 = vunpack.c.l.b16 %v1068
    %v1139 = vunpack.c.l.b16 %v1069
    %v1140 = vunpack.c.l.b16 %v1070
    %v1141 = vunpack.c.l.b16 %v1071
    %v1142 = vunpack.c.l.b16 %v1072
    %v1143 = vunpack.c.l.b16 %v1073
    %v1144 = vunpack.c.l.b16 %v1074
    %v1145 = vunpack.c.l.b16 %v1075
    %v1146 = vunpack.c.l.b16 %v1076
    %v1147 = vunpack.c.l.b16 %v1077
    %v1148 = vunpack.c.l.b16 %v1078
    %v1149 = vunpack.c.l.b16 %v1079
    %v1150 = vunpack.c.l.b16 %v1080
    %v1151 = vunpack.c.l.b16 %v1081
    %v1152 = vunpack.c.l.b16 %v1082
    %v1153 = vunpack.c.l.b16 %v1083
    %v1154 = vunpack.c.l.b16 %v1084
    %v1155 = vunpack.c.l.b16 %v1085
    %v1156 = vunpack.c.l.b16 %v1086
    %v1157 = vunpack.c.l.b16 %v1087
    %v1158 = vunpack.c.l.b16 %v1088
    %v1159 = vunpack.c.l.b16 %v1089
    %v1160 = vunpack.c.l.b16 %v1090
    %v1161 = vunpack.c.l.b16 %v1091
    %v1162 = vunpack.c.l.b16 %v1092
    %v1163 = vunpack.c.l.b16 %v1093
    %v1164 = vunpack.c.l.b16 %v1094
    %v1165 = vunpack.c.l.b16 %v1095
    %v1166 = vpack.c.b16 %v1135, %v1134
    %v1167 = vpack.c.b16 %v1137, %v1136
    %v1168 = vpack.c.b16 %v1139, %v1138
    %v1169 = vpack.c.b16 %v1141, %v1140
    %v1170 = vpack.c.b16 %v1143, %v1142
    %v1171 = vpack.c.b16 %v1145, %v1144
    %v1172 = vpack.c.b16 %v1147, %v1146
    %v1173 = vpack.c.b16 %v1149, %v1148
    %v1174 = vpack.c.b16 %v1151, %v1150
    %v1175 = vpack.c.b16 %v1153, %v1152
    %v1176 = vpack.c.b16 %v1155, %v1154
    %v1177 = vpack.c.b16 %v1157, %v1156
    %v1178 = vpack.c.b16 %v1159, %v1158
    %v1179 = vpack.c.b16 %v1161, %v1160
    %v1180 = vpack.c.b16 %v1163, %v1162
    %v1181 = vpack.c.b16 %v1165, %v1164
    %1198 = vmatprep.subr.bf16.mxu0 0
    %1199 = vmatpush1.bf16.msra.mxu0 %v1166
    %1200 = vmatprep.subr.bf16.mxu0 0
    %1201 = vmatpush1.bf16.msra.mxu0 %v1167
    %1202 = vmatprep.subr.bf16.mxu0 0
    %1203 = vmatpush1.bf16.msra.mxu0 %v1168
    %1204 = vmatprep.subr.bf16.mxu0 0
    %1205 = vmatpush1.bf16.msra.mxu0 %v1169
    %1206 = vmatprep.subr.bf16.mxu0 0
    %1207 = vmatpush1.bf16.msra.mxu0 %v1170
    %1208 = vmatprep.subr.bf16.mxu0 0
    %1209 = vmatpush1.bf16.msra.mxu0 %v1171
    %1210 = vmatprep.subr.bf16.mxu0 0
    %1211 = vmatpush1.bf16.msra.mxu0 %v1172
    %1212 = vmatprep.subr.bf16.mxu0 0
    %1213 = vmatpush1.bf16.msra.mxu0 %v1173
    %1214 = vmatprep.subr.bf16.mxu0 0
    %1215 = vmatpush1.bf16.msra.mxu0 %v1174
    %1216 = vmatprep.subr.bf16.mxu0 0
    %1217 = vmatpush1.bf16.msra.mxu0 %v1175
    %1218 = vmatprep.subr.bf16.mxu0 0
    %1219 = vmatpush1.bf16.msra.mxu0 %v1176
    %1220 = vmatprep.subr.bf16.mxu0 0
    %1221 = vmatpush1.bf16.msra.mxu0 %v1177
    %1222 = vmatprep.subr.bf16.mxu0 0
    %1223 = vmatpush1.bf16.msra.mxu0 %v1178
    %1224 = vmatprep.subr.bf16.mxu0 0
    %1225 = vmatpush1.bf16.msra.mxu0 %v1179
    %1226 = vmatprep.subr.bf16.mxu0 0
    %1227 = vmatpush1.bf16.msra.mxu0 %v1180
    %1228 = vmatprep.subr.bf16.mxu0 0
    %1229 = vmatpush1.bf16.msra.mxu0 %v1181
    %1230 = vmatprep.mubr.bf16.mxu0 %v1097
    %1231 = vmatmul.mubr.bf16.gmra.mrb[0].mxu0 %v1096
    %v1232 = vpop.f32.mrb[0].mxu0
    %v1233 = vadd.f32 %v1101, %v1232
    %v1234 = vpop.f32.mrb[0].mxu0
    %v1235 = vpop.f32.mrb[0].mxu0
    %v1236 = vadd.f32 %v1101, %v1235
    %v1237 = vpop.f32.mrb[0].mxu0
    %1238 = vdwg.mxu0
    %v1239 = vadd.f32 %v906, %v1233
    %v1240 = vadd.f32 %v907, %v1236
    %1241 = vadd.xlane.f32.xlu0 %v1239
    %v1242 = vpop.xlane.xlu0 %1241
    %1243 = vadd.xlane.f32.xlu0 %v1240
    %v1244 = vpop.xlane.xlu0 %1243
    %v1245 = vmul.f32 %v1242, %v720
    %v1246 = vmul.f32 %v1244, %v720
    %v1247 = vmul.f32 %v1239, %v1239
    %v1248 = vmul.f32 %v1240, %v1240
    %1249 = vadd.xlane.f32.xlu0 %v1247
    %v1250 = vpop.xlane.xlu0 %1249
    %1251 = vadd.xlane.f32.xlu0 %v1248
    %v1252 = vpop.xlane.xlu0 %1251
    %v1253 = vmul.f32 %v1250, %v720
    %v1254 = vmul.f32 %v1252, %v720
    %v1255 = vmul.f32 %v1245, %v1245
    %v1256 = vmul.f32 %v1246, %v1246
    %v1257 = vsub.f32 %v1253, %v1255
    %v1258 = vsub.f32 %v1254, %v1256
    %v1259 = vsub.f32 %v1239, %v1245
    %v1260 = vsub.f32 %v1240, %v1246
    %v1261 = vadd.f32 %v1257, 1e-05
    %v1262 = vadd.f32 %v1258, 1e-05
    %v1263 = vrsqrt.pop %v1261
    %v1264 = vrsqrt.pop %v1262
    %v1265 = vmul.f32 %v1259, %v1263
    %v1266 = vmul.f32 %v1260, %v1264
    %v1267 = vlaneseq
    %v1268 = vshrl.u32 %v1267, 7
    %v1269 = vsub.s32 4, %v1268
    %v1270 = vrot.slane %v757, %v1269
    %v1271 = vmul.f32 %v1265, %v1270
    %v1272 = vmul.f32 %v1266, %v1270
    %v1273 = vlaneseq
    %v1274 = vshrl.u32 %v1273, 7
    %v1275 = vsub.s32 5, %v1274
    %v1276 = vrot.slane %v757, %v1275
    %v1277 = vadd.f32 %v1271, %v1276
    %v1278 = vadd.f32 %v1272, %v1276
    %s1279 = scalar_lea.vmem %s8, 8
    %v1280 = vld [vmem:[%s1279] sm:$0x3f]
    %s1281 = scalar_lea.vmem [#allocation11], 64
    %v1282 = vld [vmem:[%s1281] sm:$0xf]
    %v1283 = vld [vmem:[%s1281 + $0x4] sm:$0xf]
    %v1284 = vld [vmem:[%s1281 + $0x8] sm:$0xf]
    %v1285 = vld [vmem:[%s1281 + $0xc] sm:$0xf]
    %v1286 = vld [vmem:[%s1281 + $0x10] sm:$0xf]
    %v1287 = vld [vmem:[%s1281 + $0x14] sm:$0xf]
    %v1288 = vld [vmem:[%s1281 + $0x18] sm:$0xf]
    %v1289 = vld [vmem:[%s1281 + $0x1c] sm:$0xf]
    %v1290 = vld [vmem:[%s1281 + $0x20] sm:$0xf]
    %v1291 = vld [vmem:[%s1281 + $0x24] sm:$0xf]
    %v1292 = vld [vmem:[%s1281 + $0x28] sm:$0xf]
    %v1293 = vld [vmem:[%s1281 + $0x2c] sm:$0xf]
    %v1294 = vld [vmem:[%s1281 + $0x30] sm:$0xf]
    %v1295 = vld [vmem:[%s1281 + $0x34] sm:$0xf]
    %v1296 = vld [vmem:[%s1281 + $0x38] sm:$0xf]
    %v1297 = vld [vmem:[%s1281 + $0x3c] sm:$0xf]
    %v1298 = vpack.c.bf16 %v1278, %v1277
    %v1299 = vlaneseq
    %v1300 = vshrl.u32 %v1299, 7
    %v1301 = vsub.s32 0, %v1300
    %v1302 = vrot.slane %v1280, %v1301
    %v1319 = vunpack.c.l.b16 %v1282
    %v1320 = vunpack.c.l.b16 %v1283
    %v1321 = vunpack.c.l.b16 %v1284
    %v1322 = vunpack.c.l.b16 %v1285
    %v1323 = vunpack.c.l.b16 %v1286
    %v1324 = vunpack.c.l.b16 %v1287
    %v1325 = vunpack.c.l.b16 %v1288
    %v1326 = vunpack.c.l.b16 %v1289
    %v1327 = vunpack.c.l.b16 %v1290
    %v1328 = vunpack.c.l.b16 %v1291
    %v1329 = vunpack.c.l.b16 %v1292
    %v1330 = vunpack.c.l.b16 %v1293
    %v1331 = vunpack.c.l.b16 %v1294
    %v1332 = vunpack.c.l.b16 %v1295
    %v1333 = vunpack.c.l.b16 %v1296
    %v1334 = vunpack.c.l.b16 %v1297
    %v1335 = vpack.c.b16 %v1320, %v1319
    %v1336 = vpack.c.b16 %v1322, %v1321
    %v1337 = vpack.c.b16 %v1324, %v1323
    %v1338 = vpack.c.b16 %v1326, %v1325
    %v1339 = vpack.c.b16 %v1328, %v1327
    %v1340 = vpack.c.b16 %v1330, %v1329
    %v1341 = vpack.c.b16 %v1332, %v1331
    %v1342 = vpack.c.b16 %v1334, %v1333
    %1351 = vmatprep.subr.bf16.mxu0 0
    %1352 = vmatpush1.bf16.msra.mxu0 %v1335
    %1353 = vmatprep.subr.bf16.mxu0 0
    %1354 = vmatpush1.bf16.msra.mxu0 %v1336
    %1355 = vmatprep.subr.bf16.mxu0 0
    %1356 = vmatpush1.bf16.msra.mxu0 %v1337
    %1357 = vmatprep.subr.bf16.mxu0 0
    %1358 = vmatpush1.bf16.msra.mxu0 %v1338
    %1359 = vmatprep.subr.bf16.mxu0 0
    %1360 = vmatpush1.bf16.msra.mxu0 %v1339
    %1361 = vmatprep.subr.bf16.mxu0 0
    %1362 = vmatpush1.bf16.msra.mxu0 %v1340
    %1363 = vmatprep.subr.bf16.mxu0 0
    %1364 = vmatpush1.bf16.msra.mxu0 %v1341
    %1365 = vmatprep.subr.bf16.mxu0 0
    %1366 = vmatpush1.bf16.msra.mxu0 %v1342
    %1367 = vmatprep.subr.bf16.mxu0 0
    %1368 = vmatpush1.bf16.msra.mxu0 0
    %1369 = vmatprep.subr.bf16.mxu0 0
    %1370 = vmatpush1.bf16.msra.mxu0 0
    %1371 = vmatprep.subr.bf16.mxu0 0
    %1372 = vmatpush1.bf16.msra.mxu0 0
    %1373 = vmatprep.subr.bf16.mxu0 0
    %1374 = vmatpush1.bf16.msra.mxu0 0
    %1375 = vmatprep.subr.bf16.mxu0 0
    %1376 = vmatpush1.bf16.msra.mxu0 0
    %1377 = vmatprep.subr.bf16.mxu0 0
    %1378 = vmatpush1.bf16.msra.mxu0 0
    %1379 = vmatprep.subr.bf16.mxu0 0
    %1380 = vmatpush1.bf16.msra.mxu0 0
    %1381 = vmatprep.subr.bf16.mxu0 0
    %1382 = vmatpush1.bf16.msra.mxu0 0
    %1383 = vmatprep.mubr.bf16.mxu0 0
    %1384 = vmatmul.mubr.bf16.gmra.mrb[0].mxu0 %v1298
    %v1385 = vpop.f32.mrb[0].mxu0
    %v1386 = vadd.f32 %v1302, %v1385
    %v1387 = vpop.f32.mrb[0].mxu0
    %v1388 = vpop.f32.mrb[0].mxu0
    %v1389 = vadd.f32 %v1302, %v1388
    %v1390 = vpop.f32.mrb[0].mxu0
    %1391 = vdwg.mxu0
    %v1392 = vadd.f32 %v1277, %v1386
    %v1393 = vadd.f32 %v1278, %v1389
    %1394 = vadd.xlane.f32.xlu0 %v1392
    %v1395 = vpop.xlane.xlu0 %1394
    %1396 = vadd.xlane.f32.xlu0 %v1393
    %v1397 = vpop.xlane.xlu0 %1396
    %v1398 = vmul.f32 %v1395, %v720
    %v1399 = vmul.f32 %v1397, %v720
    %v1400 = vmul.f32 %v1392, %v1392
    %v1401 = vmul.f32 %v1393, %v1393
    %1402 = vadd.xlane.f32.xlu0 %v1400
    %v1403 = vpop.xlane.xlu0 %1402
    %1404 = vadd.xlane.f32.xlu0 %v1401
    %v1405 = vpop.xlane.xlu0 %1404
    %v1406 = vmul.f32 %v1403, %v720
    %v1407 = vmul.f32 %v1405, %v720
    %v1408 = vmul.f32 %v1398, %v1398
    %v1409 = vmul.f32 %v1399, %v1399
    %v1410 = vsub.f32 %v1406, %v1408
    %v1411 = vsub.f32 %v1407, %v1409
    %v1412 = vsub.f32 %v1392, %v1398
    %v1413 = vsub.f32 %v1393, %v1399
    %v1414 = vadd.f32 %v1410, 1e-05
    %v1415 = vadd.f32 %v1411, 1e-05
    %v1416 = vrsqrt.pop %v1414
    %v1417 = vrsqrt.pop %v1415
    %v1418 = vmul.f32 %v1412, %v1416
    %v1419 = vmul.f32 %v1413, %v1417
    %v1420 = vlaneseq
    %v1421 = vshrl.u32 %v1420, 7
    %v1422 = vsub.s32 1, %v1421
    %v1423 = vrot.slane %v1280, %v1422
    %v1424 = vmul.f32 %v1418, %v1423
    %v1425 = vmul.f32 %v1419, %v1423
    %v1426 = vlaneseq
    %v1427 = vshrl.u32 %v1426, 7
    %v1428 = vsub.s32 2, %v1427
    %v1429 = vrot.slane %v1280, %v1428
    %v1430 = vadd.f32 %v1424, %v1429
    %v1431 = vadd.f32 %v1425, %v1429
    %s1432 = scalar_lea.vmem [#allocation13], 128
    %v1433 = vld [vmem:[%s1432] sm:$0xff]
    %v1434 = vld [vmem:[%s1432 + $0x8] sm:$0xff]
    %v1435 = vld [vmem:[%s1432 + $0x10] sm:$0xff]
    %v1436 = vld [vmem:[%s1432 + $0x18] sm:$0xff]
    %v1437 = vld [vmem:[%s1432 + $0x20] sm:$0xff]
    %v1438 = vld [vmem:[%s1432 + $0x28] sm:$0xff]
    %v1439 = vld [vmem:[%s1432 + $0x30] sm:$0xff]
    %v1440 = vld [vmem:[%s1432 + $0x38] sm:$0xff]
    %v1441 = vld [vmem:[%s1432 + $0x40] sm:$0xff]
    %v1442 = vld [vmem:[%s1432 + $0x48] sm:$0xff]
    %v1443 = vld [vmem:[%s1432 + $0x50] sm:$0xff]
    %v1444 = vld [vmem:[%s1432 + $0x58] sm:$0xff]
    %v1445 = vld [vmem:[%s1432 + $0x60] sm:$0xff]
    %v1446 = vld [vmem:[%s1432 + $0x68] sm:$0xff]
    %v1447 = vld [vmem:[%s1432 + $0x70] sm:$0xff]
    %v1448 = vld [vmem:[%s1432 + $0x78] sm:$0xff]
    %s1449 = scalar_lea.vmem [#allocation16], 2
    %v1450 = vld [vmem:[%s1449] sm:$0x3]
    %v1451 = vpack.c.bf16 %v1431, %v1430
    %v1453 = vlaneseq
    %v1454 = vshrl.u32 %v1453, 7
    %v1455 = vsub.s32 0, %v1454
    %v1456 = vrot.slane %v1450, %v1455
    %v1457 = vlaneseq
    %v1458 = vshrl.u32 %v1457, 7
    %v1459 = vsub.s32 1, %v1458
    %v1460 = vrot.slane %v1450, %v1459
    %v1479 = vunpack.c.l.b16 %v1433
    %v1480 = vunpack.c.h.b16 %v1433
    %v1481 = vunpack.c.l.b16 %v1434
    %v1482 = vunpack.c.h.b16 %v1434
    %v1483 = vunpack.c.l.b16 %v1435
    %v1484 = vunpack.c.h.b16 %v1435
    %v1485 = vunpack.c.l.b16 %v1436
    %v1486 = vunpack.c.h.b16 %v1436
    %v1487 = vunpack.c.l.b16 %v1437
    %v1488 = vunpack.c.h.b16 %v1437
    %v1489 = vunpack.c.l.b16 %v1438
    %v1490 = vunpack.c.h.b16 %v1438
    %v1491 = vunpack.c.l.b16 %v1439
    %v1492 = vunpack.c.h.b16 %v1439
    %v1493 = vunpack.c.l.b16 %v1440
    %v1494 = vunpack.c.h.b16 %v1440
    %v1495 = vunpack.c.l.b16 %v1441
    %v1496 = vunpack.c.h.b16 %v1441
    %v1497 = vunpack.c.l.b16 %v1442
    %v1498 = vunpack.c.h.b16 %v1442
    %v1499 = vunpack.c.l.b16 %v1443
    %v1500 = vunpack.c.h.b16 %v1443
    %v1501 = vunpack.c.l.b16 %v1444
    %v1502 = vunpack.c.h.b16 %v1444
    %v1503 = vunpack.c.l.b16 %v1445
    %v1504 = vunpack.c.h.b16 %v1445
    %v1505 = vunpack.c.l.b16 %v1446
    %v1506 = vunpack.c.h.b16 %v1446
    %v1507 = vunpack.c.l.b16 %v1447
    %v1508 = vunpack.c.h.b16 %v1447
    %v1509 = vunpack.c.l.b16 %v1448
    %v1510 = vunpack.c.h.b16 %v1448
    %v1511 = vpack.c.b16 %v1481, %v1479
    %v1512 = vpack.c.b16 %v1482, %v1480
    %v1513 = vpack.c.b16 %v1485, %v1483
    %v1514 = vpack.c.b16 %v1486, %v1484
    %v1515 = vpack.c.b16 %v1489, %v1487
    %v1516 = vpack.c.b16 %v1490, %v1488
    %v1517 = vpack.c.b16 %v1493, %v1491
    %v1518 = vpack.c.b16 %v1494, %v1492
    %v1519 = vpack.c.b16 %v1497, %v1495
    %v1520 = vpack.c.b16 %v1498, %v1496
    %v1521 = vpack.c.b16 %v1501, %v1499
    %v1522 = vpack.c.b16 %v1502, %v1500
    %v1523 = vpack.c.b16 %v1505, %v1503
    %v1524 = vpack.c.b16 %v1506, %v1504
    %v1525 = vpack.c.b16 %v1509, %v1507
    %v1526 = vpack.c.b16 %v1510, %v1508
    %1543 = vmatprep.subr.bf16.mxu0 %v1512
    %1544 = vmatpush1.bf16.msra.mxu0 %v1511
    %1545 = vmatprep.subr.bf16.mxu0 %v1514
    %1546 = vmatpush1.bf16.msra.mxu0 %v1513
    %1547 = vmatprep.subr.bf16.mxu0 %v1516
    %1548 = vmatpush1.bf16.msra.mxu0 %v1515
    %1549 = vmatprep.subr.bf16.mxu0 %v1518
    %1550 = vmatpush1.bf16.msra.mxu0 %v1517
    %1551 = vmatprep.subr.bf16.mxu0 %v1520
    %1552 = vmatpush1.bf16.msra.mxu0 %v1519
    %1553 = vmatprep.subr.bf16.mxu0 %v1522
    %1554 = vmatpush1.bf16.msra.mxu0 %v1521
    %1555 = vmatprep.subr.bf16.mxu0 %v1524
    %1556 = vmatpush1.bf16.msra.mxu0 %v1523
    %1557 = vmatprep.subr.bf16.mxu0 %v1526
    %1558 = vmatpush1.bf16.msra.mxu0 %v1525
    %1559 = vmatprep.subr.bf16.mxu0 0
    %1560 = vmatpush1.bf16.msra.mxu0 0
    %1561 = vmatprep.subr.bf16.mxu0 0
    %1562 = vmatpush1.bf16.msra.mxu0 0
    %1563 = vmatprep.subr.bf16.mxu0 0
    %1564 = vmatpush1.bf16.msra.mxu0 0
    %1565 = vmatprep.subr.bf16.mxu0 0
    %1566 = vmatpush1.bf16.msra.mxu0 0
    %1567 = vmatprep.subr.bf16.mxu0 0
    %1568 = vmatpush1.bf16.msra.mxu0 0
    %1569 = vmatprep.subr.bf16.mxu0 0
    %1570 = vmatpush1.bf16.msra.mxu0 0
    %1571 = vmatprep.subr.bf16.mxu0 0
    %1572 = vmatpush1.bf16.msra.mxu0 0
    %1573 = vmatprep.subr.bf16.mxu0 0
    %1574 = vmatpush1.bf16.msra.mxu0 0
    %1575 = vmatprep.mubr.bf16.mxu0 0
    %1576 = vmatmul.mubr.bf16.gmra.mrb[0].mxu0 %v1451
    %v1577 = vpop.f32.mrb[0].mxu0
    %v1578 = vadd.f32 %v1456, %v1577
    %v1579 = vpop.f32.mrb[0].mxu0
    %v1580 = vadd.f32 %v1460, %v1579
    %v1581 = vpop.f32.mrb[0].mxu0
    %v1582 = vadd.f32 %v1456, %v1581
    %v1583 = vpop.f32.mrb[0].mxu0
    %v1584 = vadd.f32 %v1460, %v1583
    %1585 = vdwg.mxu0
    %v1586 = vmax.f32 %v1578, 0.0
    %v1587 = vmax.f32 %v1580, 0.0
    %v1588 = vmax.f32 %v1582, 0.0
    %v1589 = vmax.f32 %v1584, 0.0
    %s1590 = scalar_lea.vmem [#allocation14], 128
    %v1591 = vld [vmem:[%s1590] sm:$0xf]
    %v1592 = vld [vmem:[%s1590 + $0x4] sm:$0xf]
    %v1593 = vld [vmem:[%s1590 + $0x8] sm:$0xf]
    %v1594 = vld [vmem:[%s1590 + $0xc] sm:$0xf]
    %v1595 = vld [vmem:[%s1590 + $0x10] sm:$0xf]
    %v1596 = vld [vmem:[%s1590 + $0x14] sm:$0xf]
    %v1597 = vld [vmem:[%s1590 + $0x18] sm:$0xf]
    %v1598 = vld [vmem:[%s1590 + $0x1c] sm:$0xf]
    %v1599 = vld [vmem:[%s1590 + $0x20] sm:$0xf]
    %v1600 = vld [vmem:[%s1590 + $0x24] sm:$0xf]
    %v1601 = vld [vmem:[%s1590 + $0x28] sm:$0xf]
    %v1602 = vld [vmem:[%s1590 + $0x2c] sm:$0xf]
    %v1603 = vld [vmem:[%s1590 + $0x30] sm:$0xf]
    %v1604 = vld [vmem:[%s1590 + $0x34] sm:$0xf]
    %v1605 = vld [vmem:[%s1590 + $0x38] sm:$0xf]
    %v1606 = vld [vmem:[%s1590 + $0x3c] sm:$0xf]
    %v1607 = vld [vmem:[%s1590 + $0x40] sm:$0xf]
    %v1608 = vld [vmem:[%s1590 + $0x44] sm:$0xf]
    %v1609 = vld [vmem:[%s1590 + $0x48] sm:$0xf]
    %v1610 = vld [vmem:[%s1590 + $0x4c] sm:$0xf]
    %v1611 = vld [vmem:[%s1590 + $0x50] sm:$0xf]
    %v1612 = vld [vmem:[%s1590 + $0x54] sm:$0xf]
    %v1613 = vld [vmem:[%s1590 + $0x58] sm:$0xf]
    %v1614 = vld [vmem:[%s1590 + $0x5c] sm:$0xf]
    %v1615 = vld [vmem:[%s1590 + $0x60] sm:$0xf]
    %v1616 = vld [vmem:[%s1590 + $0x64] sm:$0xf]
    %v1617 = vld [vmem:[%s1590 + $0x68] sm:$0xf]
    %v1618 = vld [vmem:[%s1590 + $0x6c] sm:$0xf]
    %v1619 = vld [vmem:[%s1590 + $0x70] sm:$0xf]
    %v1620 = vld [vmem:[%s1590 + $0x74] sm:$0xf]
    %v1621 = vld [vmem:[%s1590 + $0x78] sm:$0xf]
    %v1622 = vld [vmem:[%s1590 + $0x7c] sm:$0xf]
    %v1623 = vpack.c.bf16 %v1588, %v1586
    %v1624 = vpack.c.bf16 %v1589, %v1587
    %v1625 = vlaneseq
    %v1626 = vshrl.u32 %v1625, 7
    %v1627 = vsub.s32 3, %v1626
    %v1628 = vrot.slane %v1280, %v1627
    %v1661 = vunpack.c.l.b16 %v1591
    %v1662 = vunpack.c.l.b16 %v1592
    %v1663 = vunpack.c.l.b16 %v1593
    %v1664 = vunpack.c.l.b16 %v1594
    %v1665 = vunpack.c.l.b16 %v1595
    %v1666 = vunpack.c.l.b16 %v1596
    %v1667 = vunpack.c.l.b16 %v1597
    %v1668 = vunpack.c.l.b16 %v1598
    %v1669 = vunpack.c.l.b16 %v1599
    %v1670 = vunpack.c.l.b16 %v1600
    %v1671 = vunpack.c.l.b16 %v1601
    %v1672 = vunpack.c.l.b16 %v1602
    %v1673 = vunpack.c.l.b16 %v1603
    %v1674 = vunpack.c.l.b16 %v1604
    %v1675 = vunpack.c.l.b16 %v1605
    %v1676 = vunpack.c.l.b16 %v1606
    %v1677 = vunpack.c.l.b16 %v1607
    %v1678 = vunpack.c.l.b16 %v1608
    %v1679 = vunpack.c.l.b16 %v1609
    %v1680 = vunpack.c.l.b16 %v1610
    %v1681 = vunpack.c.l.b16 %v1611
    %v1682 = vunpack.c.l.b16 %v1612
    %v1683 = vunpack.c.l.b16 %v1613
    %v1684 = vunpack.c.l.b16 %v1614
    %v1685 = vunpack.c.l.b16 %v1615
    %v1686 = vunpack.c.l.b16 %v1616
    %v1687 = vunpack.c.l.b16 %v1617
    %v1688 = vunpack.c.l.b16 %v1618
    %v1689 = vunpack.c.l.b16 %v1619
    %v1690 = vunpack.c.l.b16 %v1620
    %v1691 = vunpack.c.l.b16 %v1621
    %v1692 = vunpack.c.l.b16 %v1622
    %v1693 = vpack.c.b16 %v1662, %v1661
    %v1694 = vpack.c.b16 %v1664, %v1663
    %v1695 = vpack.c.b16 %v1666, %v1665
    %v1696 = vpack.c.b16 %v1668, %v1667
    %v1697 = vpack.c.b16 %v1670, %v1669
    %v1698 = vpack.c.b16 %v1672, %v1671
    %v1699 = vpack.c.b16 %v1674, %v1673
    %v1700 = vpack.c.b16 %v1676, %v1675
    %v1701 = vpack.c.b16 %v1678, %v1677
    %v1702 = vpack.c.b16 %v1680, %v1679
    %v1703 = vpack.c.b16 %v1682, %v1681
    %v1704 = vpack.c.b16 %v1684, %v1683
    %v1705 = vpack.c.b16 %v1686, %v1685
    %v1706 = vpack.c.b16 %v1688, %v1687
    %v1707 = vpack.c.b16 %v1690, %v1689
    %v1708 = vpack.c.b16 %v1692, %v1691
    %1725 = vmatprep.subr.bf16.mxu0 0
    %1726 = vmatpush1.bf16.msra.mxu0 %v1693
    %1727 = vmatprep.subr.bf16.mxu0 0
    %1728 = vmatpush1.bf16.msra.mxu0 %v1694
    %1729 = vmatprep.subr.bf16.mxu0 0
    %1730 = vmatpush1.bf16.msra.mxu0 %v1695
    %1731 = vmatprep.subr.bf16.mxu0 0
    %1732 = vmatpush1.bf16.msra.mxu0 %v1696
    %1733 = vmatprep.subr.bf16.mxu0 0
    %1734 = vmatpush1.bf16.msra.mxu0 %v1697
    %1735 = vmatprep.subr.bf16.mxu0 0
    %1736 = vmatpush1.bf16.msra.mxu0 %v1698
    %1737 = vmatprep.subr.bf16.mxu0 0
    %1738 = vmatpush1.bf16.msra.mxu0 %v1699
    %1739 = vmatprep.subr.bf16.mxu0 0
    %1740 = vmatpush1.bf16.msra.mxu0 %v1700
    %1741 = vmatprep.subr.bf16.mxu0 0
    %1742 = vmatpush1.bf16.msra.mxu0 %v1701
    %1743 = vmatprep.subr.bf16.mxu0 0
    %1744 = vmatpush1.bf16.msra.mxu0 %v1702
    %1745 = vmatprep.subr.bf16.mxu0 0
    %1746 = vmatpush1.bf16.msra.mxu0 %v1703
    %1747 = vmatprep.subr.bf16.mxu0 0
    %1748 = vmatpush1.bf16.msra.mxu0 %v1704
    %1749 = vmatprep.subr.bf16.mxu0 0
    %1750 = vmatpush1.bf16.msra.mxu0 %v1705
    %1751 = vmatprep.subr.bf16.mxu0 0
    %1752 = vmatpush1.bf16.msra.mxu0 %v1706
    %1753 = vmatprep.subr.bf16.mxu0 0
    %1754 = vmatpush1.bf16.msra.mxu0 %v1707
    %1755 = vmatprep.subr.bf16.mxu0 0
    %1756 = vmatpush1.bf16.msra.mxu0 %v1708
    %1757 = vmatprep.mubr.bf16.mxu0 %v1624
    %1758 = vmatmul.mubr.bf16.gmra.mrb[0].mxu0 %v1623
    %v1759 = vpop.f32.mrb[0].mxu0
    %v1760 = vadd.f32 %v1628, %v1759
    %v1761 = vpop.f32.mrb[0].mxu0
    %v1762 = vpop.f32.mrb[0].mxu0
    %v1763 = vadd.f32 %v1628, %v1762
    %v1764 = vpop.f32.mrb[0].mxu0
    %1765 = vdwg.mxu0
    %v1766 = vadd.f32 %v1430, %v1760
    %v1767 = vadd.f32 %v1431, %v1763
    %1768 = vadd.xlane.f32.xlu0 %v1766
    %v1769 = vpop.xlane.xlu0 %1768
    %1770 = vadd.xlane.f32.xlu0 %v1767
    %v1771 = vpop.xlane.xlu0 %1770
    %v1772 = vmul.f32 %v1769, %v720
    %v1773 = vmul.f32 %v1771, %v720
    %v1774 = vmul.f32 %v1766, %v1766
    %v1775 = vmul.f32 %v1767, %v1767
    %1776 = vadd.xlane.f32.xlu0 %v1774
    %v1777 = vpop.xlane.xlu0 %1776
    %1778 = vadd.xlane.f32.xlu0 %v1775
    %v1779 = vpop.xlane.xlu0 %1778
    %v1780 = vmul.f32 %v1777, %v720
    %v1781 = vmul.f32 %v1779, %v720
    %v1782 = vmul.f32 %v1772, %v1772
    %v1783 = vmul.f32 %v1773, %v1773
    %v1784 = vsub.f32 %v1780, %v1782
    %v1785 = vsub.f32 %v1781, %v1783
    %v1786 = vsub.f32 %v1766, %v1772
    %v1787 = vsub.f32 %v1767, %v1773
    %v1788 = vadd.f32 %v1784, 1e-05
    %v1789 = vadd.f32 %v1785, 1e-05
    %v1790 = vrsqrt.pop %v1788
    %v1791 = vrsqrt.pop %v1789
    %v1792 = vmul.f32 %v1786, %v1790
    %v1793 = vmul.f32 %v1787, %v1791
    %v1794 = vlaneseq
    %v1795 = vshrl.u32 %v1794, 7
    %v1796 = vsub.s32 4, %v1795
    %v1797 = vrot.slane %v1280, %v1796
    %v1798 = vmul.f32 %v1792, %v1797
    %v1799 = vmul.f32 %v1793, %v1797
    %v1800 = vlaneseq
    %v1801 = vshrl.u32 %v1800, 7
    %v1802 = vsub.s32 5, %v1801
    %v1803 = vrot.slane %v1280, %v1802
    %v1804 = vadd.f32 %v1798, %v1803
    %v1805 = vadd.f32 %v1799, %v1803
    %s1806 = scalar_lea.vmem %s8, 16
    %v1807 = vld [vmem:[%s1806] sm:$0x3f]
    %s1808 = scalar_lea.vmem [#allocation11], 128
    %v1809 = vld [vmem:[%s1808] sm:$0xf]
    %v1810 = vld [vmem:[%s1808 + $0x4] sm:$0xf]
    %v1811 = vld [vmem:[%s1808 + $0x8] sm:$0xf]
    %v1812 = vld [vmem:[%s1808 + $0xc] sm:$0xf]
    %v1813 = vld [vmem:[%s1808 + $0x10] sm:$0xf]
    %v1814 = vld [vmem:[%s1808 + $0x14] sm:$0xf]
    %v1815 = vld [vmem:[%s1808 + $0x18] sm:$0xf]
    %v1816 = vld [vmem:[%s1808 + $0x1c] sm:$0xf]
    %v1817 = vld [vmem:[%s1808 + $0x20] sm:$0xf]
    %v1818 = vld [vmem:[%s1808 + $0x24] sm:$0xf]
    %v1819 = vld [vmem:[%s1808 + $0x28] sm:$0xf]
    %v1820 = vld [vmem:[%s1808 + $0x2c] sm:$0xf]
    %v1821 = vld [vmem:[%s1808 + $0x30] sm:$0xf]
    %v1822 = vld [vmem:[%s1808 + $0x34] sm:$0xf]
    %v1823 = vld [vmem:[%s1808 + $0x38] sm:$0xf]
    %v1824 = vld [vmem:[%s1808 + $0x3c] sm:$0xf]
    %v1825 = vpack.c.bf16 %v1805, %v1804
    %v1826 = vlaneseq
    %v1827 = vshrl.u32 %v1826, 7
    %v1828 = vsub.s32 0, %v1827
    %v1829 = vrot.slane %v1807, %v1828
    %v1846 = vunpack.c.l.b16 %v1809
    %v1847 = vunpack.c.l.b16 %v1810
    %v1848 = vunpack.c.l.b16 %v1811
    %v1849 = vunpack.c.l.b16 %v1812
    %v1850 = vunpack.c.l.b16 %v1813
    %v1851 = vunpack.c.l.b16 %v1814
    %v1852 = vunpack.c.l.b16 %v1815
    %v1853 = vunpack.c.l.b16 %v1816
    %v1854 = vunpack.c.l.b16 %v1817
    %v1855 = vunpack.c.l.b16 %v1818
    %v1856 = vunpack.c.l.b16 %v1819
    %v1857 = vunpack.c.l.b16 %v1820
    %v1858 = vunpack.c.l.b16 %v1821
    %v1859 = vunpack.c.l.b16 %v1822
    %v1860 = vunpack.c.l.b16 %v1823
    %v1861 = vunpack.c.l.b16 %v1824
    %v1862 = vpack.c.b16 %v1847, %v1846
    %v1863 = vpack.c.b16 %v1849, %v1848
    %v1864 = vpack.c.b16 %v1851, %v1850
    %v1865 = vpack.c.b16 %v1853, %v1852
    %v1866 = vpack.c.b16 %v1855, %v1854
    %v1867 = vpack.c.b16 %v1857, %v1856
    %v1868 = vpack.c.b16 %v1859, %v1858
    %v1869 = vpack.c.b16 %v1861, %v1860
    %1878 = vmatprep.subr.bf16.mxu0 0
    %1879 = vmatpush1.bf16.msra.mxu0 %v1862
    %1880 = vmatprep.subr.bf16.mxu0 0
    %1881 = vmatpush1.bf16.msra.mxu0 %v1863
    %1882 = vmatprep.subr.bf16.mxu0 0
    %1883 = vmatpush1.bf16.msra.mxu0 %v1864
    %1884 = vmatprep.subr.bf16.mxu0 0
    %1885 = vmatpush1.bf16.msra.mxu0 %v1865
    %1886 = vmatprep.subr.bf16.mxu0 0
    %1887 = vmatpush1.bf16.msra.mxu0 %v1866
    %1888 = vmatprep.subr.bf16.mxu0 0
    %1889 = vmatpush1.bf16.msra.mxu0 %v1867
    %1890 = vmatprep.subr.bf16.mxu0 0
    %1891 = vmatpush1.bf16.msra.mxu0 %v1868
    %1892 = vmatprep.subr.bf16.mxu0 0
    %1893 = vmatpush1.bf16.msra.mxu0 %v1869
    %1894 = vmatprep.subr.bf16.mxu0 0
    %1895 = vmatpush1.bf16.msra.mxu0 0
    %1896 = vmatprep.subr.bf16.mxu0 0
    %1897 = vmatpush1.bf16.msra.mxu0 0
    %1898 = vmatprep.subr.bf16.mxu0 0
    %1899 = vmatpush1.bf16.msra.mxu0 0
    %1900 = vmatprep.subr.bf16.mxu0 0
    %1901 = vmatpush1.bf16.msra.mxu0 0
    %1902 = vmatprep.subr.bf16.mxu0 0
    %1903 = vmatpush1.bf16.msra.mxu0 0
    %1904 = vmatprep.subr.bf16.mxu0 0
    %1905 = vmatpush1.bf16.msra.mxu0 0
    %1906 = vmatprep.subr.bf16.mxu0 0
    %1907 = vmatpush1.bf16.msra.mxu0 0
    %1908 = vmatprep.subr.bf16.mxu0 0
    %1909 = vmatpush1.bf16.msra.mxu0 0
    %1910 = vmatprep.mubr.bf16.mxu0 0
    %1911 = vmatmul.mubr.bf16.gmra.mrb[0].mxu0 %v1825
    %v1912 = vpop.f32.mrb[0].mxu0
    %v1913 = vadd.f32 %v1829, %v1912
    %v1914 = vpop.f32.mrb[0].mxu0
    %v1915 = vpop.f32.mrb[0].mxu0
    %v1916 = vadd.f32 %v1829, %v1915
    %v1917 = vpop.f32.mrb[0].mxu0
    %1918 = vdwg.mxu0
    %v1919 = vadd.f32 %v1804, %v1913
    %v1920 = vadd.f32 %v1805, %v1916
    %1921 = vadd.xlane.f32.xlu0 %v1919
    %v1922 = vpop.xlane.xlu0 %1921
    %1923 = vadd.xlane.f32.xlu0 %v1920
    %v1924 = vpop.xlane.xlu0 %1923
    %v1925 = vmul.f32 %v1922, %v720
    %v1926 = vmul.f32 %v1924, %v720
    %v1927 = vmul.f32 %v1919, %v1919
    %v1928 = vmul.f32 %v1920, %v1920
    %1929 = vadd.xlane.f32.xlu0 %v1927
    %v1930 = vpop.xlane.xlu0 %1929
    %1931 = vadd.xlane.f32.xlu0 %v1928
    %v1932 = vpop.xlane.xlu0 %1931
    %v1933 = vmul.f32 %v1930, %v720
    %v1934 = vmul.f32 %v1932, %v720
    %v1935 = vmul.f32 %v1925, %v1925
    %v1936 = vmul.f32 %v1926, %v1926
    %v1937 = vsub.f32 %v1933, %v1935
    %v1938 = vsub.f32 %v1934, %v1936
    %v1939 = vsub.f32 %v1919, %v1925
    %v1940 = vsub.f32 %v1920, %v1926
    %v1941 = vadd.f32 %v1937, 1e-05
    %v1942 = vadd.f32 %v1938, 1e-05
    %v1943 = vrsqrt.pop %v1941
    %v1944 = vrsqrt.pop %v1942
    %v1945 = vmul.f32 %v1939, %v1943
    %v1946 = vmul.f32 %v1940, %v1944
    %v1947 = vlaneseq
    %v1948 = vshrl.u32 %v1947, 7
    %v1949 = vsub.s32 1, %v1948
    %v1950 = vrot.slane %v1807, %v1949
    %v1951 = vmul.f32 %v1945, %v1950
    %v1952 = vmul.f32 %v1946, %v1950
    %v1953 = vlaneseq
    %v1954 = vshrl.u32 %v1953, 7
    %v1955 = vsub.s32 2, %v1954
    %v1956 = vrot.slane %v1807, %v1955
    %v1957 = vadd.f32 %v1951, %v1956
    %v1958 = vadd.f32 %v1952, %v1956
    %s1959 = scalar_lea.vmem [#allocation13], 256
    %v1960 = vld [vmem:[%s1959] sm:$0xff]
    %v1961 = vld [vmem:[%s1959 + $0x8] sm:$0xff]
    %v1962 = vld [vmem:[%s1959 + $0x10] sm:$0xff]
    %v1963 = vld [vmem:[%s1959 + $0x18] sm:$0xff]
    %v1964 = vld [vmem:[%s1959 + $0x20] sm:$0xff]
    %v1965 = vld [vmem:[%s1959 + $0x28] sm:$0xff]
    %v1966 = vld [vmem:[%s1959 + $0x30] sm:$0xff]
    %v1967 = vld [vmem:[%s1959 + $0x38] sm:$0xff]
    %v1968 = vld [vmem:[%s1959 + $0x40] sm:$0xff]
    %v1969 = vld [vmem:[%s1959 + $0x48] sm:$0xff]
    %v1970 = vld [vmem:[%s1959 + $0x50] sm:$0xff]
    %v1971 = vld [vmem:[%s1959 + $0x58] sm:$0xff]
    %v1972 = vld [vmem:[%s1959 + $0x60] sm:$0xff]
    %v1973 = vld [vmem:[%s1959 + $0x68] sm:$0xff]
    %v1974 = vld [vmem:[%s1959 + $0x70] sm:$0xff]
    %v1975 = vld [vmem:[%s1959 + $0x78] sm:$0xff]
    %s1976 = scalar_lea.vmem [#allocation16], 4
    %v1977 = vld [vmem:[%s1976] sm:$0x3]
    %v1978 = vpack.c.bf16 %v1958, %v1957
    %v1980 = vlaneseq
    %v1981 = vshrl.u32 %v1980, 7
    %v1982 = vsub.s32 0, %v1981
    %v1983 = vrot.slane %v1977, %v1982
    %v1984 = vlaneseq
    %v1985 = vshrl.u32 %v1984, 7
    %v1986 = vsub.s32 1, %v1985
    %v1987 = vrot.slane %v1977, %v1986
    %v2006 = vunpack.c.l.b16 %v1960
    %v2007 = vunpack.c.h.b16 %v1960
    %v2008 = vunpack.c.l.b16 %v1961
    %v2009 = vunpack.c.h.b16 %v1961
    %v2010 = vunpack.c.l.b16 %v1962
    %v2011 = vunpack.c.h.b16 %v1962
    %v2012 = vunpack.c.l.b16 %v1963
    %v2013 = vunpack.c.h.b16 %v1963
    %v2014 = vunpack.c.l.b16 %v1964
    %v2015 = vunpack.c.h.b16 %v1964
    %v2016 = vunpack.c.l.b16 %v1965
    %v2017 = vunpack.c.h.b16 %v1965
    %v2018 = vunpack.c.l.b16 %v1966
    %v2019 = vunpack.c.h.b16 %v1966
    %v2020 = vunpack.c.l.b16 %v1967
    %v2021 = vunpack.c.h.b16 %v1967
    %v2022 = vunpack.c.l.b16 %v1968
    %v2023 = vunpack.c.h.b16 %v1968
    %v2024 = vunpack.c.l.b16 %v1969
    %v2025 = vunpack.c.h.b16 %v1969
    %v2026 = vunpack.c.l.b16 %v1970
    %v2027 = vunpack.c.h.b16 %v1970
    %v2028 = vunpack.c.l.b16 %v1971
    %v2029 = vunpack.c.h.b16 %v1971
    %v2030 = vunpack.c.l.b16 %v1972
    %v2031 = vunpack.c.h.b16 %v1972
    %v2032 = vunpack.c.l.b16 %v1973
    %v2033 = vunpack.c.h.b16 %v1973
    %v2034 = vunpack.c.l.b16 %v1974
    %v2035 = vunpack.c.h.b16 %v1974
    %v2036 = vunpack.c.l.b16 %v1975
    %v2037 = vunpack.c.h.b16 %v1975
    %v2038 = vpack.c.b16 %v2008, %v2006
    %v2039 = vpack.c.b16 %v2009, %v2007
    %v2040 = vpack.c.b16 %v2012, %v2010
    %v2041 = vpack.c.b16 %v2013, %v2011
    %v2042 = vpack.c.b16 %v2016, %v2014
    %v2043 = vpack.c.b16 %v2017, %v2015
    %v2044 = vpack.c.b16 %v2020, %v2018
    %v2045 = vpack.c.b16 %v2021, %v2019
    %v2046 = vpack.c.b16 %v2024, %v2022
    %v2047 = vpack.c.b16 %v2025, %v2023
    %v2048 = vpack.c.b16 %v2028, %v2026
    %v2049 = vpack.c.b16 %v2029, %v2027
    %v2050 = vpack.c.b16 %v2032, %v2030
    %v2051 = vpack.c.b16 %v2033, %v2031
    %v2052 = vpack.c.b16 %v2036, %v2034
    %v2053 = vpack.c.b16 %v2037, %v2035
    %2070 = vmatprep.subr.bf16.mxu0 %v2039
    %2071 = vmatpush1.bf16.msra.mxu0 %v2038
    %2072 = vmatprep.subr.bf16.mxu0 %v2041
    %2073 = vmatpush1.bf16.msra.mxu0 %v2040
    %2074 = vmatprep.subr.bf16.mxu0 %v2043
    %2075 = vmatpush1.bf16.msra.mxu0 %v2042
    %2076 = vmatprep.subr.bf16.mxu0 %v2045
    %2077 = vmatpush1.bf16.msra.mxu0 %v2044
    %2078 = vmatprep.subr.bf16.mxu0 %v2047
    %2079 = vmatpush1.bf16.msra.mxu0 %v2046
    %2080 = vmatprep.subr.bf16.mxu0 %v2049
    %2081 = vmatpush1.bf16.msra.mxu0 %v2048
    %2082 = vmatprep.subr.bf16.mxu0 %v2051
    %2083 = vmatpush1.bf16.msra.mxu0 %v2050
    %2084 = vmatprep.subr.bf16.mxu0 %v2053
    %2085 = vmatpush1.bf16.msra.mxu0 %v2052
    %2086 = vmatprep.subr.bf16.mxu0 0
    %2087 = vmatpush1.bf16.msra.mxu0 0
    %2088 = vmatprep.subr.bf16.mxu0 0
    %2089 = vmatpush1.bf16.msra.mxu0 0
    %2090 = vmatprep.subr.bf16.mxu0 0
    %2091 = vmatpush1.bf16.msra.mxu0 0
    %2092 = vmatprep.subr.bf16.mxu0 0
    %2093 = vmatpush1.bf16.msra.mxu0 0
    %2094 = vmatprep.subr.bf16.mxu0 0
    %2095 = vmatpush1.bf16.msra.mxu0 0
    %2096 = vmatprep.subr.bf16.mxu0 0
    %2097 = vmatpush1.bf16.msra.mxu0 0
    %2098 = vmatprep.subr.bf16.mxu0 0
    %2099 = vmatpush1.bf16.msra.mxu0 0
    %2100 = vmatprep.subr.bf16.mxu0 0
    %2101 = vmatpush1.bf16.msra.mxu0 0
    %2102 = vmatprep.mubr.bf16.mxu0 0
    %2103 = vmatmul.mubr.bf16.gmra.mrb[0].mxu0 %v1978
    %v2104 = vpop.f32.mrb[0].mxu0
    %v2105 = vadd.f32 %v1983, %v2104
    %v2106 = vpop.f32.mrb[0].mxu0
    %v2107 = vadd.f32 %v1987, %v2106
    %v2108 = vpop.f32.mrb[0].mxu0
    %v2109 = vadd.f32 %v1983, %v2108
    %v2110 = vpop.f32.mrb[0].mxu0
    %v2111 = vadd.f32 %v1987, %v2110
    %2112 = vdwg.mxu0
    %v2113 = vmax.f32 %v2105, 0.0
    %v2114 = vmax.f32 %v2107, 0.0
    %v2115 = vmax.f32 %v2109, 0.0
    %v2116 = vmax.f32 %v2111, 0.0
    %s2117 = scalar_lea.vmem [#allocation14], 256
    %v2118 = vld [vmem:[%s2117] sm:$0xf]
    %v2119 = vld [vmem:[%s2117 + $0x4] sm:$0xf]
    %v2120 = vld [vmem:[%s2117 + $0x8] sm:$0xf]
    %v2121 = vld [vmem:[%s2117 + $0xc] sm:$0xf]
    %v2122 = vld [vmem:[%s2117 + $0x10] sm:$0xf]
    %v2123 = vld [vmem:[%s2117 + $0x14] sm:$0xf]
    %v2124 = vld [vmem:[%s2117 + $0x18] sm:$0xf]
    %v2125 = vld [vmem:[%s2117 + $0x1c] sm:$0xf]
    %v2126 = vld [vmem:[%s2117 + $0x20] sm:$0xf]
    %v2127 = vld [vmem:[%s2117 + $0x24] sm:$0xf]
    %v2128 = vld [vmem:[%s2117 + $0x28] sm:$0xf]
    %v2129 = vld [vmem:[%s2117 + $0x2c] sm:$0xf]
    %v2130 = vld [vmem:[%s2117 + $0x30] sm:$0xf]
    %v2131 = vld [vmem:[%s2117 + $0x34] sm:$0xf]
    %v2132 = vld [vmem:[%s2117 + $0x38] sm:$0xf]
    %v2133 = vld [vmem:[%s2117 + $0x3c] sm:$0xf]
    %v2134 = vld [vmem:[%s2117 + $0x40] sm:$0xf]
    %v2135 = vld [vmem:[%s2117 + $0x44] sm:$0xf]
    %v2136 = vld [vmem:[%s2117 + $0x48] sm:$0xf]
    %v2137 = vld [vmem:[%s2117 + $0x4c] sm:$0xf]
    %v2138 = vld [vmem:[%s2117 + $0x50] sm:$0xf]
    %v2139 = vld [vmem:[%s2117 + $0x54] sm:$0xf]
    %v2140 = vld [vmem:[%s2117 + $0x58] sm:$0xf]
    %v2141 = vld [vmem:[%s2117 + $0x5c] sm:$0xf]
    %v2142 = vld [vmem:[%s2117 + $0x60] sm:$0xf]
    %v2143 = vld [vmem:[%s2117 + $0x64] sm:$0xf]
    %v2144 = vld [vmem:[%s2117 + $0x68] sm:$0xf]
    %v2145 = vld [vmem:[%s2117 + $0x6c] sm:$0xf]
    %v2146 = vld [vmem:[%s2117 + $0x70] sm:$0xf]
    %v2147 = vld [vmem:[%s2117 + $0x74] sm:$0xf]
    %v2148 = vld [vmem:[%s2117 + $0x78] sm:$0xf]
    %v2149 = vld [vmem:[%s2117 + $0x7c] sm:$0xf]
    %v2150 = vpack.c.bf16 %v2115, %v2113
    %v2151 = vpack.c.bf16 %v2116, %v2114
    %v2152 = vlaneseq
    %v2153 = vshrl.u32 %v2152, 7
    %v2154 = vsub.s32 3, %v2153
    %v2155 = vrot.slane %v1807, %v2154
    %v2188 = vunpack.c.l.b16 %v2118
    %v2189 = vunpack.c.l.b16 %v2119
    %v2190 = vunpack.c.l.b16 %v2120
    %v2191 = vunpack.c.l.b16 %v2121
    %v2192 = vunpack.c.l.b16 %v2122
    %v2193 = vunpack.c.l.b16 %v2123
    %v2194 = vunpack.c.l.b16 %v2124
    %v2195 = vunpack.c.l.b16 %v2125
    %v2196 = vunpack.c.l.b16 %v2126
    %v2197 = vunpack.c.l.b16 %v2127
    %v2198 = vunpack.c.l.b16 %v2128
    %v2199 = vunpack.c.l.b16 %v2129
    %v2200 = vunpack.c.l.b16 %v2130
    %v2201 = vunpack.c.l.b16 %v2131
    %v2202 = vunpack.c.l.b16 %v2132
    %v2203 = vunpack.c.l.b16 %v2133
    %v2204 = vunpack.c.l.b16 %v2134
    %v2205 = vunpack.c.l.b16 %v2135
    %v2206 = vunpack.c.l.b16 %v2136
    %v2207 = vunpack.c.l.b16 %v2137
    %v2208 = vunpack.c.l.b16 %v2138
    %v2209 = vunpack.c.l.b16 %v2139
    %v2210 = vunpack.c.l.b16 %v2140
    %v2211 = vunpack.c.l.b16 %v2141
    %v2212 = vunpack.c.l.b16 %v2142
    %v2213 = vunpack.c.l.b16 %v2143
    %v2214 = vunpack.c.l.b16 %v2144
    %v2215 = vunpack.c.l.b16 %v2145
    %v2216 = vunpack.c.l.b16 %v2146
    %v2217 = vunpack.c.l.b16 %v2147
    %v2218 = vunpack.c.l.b16 %v2148
    %v2219 = vunpack.c.l.b16 %v2149
    %v2220 = vpack.c.b16 %v2189, %v2188
    %v2221 = vpack.c.b16 %v2191, %v2190
    %v2222 = vpack.c.b16 %v2193, %v2192
    %v2223 = vpack.c.b16 %v2195, %v2194
    %v2224 = vpack.c.b16 %v2197, %v2196
    %v2225 = vpack.c.b16 %v2199, %v2198
    %v2226 = vpack.c.b16 %v2201, %v2200
    %v2227 = vpack.c.b16 %v2203, %v2202
    %v2228 = vpack.c.b16 %v2205, %v2204
    %v2229 = vpack.c.b16 %v2207, %v2206
    %v2230 = vpack.c.b16 %v2209, %v2208
    %v2231 = vpack.c.b16 %v2211, %v2210
    %v2232 = vpack.c.b16 %v2213, %v2212
    %v2233 = vpack.c.b16 %v2215, %v2214
    %v2234 = vpack.c.b16 %v2217, %v2216
    %v2235 = vpack.c.b16 %v2219, %v2218
    %2252 = vmatprep.subr.bf16.mxu0 0
    %2253 = vmatpush1.bf16.msra.mxu0 %v2220
    %2254 = vmatprep.subr.bf16.mxu0 0
    %2255 = vmatpush1.bf16.msra.mxu0 %v2221
    %2256 = vmatprep.subr.bf16.mxu0 0
    %2257 = vmatpush1.bf16.msra.mxu0 %v2222
    %2258 = vmatprep.subr.bf16.mxu0 0
    %2259 = vmatpush1.bf16.msra.mxu0 %v2223
    %2260 = vmatprep.subr.bf16.mxu0 0
    %2261 = vmatpush1.bf16.msra.mxu0 %v2224
    %2262 = vmatprep.subr.bf16.mxu0 0
    %2263 = vmatpush1.bf16.msra.mxu0 %v2225
    %2264 = vmatprep.subr.bf16.mxu0 0
    %2265 = vmatpush1.bf16.msra.mxu0 %v2226
    %2266 = vmatprep.subr.bf16.mxu0 0
    %2267 = vmatpush1.bf16.msra.mxu0 %v2227
    %2268 = vmatprep.subr.bf16.mxu0 0
    %2269 = vmatpush1.bf16.msra.mxu0 %v2228
    %2270 = vmatprep.subr.bf16.mxu0 0
    %2271 = vmatpush1.bf16.msra.mxu0 %v2229
    %2272 = vmatprep.subr.bf16.mxu0 0
    %2273 = vmatpush1.bf16.msra.mxu0 %v2230
    %2274 = vmatprep.subr.bf16.mxu0 0
    %2275 = vmatpush1.bf16.msra.mxu0 %v2231
    %2276 = vmatprep.subr.bf16.mxu0 0
    %2277 = vmatpush1.bf16.msra.mxu0 %v2232
    %2278 = vmatprep.subr.bf16.mxu0 0
    %2279 = vmatpush1.bf16.msra.mxu0 %v2233
    %2280 = vmatprep.subr.bf16.mxu0 0
    %2281 = vmatpush1.bf16.msra.mxu0 %v2234
    %2282 = vmatprep.subr.bf16.mxu0 0
    %2283 = vmatpush1.bf16.msra.mxu0 %v2235
    %2284 = vmatprep.mubr.bf16.mxu0 %v2151
    %2285 = vmatmul.mubr.bf16.gmra.mrb[0].mxu0 %v2150
    %v2286 = vpop.f32.mrb[0].mxu0
    %v2287 = vadd.f32 %v2155, %v2286
    %v2288 = vpop.f32.mrb[0].mxu0
    %v2289 = vpop.f32.mrb[0].mxu0
    %v2290 = vadd.f32 %v2155, %v2289
    %v2291 = vpop.f32.mrb[0].mxu0
    %2292 = vdwg.mxu0
    %v2293 = vadd.f32 %v1957, %v2287
    %v2294 = vadd.f32 %v1958, %v2290
    %2295 = vadd.xlane.f32.xlu0 %v2293
    %v2296 = vpop.xlane.xlu0 %2295
    %2297 = vadd.xlane.f32.xlu0 %v2294
    %v2298 = vpop.xlane.xlu0 %2297
    %v2299 = vmul.f32 %v2296, %v720
    %v2300 = vmul.f32 %v2298, %v720
    %v2301 = vmul.f32 %v2293, %v2293
    %v2302 = vmul.f32 %v2294, %v2294
    %2303 = vadd.xlane.f32.xlu0 %v2301
    %v2304 = vpop.xlane.xlu0 %2303
    %2305 = vadd.xlane.f32.xlu0 %v2302
    %v2306 = vpop.xlane.xlu0 %2305
    %v2307 = vmul.f32 %v2304, %v720
    %v2308 = vmul.f32 %v2306, %v720
    %v2309 = vmul.f32 %v2299, %v2299
    %v2310 = vmul.f32 %v2300, %v2300
    %v2311 = vsub.f32 %v2307, %v2309
    %v2312 = vsub.f32 %v2308, %v2310
    %v2313 = vsub.f32 %v2293, %v2299
    %v2314 = vsub.f32 %v2294, %v2300
    %v2315 = vadd.f32 %v2311, 1e-05
    %v2316 = vadd.f32 %v2312, 1e-05
    %v2317 = vrsqrt.pop %v2315
    %v2318 = vrsqrt.pop %v2316
    %v2319 = vmul.f32 %v2313, %v2317
    %v2320 = vmul.f32 %v2314, %v2318
    %v2321 = vlaneseq
    %v2322 = vshrl.u32 %v2321, 7
    %v2323 = vsub.s32 4, %v2322
    %v2324 = vrot.slane %v1807, %v2323
    %v2325 = vmul.f32 %v2319, %v2324
    %v2326 = vmul.f32 %v2320, %v2324
    %v2327 = vlaneseq
    %v2328 = vshrl.u32 %v2327, 7
    %v2329 = vsub.s32 5, %v2328
    %v2330 = vrot.slane %v1807, %v2329
    %v2331 = vadd.f32 %v2325, %v2330
    %v2332 = vadd.f32 %v2326, %v2330
    %v2333 = vld [vmem:[%s12] sm:$0x77]
    %v2334 = vld [vmem:[#allocation17] sm:$0xff]
    %v2335 = vld [vmem:[#allocation17 + $0x8] sm:$0xff]
    %v2336 = vld [vmem:[#allocation17 + $0x10] sm:$0xff]
    %v2337 = vld [vmem:[#allocation17 + $0x18] sm:$0xff]
    %v2338 = vld [vmem:[#allocation17 + $0x20] sm:$0xff]
    %v2339 = vld [vmem:[#allocation17 + $0x28] sm:$0xff]
    %v2340 = vld [vmem:[#allocation17 + $0x30] sm:$0xff]
    %v2341 = vld [vmem:[#allocation17 + $0x38] sm:$0xff]
    %v2342 = vld [vmem:[#allocation17 + $0x40] sm:$0xff]
    %v2343 = vld [vmem:[#allocation17 + $0x48] sm:$0xff]
    %v2344 = vld [vmem:[#allocation17 + $0x50] sm:$0xff]
    %v2345 = vld [vmem:[#allocation17 + $0x58] sm:$0xff]
    %v2346 = vld [vmem:[#allocation17 + $0x60] sm:$0xff]
    %v2347 = vld [vmem:[#allocation17 + $0x68] sm:$0xff]
    %v2348 = vld [vmem:[#allocation17 + $0x70] sm:$0xff]
    %v2349 = vld [vmem:[#allocation17 + $0x78] sm:$0xff]
    %v2350 = vpack.c.bf16 %v2332, %v2331
    %v2352 = vlaneseq
    %v2353 = vshrl.u32 %v2352, 7
    %v2354 = vsub.s32 0, %v2353
    %v2355 = vrot.slane %v2333, %v2354
    %v2356 = vlaneseq
    %v2357 = vshrl.u32 %v2356, 7
    %v2358 = vsub.s32 4, %v2357
    %v2359 = vrot.slane %v2333, %v2358
    %v2362 = vlaneseq
    %v2363 = vshrl.u32 %v2362, 7
    %v2364 = vsub.s32 0, %v2363
    %v2365 = vrot.slane %v2355, %v2364
    %v2366 = vlaneseq
    %v2367 = vshrl.u32 %v2366, 7
    %v2368 = vsub.s32 0, %v2367
    %v2369 = vrot.slane %v2359, %v2368
    %v2386 = vunpack.c.l.b16 %v2334
    %v2387 = vunpack.c.h.b16 %v2334
    %v2388 = vunpack.c.l.b16 %v2335
    %v2389 = vunpack.c.h.b16 %v2335
    %v2390 = vunpack.c.l.b16 %v2336
    %v2391 = vunpack.c.h.b16 %v2336
    %v2392 = vunpack.c.l.b16 %v2337
    %v2393 = vunpack.c.h.b16 %v2337
    %v2394 = vunpack.c.l.b16 %v2338
    %v2395 = vunpack.c.h.b16 %v2338
    %v2396 = vunpack.c.l.b16 %v2339
    %v2397 = vunpack.c.h.b16 %v2339
    %v2398 = vunpack.c.l.b16 %v2340
    %v2399 = vunpack.c.h.b16 %v2340
    %v2400 = vunpack.c.l.b16 %v2341
    %v2401 = vunpack.c.h.b16 %v2341
    %v2402 = vunpack.c.l.b16 %v2342
    %v2403 = vunpack.c.h.b16 %v2342
    %v2404 = vunpack.c.l.b16 %v2343
    %v2405 = vunpack.c.h.b16 %v2343
    %v2406 = vunpack.c.l.b16 %v2344
    %v2407 = vunpack.c.h.b16 %v2344
    %v2408 = vunpack.c.l.b16 %v2345
    %v2409 = vunpack.c.h.b16 %v2345
    %v2410 = vunpack.c.l.b16 %v2346
    %v2411 = vunpack.c.h.b16 %v2346
    %v2412 = vunpack.c.l.b16 %v2347
    %v2413 = vunpack.c.h.b16 %v2347
    %v2414 = vunpack.c.l.b16 %v2348
    %v2415 = vunpack.c.h.b16 %v2348
    %v2416 = vunpack.c.l.b16 %v2349
    %v2417 = vunpack.c.h.b16 %v2349
    %v2418 = vpack.c.b16 %v2388, %v2386
    %v2419 = vpack.c.b16 %v2389, %v2387
    %v2420 = vpack.c.b16 %v2392, %v2390
    %v2421 = vpack.c.b16 %v2393, %v2391
    %v2422 = vpack.c.b16 %v2396, %v2394
    %v2423 = vpack.c.b16 %v2397, %v2395
    %v2424 = vpack.c.b16 %v2400, %v2398
    %v2425 = vpack.c.b16 %v2401, %v2399
    %v2426 = vpack.c.b16 %v2404, %v2402
    %v2427 = vpack.c.b16 %v2405, %v2403
    %v2428 = vpack.c.b16 %v2408, %v2406
    %v2429 = vpack.c.b16 %v2409, %v2407
    %v2430 = vpack.c.b16 %v2412, %v2410
    %v2431 = vpack.c.b16 %v2413, %v2411
    %v2432 = vpack.c.b16 %v2416, %v2414
    %v2433 = vpack.c.b16 %v2417, %v2415
    %2450 = vmatprep.subr.bf16.mxu0 %v2419
    %2451 = vmatpush1.bf16.msra.mxu0 %v2418
    %2452 = vmatprep.subr.bf16.mxu0 %v2421
    %2453 = vmatpush1.bf16.msra.mxu0 %v2420
    %2454 = vmatprep.subr.bf16.mxu0 %v2423
    %2455 = vmatpush1.bf16.msra.mxu0 %v2422
    %2456 = vmatprep.subr.bf16.mxu0 %v2425
    %2457 = vmatpush1.bf16.msra.mxu0 %v2424
    %2458 = vmatprep.subr.bf16.mxu0 %v2427
    %2459 = vmatpush1.bf16.msra.mxu0 %v2426
    %2460 = vmatprep.subr.bf16.mxu0 %v2429
    %2461 = vmatpush1.bf16.msra.mxu0 %v2428
    %2462 = vmatprep.subr.bf16.mxu0 %v2431
    %2463 = vmatpush1.bf16.msra.mxu0 %v2430
    %2464 = vmatprep.subr.bf16.mxu0 %v2433
    %2465 = vmatpush1.bf16.msra.mxu0 %v2432
    %2466 = vmatprep.subr.bf16.mxu0 0
    %2467 = vmatpush1.bf16.msra.mxu0 0
    %2468 = vmatprep.subr.bf16.mxu0 0
    %2469 = vmatpush1.bf16.msra.mxu0 0
    %2470 = vmatprep.subr.bf16.mxu0 0
    %2471 = vmatpush1.bf16.msra.mxu0 0
    %2472 = vmatprep.subr.bf16.mxu0 0
    %2473 = vmatpush1.bf16.msra.mxu0 0
    %2474 = vmatprep.subr.bf16.mxu0 0
    %2475 = vmatpush1.bf16.msra.mxu0 0
    %2476 = vmatprep.subr.bf16.mxu0 0
    %2477 = vmatpush1.bf16.msra.mxu0 0
    %2478 = vmatprep.subr.bf16.mxu0 0
    %2479 = vmatpush1.bf16.msra.mxu0 0
    %2480 = vmatprep.subr.bf16.mxu0 0
    %2481 = vmatpush1.bf16.msra.mxu0 0
    %2482 = vmatprep.mubr.bf16.mxu0 0
    %2483 = vmatmul.mubr.bf16.gmra.mrb[0].mxu0 %v2350
    %v2484 = vpop.f32.mrb[0].mxu0
    %v2485 = vadd.f32 %v2365, %v2484
    %v2486 = vpop.f32.mrb[0].mxu0
    %v2487 = vadd.f32 %v2369, %v2486
    %v2488 = vpop.f32.mrb[0].mxu0
    %v2489 = vadd.f32 %v2365, %v2488
    %v2490 = vpop.f32.mrb[0].mxu0
    %v2491 = vadd.f32 %v2369, %v2490
    %2492 = vdwg.mxu0
    %v2493 = vadd.f32 %v2485, %v2487
    %2494 = vadd.xlane.f32.xlu0 %v2493
    %v2495 = vpop.xlane.xlu0 %2494
    %v2496 = vadd.f32 %v2489, %v2491
    %2497 = vadd.xlane.f32.xlu0 %v2496
    %v2498 = vpop.xlane.xlu0 %2497
    %v2499 = vmul.f32 %v2495, %v461
    %v2500 = vmul.f32 %v2498, %v461
    %v2501 = vmul.f32 %v2485, %v2485
    %v2502 = vmul.f32 %v2487, %v2487
    %v2503 = vmul.f32 %v2489, %v2489
    %v2504 = vmul.f32 %v2491, %v2491
    %v2505 = vadd.f32 %v2501, %v2502
    %2506 = vadd.xlane.f32.xlu0 %v2505
    %v2507 = vpop.xlane.xlu0 %2506
    %v2508 = vadd.f32 %v2503, %v2504
    %2509 = vadd.xlane.f32.xlu0 %v2508
    %v2510 = vpop.xlane.xlu0 %2509
    %v2511 = vmul.f32 %v2507, %v461
    %v2512 = vmul.f32 %v2510, %v461
    %v2513 = vmul.f32 %v2499, %v2499
    %v2514 = vmul.f32 %v2500, %v2500
    %v2515 = vsub.f32 %v2511, %v2513
    %v2516 = vsub.f32 %v2512, %v2514
    %v2517 = vsub.f32 %v2485, %v2499
    %v2518 = vsub.f32 %v2487, %v2499
    %v2519 = vsub.f32 %v2489, %v2500
    %v2520 = vsub.f32 %v2491, %v2500
    %v2521 = vadd.f32 %v2515, 1e-05
    %v2522 = vadd.f32 %v2516, 1e-05
    %v2523 = vrsqrt.pop %v2521
    %v2524 = vrsqrt.pop %v2522
    %v2525 = vmul.f32 %v2517, %v2523
    %v2526 = vmul.f32 %v2518, %v2523
    %v2527 = vmul.f32 %v2519, %v2524
    %v2528 = vmul.f32 %v2520, %v2524
    %v2529 = vlaneseq
    %v2530 = vshrl.u32 %v2529, 7
    %v2531 = vsub.s32 1, %v2530
    %v2532 = vrot.slane %v2333, %v2531
    %v2533 = vlaneseq
    %v2534 = vshrl.u32 %v2533, 7
    %v2535 = vsub.s32 5, %v2534
    %v2536 = vrot.slane %v2333, %v2535
    %v2539 = vlaneseq
    %v2540 = vshrl.u32 %v2539, 7
    %v2541 = vsub.s32 1, %v2540
    %v2542 = vrot.slane %v2532, %v2541
    %v2543 = vlaneseq
    %v2544 = vshrl.u32 %v2543, 7
    %v2545 = vsub.s32 1, %v2544
    %v2546 = vrot.slane %v2536, %v2545
    %v2547 = vmul.f32 %v2525, %v2542
    %v2548 = vmul.f32 %v2526, %v2546
    %v2549 = vmul.f32 %v2527, %v2542
    %v2550 = vmul.f32 %v2528, %v2546
    %v2551 = vlaneseq
    %v2552 = vshrl.u32 %v2551, 7
    %v2553 = vsub.s32 2, %v2552
    %v2554 = vrot.slane %v2333, %v2553
    %v2555 = vlaneseq
    %v2556 = vshrl.u32 %v2555, 7
    %v2557 = vsub.s32 6, %v2556
    %v2558 = vrot.slane %v2333, %v2557
    %v2561 = vlaneseq
    %v2562 = vshrl.u32 %v2561, 7
    %v2563 = vsub.s32 2, %v2562
    %v2564 = vrot.slane %v2554, %v2563
    %v2565 = vlaneseq
    %v2566 = vshrl.u32 %v2565, 7
    %v2567 = vsub.s32 2, %v2566
    %v2568 = vrot.slane %v2558, %v2567
    %v2569 = vadd.f32 %v2547, %v2564
    %v2570 = vadd.f32 %v2548, %v2568
    %v2571 = vadd.f32 %v2549, %v2564
    %v2572 = vadd.f32 %v2550, %v2568
    %v2573 = vmax.f32 %v2569, 0.0
    %v2574 = vmax.f32 %v2570, 0.0
    %v2575 = vmax.f32 %v2571, 0.0
    %v2576 = vmax.f32 %v2572, 0.0
    %v2577 = vld [vmem:[#allocation19] sm:$0xf]
    %v2578 = vld [vmem:[#allocation19 + $0x4] sm:$0xf]
    %v2579 = vld [vmem:[#allocation19 + $0x8] sm:$0xf]
    %v2580 = vld [vmem:[#allocation19 + $0xc] sm:$0xf]
    %v2581 = vld [vmem:[#allocation19 + $0x10] sm:$0xf]
    %v2582 = vld [vmem:[#allocation19 + $0x14] sm:$0xf]
    %v2583 = vld [vmem:[#allocation19 + $0x18] sm:$0xf]
    %v2584 = vld [vmem:[#allocation19 + $0x1c] sm:$0xf]
    %v2585 = vld [vmem:[#allocation19 + $0x20] sm:$0xf]
    %v2586 = vld [vmem:[#allocation19 + $0x24] sm:$0xf]
    %v2587 = vld [vmem:[#allocation19 + $0x28] sm:$0xf]
    %v2588 = vld [vmem:[#allocation19 + $0x2c] sm:$0xf]
    %v2589 = vld [vmem:[#allocation19 + $0x30] sm:$0xf]
    %v2590 = vld [vmem:[#allocation19 + $0x34] sm:$0xf]
    %v2591 = vld [vmem:[#allocation19 + $0x38] sm:$0xf]
    %v2592 = vld [vmem:[#allocation19 + $0x3c] sm:$0xf]
    %v2593 = vld [vmem:[#allocation19 + $0x40] sm:$0xf]
    %v2594 = vld [vmem:[#allocation19 + $0x44] sm:$0xf]
    %v2595 = vld [vmem:[#allocation19 + $0x48] sm:$0xf]
    %v2596 = vld [vmem:[#allocation19 + $0x4c] sm:$0xf]
    %v2597 = vld [vmem:[#allocation19 + $0x50] sm:$0xf]
    %v2598 = vld [vmem:[#allocation19 + $0x54] sm:$0xf]
    %v2599 = vld [vmem:[#allocation19 + $0x58] sm:$0xf]
    %v2600 = vld [vmem:[#allocation19 + $0x5c] sm:$0xf]
    %v2601 = vld [vmem:[#allocation19 + $0x60] sm:$0xf]
    %v2602 = vld [vmem:[#allocation19 + $0x64] sm:$0xf]
    %v2603 = vld [vmem:[#allocation19 + $0x68] sm:$0xf]
    %v2604 = vld [vmem:[#allocation19 + $0x6c] sm:$0xf]
    %v2605 = vld [vmem:[#allocation19 + $0x70] sm:$0xf]
    %v2606 = vld [vmem:[#allocation19 + $0x74] sm:$0xf]
    %v2607 = vld [vmem:[#allocation19 + $0x78] sm:$0xf]
    %v2608 = vld [vmem:[#allocation19 + $0x7c] sm:$0xf]
    %v2609 = vld [vmem:[%s13] sm:$0x1]
    %v2610 = vpack.c.bf16 %v2575, %v2573
    %v2611 = vpack.c.bf16 %v2576, %v2574
    %v2613 = vlaneseq
    %v2614 = vshrl.u32 %v2613, 7
    %v2615 = vsub.s32 0, %v2614
    %v2616 = vrot.slane %v2609, %v2615
    %v2650 = vunpack.c.l.b16 %v2577
    %v2651 = vunpack.c.l.b16 %v2578
    %v2652 = vunpack.c.l.b16 %v2579
    %v2653 = vunpack.c.l.b16 %v2580
    %v2654 = vunpack.c.l.b16 %v2581
    %v2655 = vunpack.c.l.b16 %v2582
    %v2656 = vunpack.c.l.b16 %v2583
    %v2657 = vunpack.c.l.b16 %v2584
    %v2658 = vunpack.c.l.b16 %v2585
    %v2659 = vunpack.c.l.b16 %v2586
    %v2660 = vunpack.c.l.b16 %v2587
    %v2661 = vunpack.c.l.b16 %v2588
    %v2662 = vunpack.c.l.b16 %v2589
    %v2663 = vunpack.c.l.b16 %v2590
    %v2664 = vunpack.c.l.b16 %v2591
    %v2665 = vunpack.c.l.b16 %v2592
    %v2666 = vunpack.c.l.b16 %v2593
    %v2667 = vunpack.c.l.b16 %v2594
    %v2668 = vunpack.c.l.b16 %v2595
    %v2669 = vunpack.c.l.b16 %v2596
    %v2670 = vunpack.c.l.b16 %v2597
    %v2671 = vunpack.c.l.b16 %v2598
    %v2672 = vunpack.c.l.b16 %v2599
    %v2673 = vunpack.c.l.b16 %v2600
    %v2674 = vunpack.c.l.b16 %v2601
    %v2675 = vunpack.c.l.b16 %v2602
    %v2676 = vunpack.c.l.b16 %v2603
    %v2677 = vunpack.c.l.b16 %v2604
    %v2678 = vunpack.c.l.b16 %v2605
    %v2679 = vunpack.c.l.b16 %v2606
    %v2680 = vunpack.c.l.b16 %v2607
    %v2681 = vunpack.c.l.b16 %v2608
    %v2682 = vpack.c.b16 %v2651, %v2650
    %v2683 = vpack.c.b16 %v2653, %v2652
    %v2684 = vpack.c.b16 %v2655, %v2654
    %v2685 = vpack.c.b16 %v2657, %v2656
    %v2686 = vpack.c.b16 %v2659, %v2658
    %v2687 = vpack.c.b16 %v2661, %v2660
    %v2688 = vpack.c.b16 %v2663, %v2662
    %v2689 = vpack.c.b16 %v2665, %v2664
    %v2690 = vpack.c.b16 %v2667, %v2666
    %v2691 = vpack.c.b16 %v2669, %v2668
    %v2692 = vpack.c.b16 %v2671, %v2670
    %v2693 = vpack.c.b16 %v2673, %v2672
    %v2694 = vpack.c.b16 %v2675, %v2674
    %v2695 = vpack.c.b16 %v2677, %v2676
    %v2696 = vpack.c.b16 %v2679, %v2678
    %v2697 = vpack.c.b16 %v2681, %v2680
    %2714 = vmatprep.subr.bf16.mxu0 0
    %2715 = vmatpush1.bf16.msra.mxu0 %v2682
    %2716 = vmatprep.subr.bf16.mxu0 0
    %2717 = vmatpush1.bf16.msra.mxu0 %v2683
    %2718 = vmatprep.subr.bf16.mxu0 0
    %2719 = vmatpush1.bf16.msra.mxu0 %v2684
    %2720 = vmatprep.subr.bf16.mxu0 0
    %2721 = vmatpush1.bf16.msra.mxu0 %v2685
    %2722 = vmatprep.subr.bf16.mxu0 0
    %2723 = vmatpush1.bf16.msra.mxu0 %v2686
    %2724 = vmatprep.subr.bf16.mxu0 0
    %2725 = vmatpush1.bf16.msra.mxu0 %v2687
    %2726 = vmatprep.subr.bf16.mxu0 0
    %2727 = vmatpush1.bf16.msra.mxu0 %v2688
    %2728 = vmatprep.subr.bf16.mxu0 0
    %2729 = vmatpush1.bf16.msra.mxu0 %v2689
    %2730 = vmatprep.subr.bf16.mxu0 0
    %2731 = vmatpush1.bf16.msra.mxu0 %v2690
    %2732 = vmatprep.subr.bf16.mxu0 0
    %2733 = vmatpush1.bf16.msra.mxu0 %v2691
    %2734 = vmatprep.subr.bf16.mxu0 0
    %2735 = vmatpush1.bf16.msra.mxu0 %v2692
    %2736 = vmatprep.subr.bf16.mxu0 0
    %2737 = vmatpush1.bf16.msra.mxu0 %v2693
    %2738 = vmatprep.subr.bf16.mxu0 0
    %2739 = vmatpush1.bf16.msra.mxu0 %v2694
    %2740 = vmatprep.subr.bf16.mxu0 0
    %2741 = vmatpush1.bf16.msra.mxu0 %v2695
    %2742 = vmatprep.subr.bf16.mxu0 0
    %2743 = vmatpush1.bf16.msra.mxu0 %v2696
    %2744 = vmatprep.subr.bf16.mxu0 0
    %2745 = vmatpush1.bf16.msra.mxu0 %v2697
    %2746 = vmatprep.mubr.bf16.mxu0 %v2611
    %2747 = vmatmul.mubr.bf16.gmra.mrb[0].mxu0 %v2610
    %v2748 = vpop.f32.mrb[0].mxu0
    %v2749 = vadd.f32 %v2616, %v2748
    %v2750 = vpop.f32.mrb[0].mxu0
    %v2751 = vpop.f32.mrb[0].mxu0
    %v2752 = vadd.f32 %v2616, %v2751
    %v2753 = vpop.f32.mrb[0].mxu0
    %2754 = vdwg.mxu0
    %2755 = vst [vmem:[#allocation20] sm:$0xff] %v2749
    %2756 = vst [vmem:[#allocation20 + $0x8] sm:$0xff] %v2752
    // Predicated region
    $region102: #{tpu_custom_call.1} parent=1 // pred_check
      _
    $region103: #{tpu_custom_call.1} parent=1 // pred_check_branch
      %2758 = sbr.rel (0) target = $region105
    $region104: #{tpu_custom_call.1} parent=1 // pred_region
      %s2760 = ssub.s32 256, 256
      %2761 = vsyncadd [#allocation4], %s2760
      %s2762 = sshll.u32 [#allocation20], 4
      %s2763 = int_to_ptr.vmem [resolvable:$true] %s2762
      %2768 = dma.vmem_to_hbm [thread:$0]  %s2763, 256, %s14, [#allocation4], 128, 128, 8
    $region105: #{tpu_custom_call.1} parent=1 // pred_fallthru
      _
    // Predicated region
    $region106: #{tpu_custom_call.1} parent=1 // pred_check
      _
    $region107: #{tpu_custom_call.1} parent=1 // pred_check_branch
      %2770 = sbr.rel (0) target = $region109
    $region108: #{tpu_custom_call.1} parent=1 // pred_region
      %2771 = dma.done [#allocation4], 256
    $region109: #{tpu_custom_call.1} parent=1 // pred_fallthru
      _
    %2772 = vsyncpa [#allocation3], 1
    %2773 = vsyncpa [#allocation6], 1
    %2774 = vsyncpa [#allocation9], 1
    %2775 = vsyncpa [#allocation12], 1
    %2776 = vsyncpa [#allocation15], 1
    %2777 = vsyncpa [#allocation18], 1
    %2778 = vsyncpa [#allocation4], 1

</llo_original>
